<compile_context>
chip_gen: v6e
topology: v6e:2x2x1
jax: 0.10.0
libtpu: 0.0.40
codegen_flags: <defaults>
</compile_context>

<pallas_src>
import jax
import jax.numpy as jnp
from jax import lax
from jax.experimental import pallas as pl
from jax.experimental.pallas import tpu as pltpu


# --------------------------------------------------------------------------------------
# Helpers
# --------------------------------------------------------------------------------------
def _pick_row_block(Ho, Wo, Cmax):
    """Largest divisor of Ho keeping the per-block accumulator modest (cap 64 rows)."""
    target = max(8, min(64, (1 << 20) // max(1, Wo * Cmax)))
    hb = min(target, Ho)
    while Ho % hb:
        hb -= 1
    return hb


def _vmem_limit_bytes():
    # ~48 MiB on v7x (64 MiB physical), ~96 MiB on v5e/v6e (128 MiB physical).
    try:
        phys = int(pltpu.get_tpu_info().vmem_capacity_bytes)
        return min(phys * 3 // 4, 112 * 1024 * 1024)
    except Exception:
        return 48 * 1024 * 1024


# --------------------------------------------------------------------------------------
# In-kernel building blocks
# --------------------------------------------------------------------------------------
def _conv3x3_taps(slab_ref, w_ref, acc_ref):
    """3x3 'same' conv as 9 accumulated tap matmuls (no im2col scratch).

    slab_ref: (Hb+2, Wo+2, C) bf16 zero-padded activation slab.
    w_ref:    (9, C, Cout) bf16 tap-major weights (t = ky*3 + kx).
    acc_ref:  (Hb*Wo, Cout) f32 VMEM accumulator (fully overwritten).
    """
    Hp2, Wp2, C = slab_ref.shape
    Hb, Wo = Hp2 - 2, Wp2 - 2
    M = Hb * Wo
    for t in range(9):
        dy, dx = divmod(t, 3)
        lhs = slab_ref[dy:dy + Hb, dx:dx + Wo, :].reshape(M, C)
        contrib = jnp.dot(lhs, w_ref[t], preferred_element_type=jnp.float32)
        if t == 0:
            acc_ref[...] = contrib
        else:
            acc_ref[...] += contrib


def _block_stats(v, st_ref):
    """v: (M, C) f32 -> st_ref (1, 2, C): [block sum, block-centered sum of squares]."""
    M = v.shape[0]
    s = jnp.sum(v, axis=0, keepdims=True)                 # (1, C)
    d = v - s * (1.0 / M)
    ss = jnp.sum(d * d, axis=0, keepdims=True)            # (1, C)
    st_ref[0:1, 0:1, :] = s.reshape(1, 1, -1)
    st_ref[0:1, 1:2, :] = ss.reshape(1, 1, -1)


def _fill_slab(slab_ref, center_bf16, halo_ref, Hb, Wo, C):
    """Assemble (Hb+2, Wo+2, C) zero-padded slab from center block + 2 halo rows."""
    zcol = jnp.zeros((Hb + 2, 1, C), slab_ref.dtype)
    slab_ref[:, 0:1, :] = zcol                            # left padding column (incl. corners)
    slab_ref[:, Wo + 1:Wo + 2, :] = zcol                  # right padding column
    hv = halo_ref[0]                                      # (2, Wo, C); edge rows are zeros
    slab_ref[0:1, 1:Wo + 1, :] = hv[0:1]
    slab_ref[Hb + 1:Hb + 2, 1:Wo + 1, :] = hv[1:2]
    slab_ref[1:Hb + 1, 1:Wo + 1, :] = center_bf16


# --------------------------------------------------------------------------------------
# Kernel bodies
# --------------------------------------------------------------------------------------
def _pool_conv1_kernel(x_ref, halo_ref, w_ref, b_ref, y1_ref, st_ref, slab_ref, acc_ref):
    # x_ref: (Hb, 2, Wo, 2*Cin) bf16 -- one row-block of the folded NHWC image.
    Hb, _, Wo, two_cin = x_ref.shape
    Cin = two_cin // 2

    # ---- MaxPool2d(2): H pair = axis 1, W pair = channel-split of the folded last dim ----
    xv = x_ref[...]
    rmax = jnp.maximum(xv[:, 0], xv[:, 1])                          # (Hb, Wo, 2*Cin)
    pooled = jnp.maximum(rmax[..., :Cin], rmax[..., Cin:])          # (Hb, Wo, Cin) bf16

    _fill_slab(slab_ref, pooled, halo_ref, Hb, Wo, Cin)

    # ---- conv1 (pre-BN): 9 accumulated tap matmuls ----
    _conv3x3_taps(slab_ref, w_ref, acc_ref)
    y1 = acc_ref[...] + b_ref[...]                                  # (Hb*Wo, Cmid) f32

    _block_stats(y1, st_ref)
    y1_ref[...] = y1.reshape(Hb, Wo, -1).astype(y1_ref.dtype)


def _bn1_conv2_kernel(y1_ref, halo_ref, sc_ref, sh_ref, w_ref, b_ref,
                      y2_ref, st_ref, slab_ref, acc_ref):
    Hb, Wo, Cmid = y1_ref.shape

    # BN1 (global batch stats folded to per-channel scale/shift) + ReLU in f32 on the VPU.
    a1 = jnp.maximum(y1_ref[...].astype(jnp.float32) * sc_ref[...] + sh_ref[...], 0.0)

    # Halo rows arrive already BN1+ReLU'd (or exact zeros at image edges).
    _fill_slab(slab_ref, a1.astype(slab_ref.dtype), halo_ref, Hb, Wo, Cmid)

    _conv3x3_taps(slab_ref, w_ref, acc_ref)
    y2 = acc_ref[...] + b_ref[...]                                   # (Hb*Wo, Cout) f32

    _block_stats(y2, st_ref)
    y2_ref[...] = y2.reshape(Hb, Wo, -1).astype(y2_ref.dtype)


# --------------------------------------------------------------------------------------
# Wrapper
# --------------------------------------------------------------------------------------
def down_forward(x_nchw, params):
    """x_nchw: (N, Cin, H, W) float32. Returns (N, Cout, H//2, W//2) float32."""
    w1, b1, g1, be1, w2, b2, g2, be2 = params
    N, Cin, H, W = x_nchw.shape
    Ho, Wo = H // 2, W // 2
    Cmid, Cout = w1.shape[0], w2.shape[0]
    eps = 1e-5

    Hb = _pick_row_block(Ho, Wo, max(Cin, Cmid, Cout))
    R = Ho // Hb
    m_blk = Hb * Wo
    m_tot = N * Ho * Wo

    # ---- ingest: NCHW -> NHWC (a real XLA copy; halved by the bf16 cast) ----
    x_ev = x_nchw[:, :, :2 * Ho, :2 * Wo]                      # MaxPool2d(2) floors odd dims
    x_nhwc = jnp.transpose(x_ev, (0, 2, 3, 1)).astype(jnp.bfloat16)
    x_folded = x_nhwc.reshape(N, Ho, 2, Wo, 2 * Cin)           # metadata-only reshape

    # Tap-major weights (9, C, Cout); bf16 MXU operands, f32 accumulation.
    w1_t = jnp.transpose(w1, (2, 3, 1, 0)).reshape(9, Cin, Cmid).astype(jnp.bfloat16)
    w2_t = jnp.transpose(w2, (2, 3, 1, 0)).reshape(9, Cmid, Cout).astype(jnp.bfloat16)
    b1_r = b1.reshape(1, Cmid).astype(jnp.float32)
    b2_r = b2.reshape(1, Cout).astype(jnp.float32)

    cparams = pltpu.CompilerParams(dimension_semantics=("parallel", "parallel"),
                                   vmem_limit_bytes=_vmem_limit_bytes())

    # ---- pass-1 halo rows: pooled rows r*Hb-1 / (r+1)*Hb (zeros at the image edges) ----
    def _pool_rows(v):                                          # (N,K,2,Wo,2Cin)->(N,K,Wo,Cin)
        rmax = jnp.max(v, axis=2)
        return jnp.maximum(rmax[..., :Cin], rmax[..., Cin:])

    zin = jnp.zeros((N, 1, Wo, Cin), jnp.bfloat16)
    if R > 1:
        top1 = jnp.concatenate([zin, _pool_rows(x_folded[:, Hb - 1:Ho - 1:Hb])], axis=1)
        bot1 = jnp.concatenate([_pool_rows(x_folded[:, Hb:Ho:Hb]), zin], axis=1)
    else:
        top1, bot1 = zin, zin
    halo1 = jnp.stack([top1, bot1], axis=2)                     # (N, R, 2, Wo, Cin) bf16

    # ---- pass 1: maxpool + conv1 (pre-BN) + per-block BN partial stats ----
    y1, st1 = pl.pallas_call(
        _pool_conv1_kernel,
        grid=(N, R),
        in_specs=[
            pl.BlockSpec((None, Hb, 2, Wo, 2 * Cin), lambda n, r: (n, r, 0, 0, 0)),
            pl.BlockSpec((None, 1, 2, Wo, Cin), lambda n, r: (n, r, 0, 0, 0)),
            pl.BlockSpec((9, Cin, Cmid), lambda n, r: (0, 0, 0)),
            pl.BlockSpec((1, Cmid), lambda n, r: (0, 0)),
        ],
        out_specs=[
            pl.BlockSpec((None, Hb, Wo, Cmid), lambda n, r: (n, r, 0, 0)),
            pl.BlockSpec((None, 1, 2, Cmid), lambda n, r: (n, r, 0, 0)),
        ],
        out_shape=[
            jax.ShapeDtypeStruct((N, Ho, Wo, Cmid), jnp.bfloat16),
            jax.ShapeDtypeStruct((N, R, 2, Cmid), jnp.float32),
        ],
        scratch_shapes=[
            pltpu.VMEM((Hb + 2, Wo + 2, Cin), jnp.bfloat16),
            pltpu.VMEM((Hb * Wo, Cmid), jnp.float32),
        ],
        compiler_params=cparams,
    )(x_folded, halo1, w1_t, b1_r)

    # ---- global BN stats: Chan-combine per-block (sum, centered SS) -> scale/shift ----
    def bn_affine(st, gamma, beta):
        s = st[:, :, 0, :]                                      # (N, R, C) block sums
        ss = st[:, :, 1, :]                                     # (N, R, C) centered SS
        mean_b = s / m_blk
        mean = jnp.sum(s, axis=(0, 1)) / m_tot
        ss_tot = jnp.sum(ss, axis=(0, 1)) + m_blk * jnp.sum((mean_b - mean) ** 2, axis=(0, 1))
        var = ss_tot / m_tot                                    # biased (PyTorch training fwd)
        scale = gamma.astype(jnp.float32) * lax.rsqrt(var + eps)
        shift = beta.astype(jnp.float32) - mean * scale
        return scale, shift

    sc1, sh1 = bn_affine(st1, g1, be1)

    # ---- pass-2 halo rows: BN1+ReLU applied in the wrapper (zeros at image edges) ----
    def _bn_relu(v, scale, shift):
        return jnp.maximum(v.astype(jnp.float32) * scale + shift, 0.0)

    zmid = jnp.zeros((N, 1, Wo, Cmid), jnp.float32)
    if R > 1:
        top2 = jnp.concatenate([zmid, _bn_relu(y1[:, Hb - 1:Ho - 1:Hb], sc1, sh1)], axis=1)
        bot2 = jnp.concatenate([_bn_relu(y1[:, Hb:Ho:Hb], sc1, sh1), zmid], axis=1)
    else:
        top2, bot2 = zmid, zmid
    halo2 = jnp.stack([top2, bot2], axis=2).astype(jnp.bfloat16)  # (N, R, 2, Wo, Cmid)

    sc1_r = sc1.reshape(1, 1, Cmid)
    sh1_r = sh1.reshape(1, 1, Cmid)

    # ---- pass 2: BN1 + ReLU + conv2 (pre-BN) + per-block BN partial stats ----
    y2, st2 = pl.pallas_call(
        _bn1_conv2_kernel,
        grid=(N, R),
        in_specs=[
            pl.BlockSpec((None, Hb, Wo, Cmid), lambda n, r: (n, r, 0, 0)),
            pl.BlockSpec((None, 1, 2, Wo, Cmid), lambda n, r: (n, r, 0, 0, 0)),
            pl.BlockSpec((1, 1, Cmid), lambda n, r: (0, 0, 0)),
            pl.BlockSpec((1, 1, Cmid), lambda n, r: (0, 0, 0)),
            pl.BlockSpec((9, Cmid, Cout), lambda n, r: (0, 0, 0)),
            pl.BlockSpec((1, Cout), lambda n, r: (0, 0)),
        ],
        out_specs=[
            pl.BlockSpec((None, Hb, Wo, Cout), lambda n, r: (n, r, 0, 0)),
            pl.BlockSpec((None, 1, 2, Cout), lambda n, r: (n, r, 0, 0)),
        ],
        out_shape=[
            jax.ShapeDtypeStruct((N, Ho, Wo, Cout), jnp.bfloat16),
            jax.ShapeDtypeStruct((N, R, 2, Cout), jnp.float32),
        ],
        scratch_shapes=[
            pltpu.VMEM((Hb + 2, Wo + 2, Cmid), jnp.bfloat16),
            pltpu.VMEM((Hb * Wo, Cout), jnp.float32),
        ],
        compiler_params=cparams,
    )(y1, halo2, sc1_r, sh1_r, w2_t, b2_r)

    sc2, sh2 = bn_affine(st2, g2, be2)

    # ---- BN2 + ReLU fused by XLA into the NCHW-producing transpose (no standalone pass:
    #      one HBM read of bf16 y2 + one NCHW f32 write). ----
    out_nhwc = jnp.maximum(y2.astype(jnp.float32) * sc2 + sh2, 0.0)
    return jnp.transpose(out_nhwc, (0, 3, 1, 2))


# --------------------------------------------------------------------------------------
# Pure-JAX reference (correctness check only)
# --------------------------------------------------------------------------------------
def _ref_down(x_nchw, params):
    w1, b1, g1, be1, w2, b2, g2, be2 = params
    N, Cin, H, W = x_nchw.shape
    xp = x_nchw[:, :, :(H // 2) * 2, :(W // 2) * 2]
    xp = xp.reshape(N, Cin, H // 2, 2, W // 2, 2).max(axis=(3, 5))

    def conv_bn_relu(x, w, b, g, be):
        y = lax.conv_general_dilated(
            x, w, window_strides=(1, 1), padding=((1, 1), (1, 1)),
            dimension_numbers=("NCHW", "OIHW", "NCHW"),
            precision=lax.Precision.HIGHEST)
        y = y + b[None, :, None, None]
        mean = y.mean(axis=(0, 2, 3), keepdims=True)
        var = ((y - mean) ** 2).mean(axis=(0, 2, 3), keepdims=True)
        yn = (y - mean) / jnp.sqrt(var + 1e-5)
        return jnp.maximum(yn * g[None, :, None, None] + be[None, :, None, None], 0.0)

    y = conv_bn_relu(xp, w1, b1, g1, be1)
    return conv_bn_relu(y, w2, b2, g2, be2)


if __name__ == "__main__":
    N, Cin, H, W = 2, 4, 16, 16
    Cout = 8
    Cmid = Cout  # DoubleConv default: mid_channels = out_channels

    key = jax.random.PRNGKey(0)
    ks = jax.random.split(key, 9)
    x = jax.random.normal(ks[0], (N, Cin, H, W), jnp.float32)

    # Deterministic synthetic parameters (shapes from the module's __init__).
    w1 = 0.1 * jax.random.normal(ks[1], (Cmid, Cin, 3, 3), jnp.float32)
    b1 = 0.1 * jax.random.normal(ks[2], (Cmid,), jnp.float32)
    g1 = 1.0 + 0.1 * jax.random.normal(ks[3], (Cmid,), jnp.float32)
    be1 = 0.1 * jax.random.normal(ks[4], (Cmid,), jnp.float32)
    w2 = 0.1 * jax.random.normal(ks[5], (Cout, Cmid, 3, 3), jnp.float32)
    b2 = 0.1 * jax.random.normal(ks[6], (Cout,), jnp.float32)
    g2 = 1.0 + 0.1 * jax.random.normal(ks[7], (Cout,), jnp.float32)
    be2 = 0.1 * jax.random.normal(ks[8], (Cout,), jnp.float32)
    params = (w1, b1, g1, be1, w2, b2, g2, be2)

    out = jax.block_until_ready(jax.jit(down_forward)(x, params))
    ref = jax.block_until_ready(_ref_down(x, params))

    assert out.shape == (N, Cout, H // 2, W // 2), out.shape
    # bf16 input / bf16 inter-pass activations (per review) -> slightly looser tolerance
    # than a pure-f32 pipeline; BN stats and matmul accumulation remain f32.
    assert jnp.allclose(out, ref, rtol=5e-2, atol=5e-2), float(jnp.max(jnp.abs(out - ref)))
    print("KERNEL_OK")
</pallas_src>

<mosaic_0001>
module attributes {stable_mosaic.version = 11 : i64} {
  func.func @_pool_conv1_kernel(%arg0: i32, %arg1: i32, %arg2: memref<1x8x2x8x8xbf16, #tpu.memory_space<vmem>>, %arg3: memref<1x1x2x8x4xbf16, #tpu.memory_space<vmem>>, %arg4: memref<9x4x8xbf16, #tpu.memory_space<vmem>>, %arg5: memref<1x8xf32, #tpu.memory_space<vmem>>, %arg6: memref<1x8x8x8xbf16, #tpu.memory_space<vmem>>, %arg7: memref<1x1x2x8xf32, #tpu.memory_space<vmem>>, %arg8: memref<10x10x4xbf16, #tpu.memory_space<vmem>>, %arg9: memref<64x8xf32, #tpu.memory_space<vmem>>) attributes {dimension_semantics = [#tpu.dimension_semantics<parallel>, #tpu.dimension_semantics<parallel>], iteration_bounds = array<i64: 2, 1>, scalar_prefetch = 0 : i64, scratch_operands = 2 : i64, tpu.core_type = #tpu.core_type<tc>, window_params = [{transform_indices = @transform_0, window_bounds = array<i64: 1, 8, 2, 8, 8>}, {transform_indices = @transform_1, window_bounds = array<i64: 1, 1, 2, 8, 4>}, {pipeline_mode = #tpu.pipeline_mode<synchronous>, transform_indices = @transform_2, window_bounds = array<i64: 9, 4, 8>}, {pipeline_mode = #tpu.pipeline_mode<synchronous>, transform_indices = @transform_3, window_bounds = array<i64: 1, 8>}, {transform_indices = @transform_4, window_bounds = array<i64: 1, 8, 8, 8>}, {transform_indices = @transform_5, window_bounds = array<i64: 1, 1, 2, 8>}]} {
    %c0 = arith.constant 0 : index
    %c0_0 = arith.constant 0 : index
    %c0_1 = arith.constant 0 : index
    %c0_2 = arith.constant 0 : index
    %c0_3 = arith.constant 0 : index
    %0 = vector.load %arg2[%c0, %c0_0, %c0_1, %c0_2, %c0_3] : memref<1x8x2x8x8xbf16, #tpu.memory_space<vmem>>, vector<1x8x2x8x8xbf16>
    %1 = vector.shape_cast %0 : vector<1x8x2x8x8xbf16> to vector<8x2x8x8xbf16>
    %2 = vector.extract_strided_slice %1 {offsets = [0, 0, 0, 0], sizes = [8, 1, 8, 8], strides = [1, 1, 1, 1]} : vector<8x2x8x8xbf16> to vector<8x1x8x8xbf16>
    %3 = vector.shape_cast %2 : vector<8x1x8x8xbf16> to vector<8x8x8xbf16>
    %4 = vector.extract_strided_slice %1 {offsets = [0, 1, 0, 0], sizes = [8, 1, 8, 8], strides = [1, 1, 1, 1]} : vector<8x2x8x8xbf16> to vector<8x1x8x8xbf16>
    %5 = vector.shape_cast %4 : vector<8x1x8x8xbf16> to vector<8x8x8xbf16>
    %6 = arith.maximumf %3, %5 : vector<8x8x8xbf16>
    %7 = vector.extract_strided_slice %6 {offsets = [0, 0, 0], sizes = [8, 8, 4], strides = [1, 1, 1]} : vector<8x8x8xbf16> to vector<8x8x4xbf16>
    %8 = vector.extract_strided_slice %6 {offsets = [0, 0, 4], sizes = [8, 8, 4], strides = [1, 1, 1]} : vector<8x8x8xbf16> to vector<8x8x4xbf16>
    %9 = arith.maximumf %7, %8 : vector<8x8x4xbf16>
    %cst = arith.constant 0.000000e+00 : bf16
    %10 = vector.broadcast %cst : bf16 to vector<10x1x4xbf16>
    %c0_4 = arith.constant 0 : index
    %c0_5 = arith.constant 0 : index
    %c0_6 = arith.constant 0 : index
    %11 = vector.load %arg8[%c0_4, %c0_5, %c0_6] : memref<10x10x4xbf16, #tpu.memory_space<vmem>>, vector<10x1x4xbf16>
    tpu.vector_store %arg8[%c0_4, %c0_5, %c0_6], %10 {strides = array<i32>} : memref<10x10x4xbf16, #tpu.memory_space<vmem>>, vector<10x1x4xbf16>,
    %c0_7 = arith.constant 0 : index
    %c9 = arith.constant 9 : index
    %c0_8 = arith.constant 0 : index
    %12 = vector.load %arg8[%c0_7, %c9, %c0_8] : memref<10x10x4xbf16, #tpu.memory_space<vmem>>, vector<10x1x4xbf16>
    tpu.vector_store %arg8[%c0_7, %c9, %c0_8], %10 {strides = array<i32>} : memref<10x10x4xbf16, #tpu.memory_space<vmem>>, vector<10x1x4xbf16>,
    %c0_9 = arith.constant 0 : index
    %c0_10 = arith.constant 0 : index
    %c0_11 = arith.constant 0 : index
    %c0_12 = arith.constant 0 : index
    %c0_13 = arith.constant 0 : index
    %13 = vector.load %arg3[%c0_9, %c0_10, %c0_11, %c0_12, %c0_13] : memref<1x1x2x8x4xbf16, #tpu.memory_space<vmem>>, vector<1x1x2x8x4xbf16>
    %14 = vector.shape_cast %13 : vector<1x1x2x8x4xbf16> to vector<2x8x4xbf16>
    %15 = vector.extract_strided_slice %14 {offsets = [0, 0, 0], sizes = [1, 8, 4], strides = [1, 1, 1]} : vector<2x8x4xbf16> to vector<1x8x4xbf16>
    %c0_14 = arith.constant 0 : index
    %c1 = arith.constant 1 : index
    %c0_15 = arith.constant 0 : index
    %16 = vector.load %arg8[%c0_14, %c1, %c0_15] : memref<10x10x4xbf16, #tpu.memory_space<vmem>>, vector<1x8x4xbf16>
    tpu.vector_store %arg8[%c0_14, %c1, %c0_15], %15 {strides = array<i32>} : memref<10x10x4xbf16, #tpu.memory_space<vmem>>, vector<1x8x4xbf16>,
    %17 = vector.extract_strided_slice %14 {offsets = [1, 0, 0], sizes = [1, 8, 4], strides = [1, 1, 1]} : vector<2x8x4xbf16> to vector<1x8x4xbf16>
    %c9_16 = arith.constant 9 : index
    %c1_17 = arith.constant 1 : index
    %c0_18 = arith.constant 0 : index
    %18 = vector.load %arg8[%c9_16, %c1_17, %c0_18] : memref<10x10x4xbf16, #tpu.memory_space<vmem>>, vector<1x8x4xbf16>
    tpu.vector_store %arg8[%c9_16, %c1_17, %c0_18], %17 {strides = array<i32>} : memref<10x10x4xbf16, #tpu.memory_space<vmem>>, vector<1x8x4xbf16>,
    %c1_19 = arith.constant 1 : index
    %c1_20 = arith.constant 1 : index
    %c0_21 = arith.constant 0 : index
    %19 = vector.load %arg8[%c1_19, %c1_20, %c0_21] : memref<10x10x4xbf16, #tpu.memory_space<vmem>>, vector<8x8x4xbf16>
    tpu.vector_store %arg8[%c1_19, %c1_20, %c0_21], %9 {strides = array<i32>} : memref<10x10x4xbf16, #tpu.memory_space<vmem>>, vector<8x8x4xbf16>,
    %c0_22 = arith.constant 0 : index
    %c0_23 = arith.constant 0 : index
    %c0_24 = arith.constant 0 : index
    %20 = vector.load %arg8[%c0_22, %c0_23, %c0_24] : memref<10x10x4xbf16, #tpu.memory_space<vmem>>, vector<8x8x4xbf16>
    %21 = vector.shape_cast %20 : vector<8x8x4xbf16> to vector<64x4xbf16>
    %c0_25 = arith.constant 0 : index
    %c0_26 = arith.constant 0 : index
    %c0_27 = arith.constant 0 : index
    %22 = vector.load %arg4[%c0_25, %c0_26, %c0_27] : memref<9x4x8xbf16, #tpu.memory_space<vmem>>, vector<1x4x8xbf16>
    %23 = vector.shape_cast %22 : vector<1x4x8xbf16> to vector<4x8xbf16>
    %cst_28 = arith.constant dense<0.000000e+00> : vector<64x8xf32>
    %24 = tpu.matmul %21, %23, %cst_28 {dimension_numbers = #tpu.dot_dimension_numbers<[1], [0], [0], [1], [0, 0, 1, 1], [], []>} : vector<64x4xbf16>, vector<4x8xbf16>, vector<64x8xf32> -> vector<64x8xf32>
    %c0_29 = arith.constant 0 : index
    %c0_30 = arith.constant 0 : index
    %25 = vector.load %arg9[%c0_29, %c0_30] : memref<64x8xf32, #tpu.memory_space<vmem>>, vector<64x8xf32>
    tpu.vector_store %arg9[%c0_29, %c0_30], %24 {strides = array<i32>} : memref<64x8xf32, #tpu.memory_space<vmem>>, vector<64x8xf32>,
    %c0_31 = arith.constant 0 : index
    %c1_32 = arith.constant 1 : index
    %c0_33 = arith.constant 0 : index
    %26 = vector.load %arg8[%c0_31, %c1_32, %c0_33] : memref<10x10x4xbf16, #tpu.memory_space<vmem>>, vector<8x8x4xbf16>
    %27 = vector.shape_cast %26 : vector<8x8x4xbf16> to vector<64x4xbf16>
    %c1_34 = arith.constant 1 : index
    %c0_35 = arith.constant 0 : index
    %c0_36 = arith.constant 0 : index
    %28 = vector.load %arg4[%c1_34, %c0_35, %c0_36] : memref<9x4x8xbf16, #tpu.memory_space<vmem>>, vector<1x4x8xbf16>
    %29 = vector.shape_cast %28 : vector<1x4x8xbf16> to vector<4x8xbf16>
    %cst_37 = arith.constant dense<0.000000e+00> : vector<64x8xf32>
    %30 = tpu.matmul %27, %29, %cst_37 {dimension_numbers = #tpu.dot_dimension_numbers<[1], [0], [0], [1], [0, 0, 1, 1], [], []>} : vector<64x4xbf16>, vector<4x8xbf16>, vector<64x8xf32> -> vector<64x8xf32>
    %c0_38 = arith.constant 0 : index
    %c0_39 = arith.constant 0 : index
    %31 = vector.load %arg9[%c0_38, %c0_39] : memref<64x8xf32, #tpu.memory_space<vmem>>, vector<64x8xf32>
    %32 = arith.addf %31, %30 : vector<64x8xf32>
    %c0_40 = arith.constant 0 : index
    %c0_41 = arith.constant 0 : index
    %33 = vector.load %arg9[%c0_40, %c0_41] : memref<64x8xf32, #tpu.memory_space<vmem>>, vector<64x8xf32>
    tpu.vector_store %arg9[%c0_40, %c0_41], %32 {strides = array<i32>} : memref<64x8xf32, #tpu.memory_space<vmem>>, vector<64x8xf32>,
    %c0_42 = arith.constant 0 : index
    %c2 = arith.constant 2 : index
    %c0_43 = arith.constant 0 : index
    %34 = vector.load %arg8[%c0_42, %c2, %c0_43] : memref<10x10x4xbf16, #tpu.memory_space<vmem>>, vector<8x8x4xbf16>
    %35 = vector.shape_cast %34 : vector<8x8x4xbf16> to vector<64x4xbf16>
    %c2_44 = arith.constant 2 : index
    %c0_45 = arith.constant 0 : index
    %c0_46 = arith.constant 0 : index
    %36 = vector.load %arg4[%c2_44, %c0_45, %c0_46] : memref<9x4x8xbf16, #tpu.memory_space<vmem>>, vector<1x4x8xbf16>
    %37 = vector.shape_cast %36 : vector<1x4x8xbf16> to vector<4x8xbf16>
    %cst_47 = arith.constant dense<0.000000e+00> : vector<64x8xf32>
    %38 = tpu.matmul %35, %37, %cst_47 {dimension_numbers = #tpu.dot_dimension_numbers<[1], [0], [0], [1], [0, 0, 1, 1], [], []>} : vector<64x4xbf16>, vector<4x8xbf16>, vector<64x8xf32> -> vector<64x8xf32>
    %c0_48 = arith.constant 0 : index
    %c0_49 = arith.constant 0 : index
    %39 = vector.load %arg9[%c0_48, %c0_49] : memref<64x8xf32, #tpu.memory_space<vmem>>, vector<64x8xf32>
    %40 = arith.addf %39, %38 : vector<64x8xf32>
    %c0_50 = arith.constant 0 : index
    %c0_51 = arith.constant 0 : index
    %41 = vector.load %arg9[%c0_50, %c0_51] : memref<64x8xf32, #tpu.memory_space<vmem>>, vector<64x8xf32>
    tpu.vector_store %arg9[%c0_50, %c0_51], %40 {strides = array<i32>} : memref<64x8xf32, #tpu.memory_space<vmem>>, vector<64x8xf32>,
    %c1_52 = arith.constant 1 : index
    %c0_53 = arith.constant 0 : index
    %c0_54 = arith.constant 0 : index
    %42 = vector.load %arg8[%c1_52, %c0_53, %c0_54] : memref<10x10x4xbf16, #tpu.memory_space<vmem>>, vector<8x8x4xbf16>
    %43 = vector.shape_cast %42 : vector<8x8x4xbf16> to vector<64x4xbf16>
    %c3 = arith.constant 3 : index
    %c0_55 = arith.constant 0 : index
    %c0_56 = arith.constant 0 : index
    %44 = vector.load %arg4[%c3, %c0_55, %c0_56] : memref<9x4x8xbf16, #tpu.memory_space<vmem>>, vector<1x4x8xbf16>
    %45 = vector.shape_cast %44 : vector<1x4x8xbf16> to vector<4x8xbf16>
    %cst_57 = arith.constant dense<0.000000e+00> : vector<64x8xf32>
    %46 = tpu.matmul %43, %45, %cst_57 {dimension_numbers = #tpu.dot_dimension_numbers<[1], [0], [0], [1], [0, 0, 1, 1], [], []>} : vector<64x4xbf16>, vector<4x8xbf16>, vector<64x8xf32> -> vector<64x8xf32>
    %c0_58 = arith.constant 0 : index
    %c0_59 = arith.constant 0 : index
    %47 = vector.load %arg9[%c0_58, %c0_59] : memref<64x8xf32, #tpu.memory_space<vmem>>, vector<64x8xf32>
    %48 = arith.addf %47, %46 : vector<64x8xf32>
    %c0_60 = arith.constant 0 : index
    %c0_61 = arith.constant 0 : index
    %49 = vector.load %arg9[%c0_60, %c0_61] : memref<64x8xf32, #tpu.memory_space<vmem>>, vector<64x8xf32>
    tpu.vector_store %arg9[%c0_60, %c0_61], %48 {strides = array<i32>} : memref<64x8xf32, #tpu.memory_space<vmem>>, vector<64x8xf32>,
    %c1_62 = arith.constant 1 : index
    %c1_63 = arith.constant 1 : index
    %c0_64 = arith.constant 0 : index
    %50 = vector.load %arg8[%c1_62, %c1_63, %c0_64] : memref<10x10x4xbf16, #tpu.memory_space<vmem>>, vector<8x8x4xbf16>
    %51 = vector.shape_cast %50 : vector<8x8x4xbf16> to vector<64x4xbf16>
    %c4 = arith.constant 4 : index
    %c0_65 = arith.constant 0 : index
    %c0_66 = arith.constant 0 : index
    %52 = vector.load %arg4[%c4, %c0_65, %c0_66] : memref<9x4x8xbf16, #tpu.memory_space<vmem>>, vector<1x4x8xbf16>
    %53 = vector.shape_cast %52 : vector<1x4x8xbf16> to vector<4x8xbf16>
    %cst_67 = arith.constant dense<0.000000e+00> : vector<64x8xf32>
    %54 = tpu.matmul %51, %53, %cst_67 {dimension_numbers = #tpu.dot_dimension_numbers<[1], [0], [0], [1], [0, 0, 1, 1], [], []>} : vector<64x4xbf16>, vector<4x8xbf16>, vector<64x8xf32> -> vector<64x8xf32>
    %c0_68 = arith.constant 0 : index
    %c0_69 = arith.constant 0 : index
    %55 = vector.load %arg9[%c0_68, %c0_69] : memref<64x8xf32, #tpu.memory_space<vmem>>, vector<64x8xf32>
    %56 = arith.addf %55, %54 : vector<64x8xf32>
    %c0_70 = arith.constant 0 : index
    %c0_71 = arith.constant 0 : index
    %57 = vector.load %arg9[%c0_70, %c0_71] : memref<64x8xf32, #tpu.memory_space<vmem>>, vector<64x8xf32>
    tpu.vector_store %arg9[%c0_70, %c0_71], %56 {strides = array<i32>} : memref<64x8xf32, #tpu.memory_space<vmem>>, vector<64x8xf32>,
    %c1_72 = arith.constant 1 : index
    %c2_73 = arith.constant 2 : index
    %c0_74 = arith.constant 0 : index
    %58 = vector.load %arg8[%c1_72, %c2_73, %c0_74] : memref<10x10x4xbf16, #tpu.memory_space<vmem>>, vector<8x8x4xbf16>
    %59 = vector.shape_cast %58 : vector<8x8x4xbf16> to vector<64x4xbf16>
    %c5 = arith.constant 5 : index
    %c0_75 = arith.constant 0 : index
    %c0_76 = arith.constant 0 : index
    %60 = vector.load %arg4[%c5, %c0_75, %c0_76] : memref<9x4x8xbf16, #tpu.memory_space<vmem>>, vector<1x4x8xbf16>
    %61 = vector.shape_cast %60 : vector<1x4x8xbf16> to vector<4x8xbf16>
    %cst_77 = arith.constant dense<0.000000e+00> : vector<64x8xf32>
    %62 = tpu.matmul %59, %61, %cst_77 {dimension_numbers = #tpu.dot_dimension_numbers<[1], [0], [0], [1], [0, 0, 1, 1], [], []>} : vector<64x4xbf16>, vector<4x8xbf16>, vector<64x8xf32> -> vector<64x8xf32>
    %c0_78 = arith.constant 0 : index
    %c0_79 = arith.constant 0 : index
    %63 = vector.load %arg9[%c0_78, %c0_79] : memref<64x8xf32, #tpu.memory_space<vmem>>, vector<64x8xf32>
    %64 = arith.addf %63, %62 : vector<64x8xf32>
    %c0_80 = arith.constant 0 : index
    %c0_81 = arith.constant 0 : index
    %65 = vector.load %arg9[%c0_80, %c0_81] : memref<64x8xf32, #tpu.memory_space<vmem>>, vector<64x8xf32>
    tpu.vector_store %arg9[%c0_80, %c0_81], %64 {strides = array<i32>} : memref<64x8xf32, #tpu.memory_space<vmem>>, vector<64x8xf32>,
    %c2_82 = arith.constant 2 : index
    %c0_83 = arith.constant 0 : index
    %c0_84 = arith.constant 0 : index
    %66 = vector.load %arg8[%c2_82, %c0_83, %c0_84] : memref<10x10x4xbf16, #tpu.memory_space<vmem>>, vector<8x8x4xbf16>
    %67 = vector.shape_cast %66 : vector<8x8x4xbf16> to vector<64x4xbf16>
    %c6 = arith.constant 6 : index
    %c0_85 = arith.constant 0 : index
    %c0_86 = arith.constant 0 : index
    %68 = vector.load %arg4[%c6, %c0_85, %c0_86] : memref<9x4x8xbf16, #tpu.memory_space<vmem>>, vector<1x4x8xbf16>
    %69 = vector.shape_cast %68 : vector<1x4x8xbf16> to vector<4x8xbf16>
    %cst_87 = arith.constant dense<0.000000e+00> : vector<64x8xf32>
    %70 = tpu.matmul %67, %69, %cst_87 {dimension_numbers = #tpu.dot_dimension_numbers<[1], [0], [0], [1], [0, 0, 1, 1], [], []>} : vector<64x4xbf16>, vector<4x8xbf16>, vector<64x8xf32> -> vector<64x8xf32>
    %c0_88 = arith.constant 0 : index
    %c0_89 = arith.constant 0 : index
    %71 = vector.load %arg9[%c0_88, %c0_89] : memref<64x8xf32, #tpu.memory_space<vmem>>, vector<64x8xf32>
    %72 = arith.addf %71, %70 : vector<64x8xf32>
    %c0_90 = arith.constant 0 : index
    %c0_91 = arith.constant 0 : index
    %73 = vector.load %arg9[%c0_90, %c0_91] : memref<64x8xf32, #tpu.memory_space<vmem>>, vector<64x8xf32>
    tpu.vector_store %arg9[%c0_90, %c0_91], %72 {strides = array<i32>} : memref<64x8xf32, #tpu.memory_space<vmem>>, vector<64x8xf32>,
    %c2_92 = arith.constant 2 : index
    %c1_93 = arith.constant 1 : index
    %c0_94 = arith.constant 0 : index
    %74 = vector.load %arg8[%c2_92, %c1_93, %c0_94] : memref<10x10x4xbf16, #tpu.memory_space<vmem>>, vector<8x8x4xbf16>
    %75 = vector.shape_cast %74 : vector<8x8x4xbf16> to vector<64x4xbf16>
    %c7 = arith.constant 7 : index
    %c0_95 = arith.constant 0 : index
    %c0_96 = arith.constant 0 : index
    %76 = vector.load %arg4[%c7, %c0_95, %c0_96] : memref<9x4x8xbf16, #tpu.memory_space<vmem>>, vector<1x4x8xbf16>
    %77 = vector.shape_cast %76 : vector<1x4x8xbf16> to vector<4x8xbf16>
    %cst_97 = arith.constant dense<0.000000e+00> : vector<64x8xf32>
    %78 = tpu.matmul %75, %77, %cst_97 {dimension_numbers = #tpu.dot_dimension_numbers<[1], [0], [0], [1], [0, 0, 1, 1], [], []>} : vector<64x4xbf16>, vector<4x8xbf16>, vector<64x8xf32> -> vector<64x8xf32>
    %c0_98 = arith.constant 0 : index
    %c0_99 = arith.constant 0 : index
    %79 = vector.load %arg9[%c0_98, %c0_99] : memref<64x8xf32, #tpu.memory_space<vmem>>, vector<64x8xf32>
    %80 = arith.addf %79, %78 : vector<64x8xf32>
    %c0_100 = arith.constant 0 : index
    %c0_101 = arith.constant 0 : index
    %81 = vector.load %arg9[%c0_100, %c0_101] : memref<64x8xf32, #tpu.memory_space<vmem>>, vector<64x8xf32>
    tpu.vector_store %arg9[%c0_100, %c0_101], %80 {strides = array<i32>} : memref<64x8xf32, #tpu.memory_space<vmem>>, vector<64x8xf32>,
    %c2_102 = arith.constant 2 : index
    %c2_103 = arith.constant 2 : index
    %c0_104 = arith.constant 0 : index
    %82 = vector.load %arg8[%c2_102, %c2_103, %c0_104] : memref<10x10x4xbf16, #tpu.memory_space<vmem>>, vector<8x8x4xbf16>
    %83 = vector.shape_cast %82 : vector<8x8x4xbf16> to vector<64x4xbf16>
    %c8 = arith.constant 8 : index
    %c0_105 = arith.constant 0 : index
    %c0_106 = arith.constant 0 : index
    %84 = vector.load %arg4[%c8, %c0_105, %c0_106] : memref<9x4x8xbf16, #tpu.memory_space<vmem>>, vector<1x4x8xbf16>
    %85 = vector.shape_cast %84 : vector<1x4x8xbf16> to vector<4x8xbf16>
    %cst_107 = arith.constant dense<0.000000e+00> : vector<64x8xf32>
    %86 = tpu.matmul %83, %85, %cst_107 {dimension_numbers = #tpu.dot_dimension_numbers<[1], [0], [0], [1], [0, 0, 1, 1], [], []>} : vector<64x4xbf16>, vector<4x8xbf16>, vector<64x8xf32> -> vector<64x8xf32>
    %c0_108 = arith.constant 0 : index
    %c0_109 = arith.constant 0 : index
    %87 = vector.load %arg9[%c0_108, %c0_109] : memref<64x8xf32, #tpu.memory_space<vmem>>, vector<64x8xf32>
    %88 = arith.addf %87, %86 : vector<64x8xf32>
    %c0_110 = arith.constant 0 : index
    %c0_111 = arith.constant 0 : index
    %89 = vector.load %arg9[%c0_110, %c0_111] : memref<64x8xf32, #tpu.memory_space<vmem>>, vector<64x8xf32>
    tpu.vector_store %arg9[%c0_110, %c0_111], %88 {strides = array<i32>} : memref<64x8xf32, #tpu.memory_space<vmem>>, vector<64x8xf32>,
    %c0_112 = arith.constant 0 : index
    %c0_113 = arith.constant 0 : index
    %90 = vector.load %arg9[%c0_112, %c0_113] : memref<64x8xf32, #tpu.memory_space<vmem>>, vector<64x8xf32>
    %c0_114 = arith.constant 0 : index
    %c0_115 = arith.constant 0 : index
    %91 = vector.load %arg5[%c0_114, %c0_115] : memref<1x8xf32, #tpu.memory_space<vmem>>, vector<1x8xf32>
    %92 = vector.broadcast %91 : vector<1x8xf32> to vector<64x8xf32>
    %93 = arith.addf %90, %92 : vector<64x8xf32>
    %cst_116 = arith.constant dense<0.000000e+00> : vector<8xf32>
    %94 = vector.multi_reduction <add>, %93, %cst_116 [0] : vector<64x8xf32> to vector<8xf32>
    %95 = vector.shape_cast %94 : vector<8xf32> to vector<1x8xf32>
    %cst_117 = arith.constant 1.562500e-02 : f32
    %96 = vector.broadcast %cst_117 : f32 to vector<1x8xf32>
    %97 = arith.mulf %95, %96 : vector<1x8xf32>
    %98 = vector.broadcast %97 : vector<1x8xf32> to vector<64x8xf32>
    %99 = arith.subf %93, %98 : vector<64x8xf32>
    %100 = arith.mulf %99, %99 : vector<64x8xf32>
    %cst_118 = arith.constant dense<0.000000e+00> : vector<8xf32>
    %101 = vector.multi_reduction <add>, %100, %cst_118 [0] : vector<64x8xf32> to vector<8xf32>
    %102 = vector.shape_cast %101 : vector<8xf32> to vector<1x8xf32>
    %103 = vector.shape_cast %95 : vector<1x8xf32> to vector<1x1x8xf32>
    %c0_119 = arith.constant 0 : index
    %c0_120 = arith.constant 0 : index
    %c0_121 = arith.constant 0 : index
    %c0_122 = arith.constant 0 : index
    %104 = vector.load %arg7[%c0_119, %c0_120, %c0_121, %c0_122] : memref<1x1x2x8xf32, #tpu.memory_space<vmem>>, vector<1x1x1x8xf32>
    %105 = vector.shape_cast %104 : vector<1x1x1x8xf32> to vector<1x1x8xf32>
    %106 = vector.shape_cast %103 : vector<1x1x8xf32> to vector<1x1x1x8xf32>
    tpu.vector_store %arg7[%c0_119, %c0_120, %c0_121, %c0_122], %106 {strides = array<i32>} : memref<1x1x2x8xf32, #tpu.memory_space<vmem>>, vector<1x1x1x8xf32>,
    %107 = vector.shape_cast %102 : vector<1x8xf32> to vector<1x1x8xf32>
    %c0_123 = arith.constant 0 : index
    %c0_124 = arith.constant 0 : index
    %c1_125 = arith.constant 1 : index
    %c0_126 = arith.constant 0 : index
    %108 = vector.load %arg7[%c0_123, %c0_124, %c1_125, %c0_126] : memref<1x1x2x8xf32, #tpu.memory_space<vmem>>, vector<1x1x1x8xf32>
    %109 = vector.shape_cast %108 : vector<1x1x1x8xf32> to vector<1x1x8xf32>
    %110 = vector.shape_cast %107 : vector<1x1x8xf32> to vector<1x1x1x8xf32>
    tpu.vector_store %arg7[%c0_123, %c0_124, %c1_125, %c0_126], %110 {strides = array<i32>} : memref<1x1x2x8xf32, #tpu.memory_space<vmem>>, vector<1x1x1x8xf32>,
    %111 = vector.shape_cast %93 : vector<64x8xf32> to vector<8x8x8xf32>
    %112 = arith.truncf %111 : vector<8x8x8xf32> to vector<8x8x8xbf16>
    %c0_127 = arith.constant 0 : index
    %c0_128 = arith.constant 0 : index
    %c0_129 = arith.constant 0 : index
    %c0_130 = arith.constant 0 : index
    %113 = vector.load %arg6[%c0_127, %c0_128, %c0_129, %c0_130] : memref<1x8x8x8xbf16, #tpu.memory_space<vmem>>, vector<1x8x8x8xbf16>
    %114 = vector.shape_cast %113 : vector<1x8x8x8xbf16> to vector<8x8x8xbf16>
    %115 = vector.shape_cast %112 : vector<8x8x8xbf16> to vector<1x8x8x8xbf16>
    tpu.vector_store %arg6[%c0_127, %c0_128, %c0_129, %c0_130], %115 {strides = array<i32>} : memref<1x8x8x8xbf16, #tpu.memory_space<vmem>>, vector<1x8x8x8xbf16>,
    return
  }
  func.func @transform_0(%arg0: i32, %arg1: i32) -> (i32, i32, i32, i32, i32) {
    %c0_i32 = arith.constant 0 : i32
    %c0_i32_0 = arith.constant 0 : i32
    %c0_i32_1 = arith.constant 0 : i32
    %c0_i32_2 = arith.constant 0 : i32
    return %arg0, %arg1, %c0_i32, %c0_i32_0, %c0_i32_1 : i32, i32, i32, i32, i32
  }
  func.func @transform_1(%arg0: i32, %arg1: i32) -> (i32, i32, i32, i32, i32) {
    %c0_i32 = arith.constant 0 : i32
    %c0_i32_0 = arith.constant 0 : i32
    %c0_i32_1 = arith.constant 0 : i32
    %c0_i32_2 = arith.constant 0 : i32
    return %arg0, %arg1, %c0_i32, %c0_i32_0, %c0_i32_1 : i32, i32, i32, i32, i32
  }
  func.func @transform_2(%arg0: i32, %arg1: i32) -> (i32, i32, i32) {
    %c0_i32 = arith.constant 0 : i32
    %c0_i32_0 = arith.constant 0 : i32
    %c0_i32_1 = arith.constant 0 : i32
    %c0_i32_2 = arith.constant 0 : i32
    return %c0_i32, %c0_i32_0, %c0_i32_1 : i32, i32, i32
  }
  func.func @transform_3(%arg0: i32, %arg1: i32) -> (i32, i32) {
    %c0_i32 = arith.constant 0 : i32
    %c0_i32_0 = arith.constant 0 : i32
    %c0_i32_1 = arith.constant 0 : i32
    return %c0_i32, %c0_i32_0 : i32, i32
  }
  func.func @transform_4(%arg0: i32, %arg1: i32) -> (i32, i32, i32, i32) {
    %c0_i32 = arith.constant 0 : i32
    %c0_i32_0 = arith.constant 0 : i32
    %c0_i32_1 = arith.constant 0 : i32
    return %arg0, %arg1, %c0_i32, %c0_i32_0 : i32, i32, i32, i32
  }
  func.func @transform_5(%arg0: i32, %arg1: i32) -> (i32, i32, i32, i32) {
    %c0_i32 = arith.constant 0 : i32
    %c0_i32_0 = arith.constant 0 : i32
    %c0_i32_1 = arith.constant 0 : i32
    return %arg0, %arg1, %c0_i32, %c0_i32_0 : i32, i32, i32, i32
  }
}

module attributes {stable_mosaic.version = 11 : i64} {
  func.func @_bn1_conv2_kernel(%arg0: i32, %arg1: i32, %arg2: memref<1x8x8x8xbf16, #tpu.memory_space<vmem>>, %arg3: memref<1x1x2x8x8xbf16, #tpu.memory_space<vmem>>, %arg4: memref<1x1x8xf32, #tpu.memory_space<vmem>>, %arg5: memref<1x1x8xf32, #tpu.memory_space<vmem>>, %arg6: memref<9x8x8xbf16, #tpu.memory_space<vmem>>, %arg7: memref<1x8xf32, #tpu.memory_space<vmem>>, %arg8: memref<1x8x8x8xbf16, #tpu.memory_space<vmem>>, %arg9: memref<1x1x2x8xf32, #tpu.memory_space<vmem>>, %arg10: memref<10x10x8xbf16, #tpu.memory_space<vmem>>, %arg11: memref<64x8xf32, #tpu.memory_space<vmem>>) attributes {dimension_semantics = [#tpu.dimension_semantics<parallel>, #tpu.dimension_semantics<parallel>], iteration_bounds = array<i64: 2, 1>, scalar_prefetch = 0 : i64, scratch_operands = 2 : i64, tpu.core_type = #tpu.core_type<tc>, window_params = [{transform_indices = @transform_0, window_bounds = array<i64: 1, 8, 8, 8>}, {transform_indices = @transform_1, window_bounds = array<i64: 1, 1, 2, 8, 8>}, {pipeline_mode = #tpu.pipeline_mode<synchronous>, transform_indices = @transform_2, window_bounds = array<i64: 1, 1, 8>}, {pipeline_mode = #tpu.pipeline_mode<synchronous>, transform_indices = @transform_3, window_bounds = array<i64: 1, 1, 8>}, {pipeline_mode = #tpu.pipeline_mode<synchronous>, transform_indices = @transform_4, window_bounds = array<i64: 9, 8, 8>}, {pipeline_mode = #tpu.pipeline_mode<synchronous>, transform_indices = @transform_5, window_bounds = array<i64: 1, 8>}, {transform_indices = @transform_6, window_bounds = array<i64: 1, 8, 8, 8>}, {transform_indices = @transform_7, window_bounds = array<i64: 1, 1, 2, 8>}]} {
    %c0 = arith.constant 0 : index
    %c0_0 = arith.constant 0 : index
    %c0_1 = arith.constant 0 : index
    %c0_2 = arith.constant 0 : index
    %0 = vector.load %arg2[%c0, %c0_0, %c0_1, %c0_2] : memref<1x8x8x8xbf16, #tpu.memory_space<vmem>>, vector<1x8x8x8xbf16>
    %1 = vector.shape_cast %0 : vector<1x8x8x8xbf16> to vector<8x8x8xbf16>
    %2 = arith.extf %1 : vector<8x8x8xbf16> to vector<8x8x8xf32>
    %c0_3 = arith.constant 0 : index
    %c0_4 = arith.constant 0 : index
    %c0_5 = arith.constant 0 : index
    %3 = vector.load %arg4[%c0_3, %c0_4, %c0_5] : memref<1x1x8xf32, #tpu.memory_space<vmem>>, vector<1x1x8xf32>
    %4 = vector.broadcast %3 : vector<1x1x8xf32> to vector<8x8x8xf32>
    %5 = arith.mulf %2, %4 : vector<8x8x8xf32>
    %c0_6 = arith.constant 0 : index
    %c0_7 = arith.constant 0 : index
    %c0_8 = arith.constant 0 : index
    %6 = vector.load %arg5[%c0_6, %c0_7, %c0_8] : memref<1x1x8xf32, #tpu.memory_space<vmem>>, vector<1x1x8xf32>
    %7 = vector.broadcast %6 : vector<1x1x8xf32> to vector<8x8x8xf32>
    %8 = arith.addf %5, %7 : vector<8x8x8xf32>
    %cst = arith.constant 0.000000e+00 : f32
    %9 = vector.broadcast %cst : f32 to vector<8x8x8xf32>
    %10 = arith.maximumf %8, %9 : vector<8x8x8xf32>
    %11 = arith.truncf %10 : vector<8x8x8xf32> to vector<8x8x8xbf16>
    %cst_9 = arith.constant 0.000000e+00 : bf16
    %12 = vector.broadcast %cst_9 : bf16 to vector<10x1x8xbf16>
    %c0_10 = arith.constant 0 : index
    %c0_11 = arith.constant 0 : index
    %c0_12 = arith.constant 0 : index
    %13 = vector.load %arg10[%c0_10, %c0_11, %c0_12] : memref<10x10x8xbf16, #tpu.memory_space<vmem>>, vector<10x1x8xbf16>
    tpu.vector_store %arg10[%c0_10, %c0_11, %c0_12], %12 {strides = array<i32>} : memref<10x10x8xbf16, #tpu.memory_space<vmem>>, vector<10x1x8xbf16>,
    %c0_13 = arith.constant 0 : index
    %c9 = arith.constant 9 : index
    %c0_14 = arith.constant 0 : index
    %14 = vector.load %arg10[%c0_13, %c9, %c0_14] : memref<10x10x8xbf16, #tpu.memory_space<vmem>>, vector<10x1x8xbf16>
    tpu.vector_store %arg10[%c0_13, %c9, %c0_14], %12 {strides = array<i32>} : memref<10x10x8xbf16, #tpu.memory_space<vmem>>, vector<10x1x8xbf16>,
    %c0_15 = arith.constant 0 : index
    %c0_16 = arith.constant 0 : index
    %c0_17 = arith.constant 0 : index
    %c0_18 = arith.constant 0 : index
    %c0_19 = arith.constant 0 : index
    %15 = vector.load %arg3[%c0_15, %c0_16, %c0_17, %c0_18, %c0_19] : memref<1x1x2x8x8xbf16, #tpu.memory_space<vmem>>, vector<1x1x2x8x8xbf16>
    %16 = vector.shape_cast %15 : vector<1x1x2x8x8xbf16> to vector<2x8x8xbf16>
    %17 = vector.extract_strided_slice %16 {offsets = [0, 0, 0], sizes = [1, 8, 8], strides = [1, 1, 1]} : vector<2x8x8xbf16> to vector<1x8x8xbf16>
    %c0_20 = arith.constant 0 : index
    %c1 = arith.constant 1 : index
    %c0_21 = arith.constant 0 : index
    %18 = vector.load %arg10[%c0_20, %c1, %c0_21] : memref<10x10x8xbf16, #tpu.memory_space<vmem>>, vector<1x8x8xbf16>
    tpu.vector_store %arg10[%c0_20, %c1, %c0_21], %17 {strides = array<i32>} : memref<10x10x8xbf16, #tpu.memory_space<vmem>>, vector<1x8x8xbf16>,
    %19 = vector.extract_strided_slice %16 {offsets = [1, 0, 0], sizes = [1, 8, 8], strides = [1, 1, 1]} : vector<2x8x8xbf16> to vector<1x8x8xbf16>
    %c9_22 = arith.constant 9 : index
    %c1_23 = arith.constant 1 : index
    %c0_24 = arith.constant 0 : index
    %20 = vector.load %arg10[%c9_22, %c1_23, %c0_24] : memref<10x10x8xbf16, #tpu.memory_space<vmem>>, vector<1x8x8xbf16>
    tpu.vector_store %arg10[%c9_22, %c1_23, %c0_24], %19 {strides = array<i32>} : memref<10x10x8xbf16, #tpu.memory_space<vmem>>, vector<1x8x8xbf16>,
    %c1_25 = arith.constant 1 : index
    %c1_26 = arith.constant 1 : index
    %c0_27 = arith.constant 0 : index
    %21 = vector.load %arg10[%c1_25, %c1_26, %c0_27] : memref<10x10x8xbf16, #tpu.memory_space<vmem>>, vector<8x8x8xbf16>
    tpu.vector_store %arg10[%c1_25, %c1_26, %c0_27], %11 {strides = array<i32>} : memref<10x10x8xbf16, #tpu.memory_space<vmem>>, vector<8x8x8xbf16>,
    %c0_28 = arith.constant 0 : index
    %c0_29 = arith.constant 0 : index
    %c0_30 = arith.constant 0 : index
    %22 = vector.load %arg10[%c0_28, %c0_29, %c0_30] : memref<10x10x8xbf16, #tpu.memory_space<vmem>>, vector<8x8x8xbf16>
    %23 = vector.shape_cast %22 : vector<8x8x8xbf16> to vector<64x8xbf16>
    %c0_31 = arith.constant 0 : index
    %c0_32 = arith.constant 0 : index
    %c0_33 = arith.constant 0 : index
    %24 = vector.load %arg6[%c0_31, %c0_32, %c0_33] : memref<9x8x8xbf16, #tpu.memory_space<vmem>>, vector<1x8x8xbf16>
    %25 = vector.shape_cast %24 : vector<1x8x8xbf16> to vector<8x8xbf16>
    %cst_34 = arith.constant dense<0.000000e+00> : vector<64x8xf32>
    %26 = tpu.matmul %23, %25, %cst_34 {dimension_numbers = #tpu.dot_dimension_numbers<[1], [0], [0], [1], [0, 0, 1, 1], [], []>} : vector<64x8xbf16>, vector<8x8xbf16>, vector<64x8xf32> -> vector<64x8xf32>
    %c0_35 = arith.constant 0 : index
    %c0_36 = arith.constant 0 : index
    %27 = vector.load %arg11[%c0_35, %c0_36] : memref<64x8xf32, #tpu.memory_space<vmem>>, vector<64x8xf32>
    tpu.vector_store %arg11[%c0_35, %c0_36], %26 {strides = array<i32>} : memref<64x8xf32, #tpu.memory_space<vmem>>, vector<64x8xf32>,
    %c0_37 = arith.constant 0 : index
    %c1_38 = arith.constant 1 : index
    %c0_39 = arith.constant 0 : index
    %28 = vector.load %arg10[%c0_37, %c1_38, %c0_39] : memref<10x10x8xbf16, #tpu.memory_space<vmem>>, vector<8x8x8xbf16>
    %29 = vector.shape_cast %28 : vector<8x8x8xbf16> to vector<64x8xbf16>
    %c1_40 = arith.constant 1 : index
    %c0_41 = arith.constant 0 : index
    %c0_42 = arith.constant 0 : index
    %30 = vector.load %arg6[%c1_40, %c0_41, %c0_42] : memref<9x8x8xbf16, #tpu.memory_space<vmem>>, vector<1x8x8xbf16>
    %31 = vector.shape_cast %30 : vector<1x8x8xbf16> to vector<8x8xbf16>
    %cst_43 = arith.constant dense<0.000000e+00> : vector<64x8xf32>
    %32 = tpu.matmul %29, %31, %cst_43 {dimension_numbers = #tpu.dot_dimension_numbers<[1], [0], [0], [1], [0, 0, 1, 1], [], []>} : vector<64x8xbf16>, vector<8x8xbf16>, vector<64x8xf32> -> vector<64x8xf32>
    %c0_44 = arith.constant 0 : index
    %c0_45 = arith.constant 0 : index
    %33 = vector.load %arg11[%c0_44, %c0_45] : memref<64x8xf32, #tpu.memory_space<vmem>>, vector<64x8xf32>
    %34 = arith.addf %33, %32 : vector<64x8xf32>
    %c0_46 = arith.constant 0 : index
    %c0_47 = arith.constant 0 : index
    %35 = vector.load %arg11[%c0_46, %c0_47] : memref<64x8xf32, #tpu.memory_space<vmem>>, vector<64x8xf32>
    tpu.vector_store %arg11[%c0_46, %c0_47], %34 {strides = array<i32>} : memref<64x8xf32, #tpu.memory_space<vmem>>, vector<64x8xf32>,
    %c0_48 = arith.constant 0 : index
    %c2 = arith.constant 2 : index
    %c0_49 = arith.constant 0 : index
    %36 = vector.load %arg10[%c0_48, %c2, %c0_49] : memref<10x10x8xbf16, #tpu.memory_space<vmem>>, vector<8x8x8xbf16>
    %37 = vector.shape_cast %36 : vector<8x8x8xbf16> to vector<64x8xbf16>
    %c2_50 = arith.constant 2 : index
    %c0_51 = arith.constant 0 : index
    %c0_52 = arith.constant 0 : index
    %38 = vector.load %arg6[%c2_50, %c0_51, %c0_52] : memref<9x8x8xbf16, #tpu.memory_space<vmem>>, vector<1x8x8xbf16>
    %39 = vector.shape_cast %38 : vector<1x8x8xbf16> to vector<8x8xbf16>
    %cst_53 = arith.constant dense<0.000000e+00> : vector<64x8xf32>
    %40 = tpu.matmul %37, %39, %cst_53 {dimension_numbers = #tpu.dot_dimension_numbers<[1], [0], [0], [1], [0, 0, 1, 1], [], []>} : vector<64x8xbf16>, vector<8x8xbf16>, vector<64x8xf32> -> vector<64x8xf32>
    %c0_54 = arith.constant 0 : index
    %c0_55 = arith.constant 0 : index
    %41 = vector.load %arg11[%c0_54, %c0_55] : memref<64x8xf32, #tpu.memory_space<vmem>>, vector<64x8xf32>
    %42 = arith.addf %41, %40 : vector<64x8xf32>
    %c0_56 = arith.constant 0 : index
    %c0_57 = arith.constant 0 : index
    %43 = vector.load %arg11[%c0_56, %c0_57] : memref<64x8xf32, #tpu.memory_space<vmem>>, vector<64x8xf32>
    tpu.vector_store %arg11[%c0_56, %c0_57], %42 {strides = array<i32>} : memref<64x8xf32, #tpu.memory_space<vmem>>, vector<64x8xf32>,
    %c1_58 = arith.constant 1 : index
    %c0_59 = arith.constant 0 : index
    %c0_60 = arith.constant 0 : index
    %44 = vector.load %arg10[%c1_58, %c0_59, %c0_60] : memref<10x10x8xbf16, #tpu.memory_space<vmem>>, vector<8x8x8xbf16>
    %45 = vector.shape_cast %44 : vector<8x8x8xbf16> to vector<64x8xbf16>
    %c3 = arith.constant 3 : index
    %c0_61 = arith.constant 0 : index
    %c0_62 = arith.constant 0 : index
    %46 = vector.load %arg6[%c3, %c0_61, %c0_62] : memref<9x8x8xbf16, #tpu.memory_space<vmem>>, vector<1x8x8xbf16>
    %47 = vector.shape_cast %46 : vector<1x8x8xbf16> to vector<8x8xbf16>
    %cst_63 = arith.constant dense<0.000000e+00> : vector<64x8xf32>
    %48 = tpu.matmul %45, %47, %cst_63 {dimension_numbers = #tpu.dot_dimension_numbers<[1], [0], [0], [1], [0, 0, 1, 1], [], []>} : vector<64x8xbf16>, vector<8x8xbf16>, vector<64x8xf32> -> vector<64x8xf32>
    %c0_64 = arith.constant 0 : index
    %c0_65 = arith.constant 0 : index
    %49 = vector.load %arg11[%c0_64, %c0_65] : memref<64x8xf32, #tpu.memory_space<vmem>>, vector<64x8xf32>
    %50 = arith.addf %49, %48 : vector<64x8xf32>
    %c0_66 = arith.constant 0 : index
    %c0_67 = arith.constant 0 : index
    %51 = vector.load %arg11[%c0_66, %c0_67] : memref<64x8xf32, #tpu.memory_space<vmem>>, vector<64x8xf32>
    tpu.vector_store %arg11[%c0_66, %c0_67], %50 {strides = array<i32>} : memref<64x8xf32, #tpu.memory_space<vmem>>, vector<64x8xf32>,
    %c1_68 = arith.constant 1 : index
    %c1_69 = arith.constant 1 : index
    %c0_70 = arith.constant 0 : index
    %52 = vector.load %arg10[%c1_68, %c1_69, %c0_70] : memref<10x10x8xbf16, #tpu.memory_space<vmem>>, vector<8x8x8xbf16>
    %53 = vector.shape_cast %52 : vector<8x8x8xbf16> to vector<64x8xbf16>
    %c4 = arith.constant 4 : index
    %c0_71 = arith.constant 0 : index
    %c0_72 = arith.constant 0 : index
    %54 = vector.load %arg6[%c4, %c0_71, %c0_72] : memref<9x8x8xbf16, #tpu.memory_space<vmem>>, vector<1x8x8xbf16>
    %55 = vector.shape_cast %54 : vector<1x8x8xbf16> to vector<8x8xbf16>
    %cst_73 = arith.constant dense<0.000000e+00> : vector<64x8xf32>
    %56 = tpu.matmul %53, %55, %cst_73 {dimension_numbers = #tpu.dot_dimension_numbers<[1], [0], [0], [1], [0, 0, 1, 1], [], []>} : vector<64x8xbf16>, vector<8x8xbf16>, vector<64x8xf32> -> vector<64x8xf32>
    %c0_74 = arith.constant 0 : index
    %c0_75 = arith.constant 0 : index
    %57 = vector.load %arg11[%c0_74, %c0_75] : memref<64x8xf32, #tpu.memory_space<vmem>>, vector<64x8xf32>
    %58 = arith.addf %57, %56 : vector<64x8xf32>
    %c0_76 = arith.constant 0 : index
    %c0_77 = arith.constant 0 : index
    %59 = vector.load %arg11[%c0_76, %c0_77] : memref<64x8xf32, #tpu.memory_space<vmem>>, vector<64x8xf32>
    tpu.vector_store %arg11[%c0_76, %c0_77], %58 {strides = array<i32>} : memref<64x8xf32, #tpu.memory_space<vmem>>, vector<64x8xf32>,
    %c1_78 = arith.constant 1 : index
    %c2_79 = arith.constant 2 : index
    %c0_80 = arith.constant 0 : index
    %60 = vector.load %arg10[%c1_78, %c2_79, %c0_80] : memref<10x10x8xbf16, #tpu.memory_space<vmem>>, vector<8x8x8xbf16>
    %61 = vector.shape_cast %60 : vector<8x8x8xbf16> to vector<64x8xbf16>
    %c5 = arith.constant 5 : index
    %c0_81 = arith.constant 0 : index
    %c0_82 = arith.constant 0 : index
    %62 = vector.load %arg6[%c5, %c0_81, %c0_82] : memref<9x8x8xbf16, #tpu.memory_space<vmem>>, vector<1x8x8xbf16>
    %63 = vector.shape_cast %62 : vector<1x8x8xbf16> to vector<8x8xbf16>
    %cst_83 = arith.constant dense<0.000000e+00> : vector<64x8xf32>
    %64 = tpu.matmul %61, %63, %cst_83 {dimension_numbers = #tpu.dot_dimension_numbers<[1], [0], [0], [1], [0, 0, 1, 1], [], []>} : vector<64x8xbf16>, vector<8x8xbf16>, vector<64x8xf32> -> vector<64x8xf32>
    %c0_84 = arith.constant 0 : index
    %c0_85 = arith.constant 0 : index
    %65 = vector.load %arg11[%c0_84, %c0_85] : memref<64x8xf32, #tpu.memory_space<vmem>>, vector<64x8xf32>
    %66 = arith.addf %65, %64 : vector<64x8xf32>
    %c0_86 = arith.constant 0 : index
    %c0_87 = arith.constant 0 : index
    %67 = vector.load %arg11[%c0_86, %c0_87] : memref<64x8xf32, #tpu.memory_space<vmem>>, vector<64x8xf32>
    tpu.vector_store %arg11[%c0_86, %c0_87], %66 {strides = array<i32>} : memref<64x8xf32, #tpu.memory_space<vmem>>, vector<64x8xf32>,
    %c2_88 = arith.constant 2 : index
    %c0_89 = arith.constant 0 : index
    %c0_90 = arith.constant 0 : index
    %68 = vector.load %arg10[%c2_88, %c0_89, %c0_90] : memref<10x10x8xbf16, #tpu.memory_space<vmem>>, vector<8x8x8xbf16>
    %69 = vector.shape_cast %68 : vector<8x8x8xbf16> to vector<64x8xbf16>
    %c6 = arith.constant 6 : index
    %c0_91 = arith.constant 0 : index
    %c0_92 = arith.constant 0 : index
    %70 = vector.load %arg6[%c6, %c0_91, %c0_92] : memref<9x8x8xbf16, #tpu.memory_space<vmem>>, vector<1x8x8xbf16>
    %71 = vector.shape_cast %70 : vector<1x8x8xbf16> to vector<8x8xbf16>
    %cst_93 = arith.constant dense<0.000000e+00> : vector<64x8xf32>
    %72 = tpu.matmul %69, %71, %cst_93 {dimension_numbers = #tpu.dot_dimension_numbers<[1], [0], [0], [1], [0, 0, 1, 1], [], []>} : vector<64x8xbf16>, vector<8x8xbf16>, vector<64x8xf32> -> vector<64x8xf32>
    %c0_94 = arith.constant 0 : index
    %c0_95 = arith.constant 0 : index
    %73 = vector.load %arg11[%c0_94, %c0_95] : memref<64x8xf32, #tpu.memory_space<vmem>>, vector<64x8xf32>
    %74 = arith.addf %73, %72 : vector<64x8xf32>
    %c0_96 = arith.constant 0 : index
    %c0_97 = arith.constant 0 : index
    %75 = vector.load %arg11[%c0_96, %c0_97] : memref<64x8xf32, #tpu.memory_space<vmem>>, vector<64x8xf32>
    tpu.vector_store %arg11[%c0_96, %c0_97], %74 {strides = array<i32>} : memref<64x8xf32, #tpu.memory_space<vmem>>, vector<64x8xf32>,
    %c2_98 = arith.constant 2 : index
    %c1_99 = arith.constant 1 : index
    %c0_100 = arith.constant 0 : index
    %76 = vector.load %arg10[%c2_98, %c1_99, %c0_100] : memref<10x10x8xbf16, #tpu.memory_space<vmem>>, vector<8x8x8xbf16>
    %77 = vector.shape_cast %76 : vector<8x8x8xbf16> to vector<64x8xbf16>
    %c7 = arith.constant 7 : index
    %c0_101 = arith.constant 0 : index
    %c0_102 = arith.constant 0 : index
    %78 = vector.load %arg6[%c7, %c0_101, %c0_102] : memref<9x8x8xbf16, #tpu.memory_space<vmem>>, vector<1x8x8xbf16>
    %79 = vector.shape_cast %78 : vector<1x8x8xbf16> to vector<8x8xbf16>
    %cst_103 = arith.constant dense<0.000000e+00> : vector<64x8xf32>
    %80 = tpu.matmul %77, %79, %cst_103 {dimension_numbers = #tpu.dot_dimension_numbers<[1], [0], [0], [1], [0, 0, 1, 1], [], []>} : vector<64x8xbf16>, vector<8x8xbf16>, vector<64x8xf32> -> vector<64x8xf32>
    %c0_104 = arith.constant 0 : index
    %c0_105 = arith.constant 0 : index
    %81 = vector.load %arg11[%c0_104, %c0_105] : memref<64x8xf32, #tpu.memory_space<vmem>>, vector<64x8xf32>
    %82 = arith.addf %81, %80 : vector<64x8xf32>
    %c0_106 = arith.constant 0 : index
    %c0_107 = arith.constant 0 : index
    %83 = vector.load %arg11[%c0_106, %c0_107] : memref<64x8xf32, #tpu.memory_space<vmem>>, vector<64x8xf32>
    tpu.vector_store %arg11[%c0_106, %c0_107], %82 {strides = array<i32>} : memref<64x8xf32, #tpu.memory_space<vmem>>, vector<64x8xf32>,
    %c2_108 = arith.constant 2 : index
    %c2_109 = arith.constant 2 : index
    %c0_110 = arith.constant 0 : index
    %84 = vector.load %arg10[%c2_108, %c2_109, %c0_110] : memref<10x10x8xbf16, #tpu.memory_space<vmem>>, vector<8x8x8xbf16>
    %85 = vector.shape_cast %84 : vector<8x8x8xbf16> to vector<64x8xbf16>
    %c8 = arith.constant 8 : index
    %c0_111 = arith.constant 0 : index
    %c0_112 = arith.constant 0 : index
    %86 = vector.load %arg6[%c8, %c0_111, %c0_112] : memref<9x8x8xbf16, #tpu.memory_space<vmem>>, vector<1x8x8xbf16>
    %87 = vector.shape_cast %86 : vector<1x8x8xbf16> to vector<8x8xbf16>
    %cst_113 = arith.constant dense<0.000000e+00> : vector<64x8xf32>
    %88 = tpu.matmul %85, %87, %cst_113 {dimension_numbers = #tpu.dot_dimension_numbers<[1], [0], [0], [1], [0, 0, 1, 1], [], []>} : vector<64x8xbf16>, vector<8x8xbf16>, vector<64x8xf32> -> vector<64x8xf32>
    %c0_114 = arith.constant 0 : index
    %c0_115 = arith.constant 0 : index
    %89 = vector.load %arg11[%c0_114, %c0_115] : memref<64x8xf32, #tpu.memory_space<vmem>>, vector<64x8xf32>
    %90 = arith.addf %89, %88 : vector<64x8xf32>
    %c0_116 = arith.constant 0 : index
    %c0_117 = arith.constant 0 : index
    %91 = vector.load %arg11[%c0_116, %c0_117] : memref<64x8xf32, #tpu.memory_space<vmem>>, vector<64x8xf32>
    tpu.vector_store %arg11[%c0_116, %c0_117], %90 {strides = array<i32>} : memref<64x8xf32, #tpu.memory_space<vmem>>, vector<64x8xf32>,
    %c0_118 = arith.constant 0 : index
    %c0_119 = arith.constant 0 : index
    %92 = vector.load %arg11[%c0_118, %c0_119] : memref<64x8xf32, #tpu.memory_space<vmem>>, vector<64x8xf32>
    %c0_120 = arith.constant 0 : index
    %c0_121 = arith.constant 0 : index
    %93 = vector.load %arg7[%c0_120, %c0_121] : memref<1x8xf32, #tpu.memory_space<vmem>>, vector<1x8xf32>
    %94 = vector.broadcast %93 : vector<1x8xf32> to vector<64x8xf32>
    %95 = arith.addf %92, %94 : vector<64x8xf32>
    %cst_122 = arith.constant dense<0.000000e+00> : vector<8xf32>
    %96 = vector.multi_reduction <add>, %95, %cst_122 [0] : vector<64x8xf32> to vector<8xf32>
    %97 = vector.shape_cast %96 : vector<8xf32> to vector<1x8xf32>
    %cst_123 = arith.constant 1.562500e-02 : f32
    %98 = vector.broadcast %cst_123 : f32 to vector<1x8xf32>
    %99 = arith.mulf %97, %98 : vector<1x8xf32>
    %100 = vector.broadcast %99 : vector<1x8xf32> to vector<64x8xf32>
    %101 = arith.subf %95, %100 : vector<64x8xf32>
    %102 = arith.mulf %101, %101 : vector<64x8xf32>
    %cst_124 = arith.constant dense<0.000000e+00> : vector<8xf32>
    %103 = vector.multi_reduction <add>, %102, %cst_124 [0] : vector<64x8xf32> to vector<8xf32>
    %104 = vector.shape_cast %103 : vector<8xf32> to vector<1x8xf32>
    %105 = vector.shape_cast %97 : vector<1x8xf32> to vector<1x1x8xf32>
    %c0_125 = arith.constant 0 : index
    %c0_126 = arith.constant 0 : index
    %c0_127 = arith.constant 0 : index
    %c0_128 = arith.constant 0 : index
    %106 = vector.load %arg9[%c0_125, %c0_126, %c0_127, %c0_128] : memref<1x1x2x8xf32, #tpu.memory_space<vmem>>, vector<1x1x1x8xf32>
    %107 = vector.shape_cast %106 : vector<1x1x1x8xf32> to vector<1x1x8xf32>
    %108 = vector.shape_cast %105 : vector<1x1x8xf32> to vector<1x1x1x8xf32>
    tpu.vector_store %arg9[%c0_125, %c0_126, %c0_127, %c0_128], %108 {strides = array<i32>} : memref<1x1x2x8xf32, #tpu.memory_space<vmem>>, vector<1x1x1x8xf32>,
    %109 = vector.shape_cast %104 : vector<1x8xf32> to vector<1x1x8xf32>
    %c0_129 = arith.constant 0 : index
    %c0_130 = arith.constant 0 : index
    %c1_131 = arith.constant 1 : index
    %c0_132 = arith.constant 0 : index
    %110 = vector.load %arg9[%c0_129, %c0_130, %c1_131, %c0_132] : memref<1x1x2x8xf32, #tpu.memory_space<vmem>>, vector<1x1x1x8xf32>
    %111 = vector.shape_cast %110 : vector<1x1x1x8xf32> to vector<1x1x8xf32>
    %112 = vector.shape_cast %109 : vector<1x1x8xf32> to vector<1x1x1x8xf32>
    tpu.vector_store %arg9[%c0_129, %c0_130, %c1_131, %c0_132], %112 {strides = array<i32>} : memref<1x1x2x8xf32, #tpu.memory_space<vmem>>, vector<1x1x1x8xf32>,
    %113 = vector.shape_cast %95 : vector<64x8xf32> to vector<8x8x8xf32>
    %114 = arith.truncf %113 : vector<8x8x8xf32> to vector<8x8x8xbf16>
    %c0_133 = arith.constant 0 : index
    %c0_134 = arith.constant 0 : index
    %c0_135 = arith.constant 0 : index
    %c0_136 = arith.constant 0 : index
    %115 = vector.load %arg8[%c0_133, %c0_134, %c0_135, %c0_136] : memref<1x8x8x8xbf16, #tpu.memory_space<vmem>>, vector<1x8x8x8xbf16>
    %116 = vector.shape_cast %115 : vector<1x8x8x8xbf16> to vector<8x8x8xbf16>
    %117 = vector.shape_cast %114 : vector<8x8x8xbf16> to vector<1x8x8x8xbf16>
    tpu.vector_store %arg8[%c0_133, %c0_134, %c0_135, %c0_136], %117 {strides = array<i32>} : memref<1x8x8x8xbf16, #tpu.memory_space<vmem>>, vector<1x8x8x8xbf16>,
    return
  }
  func.func @transform_0(%arg0: i32, %arg1: i32) -> (i32, i32, i32, i32) {
    %c0_i32 = arith.constant 0 : i32
    %c0_i32_0 = arith.constant 0 : i32
    %c0_i32_1 = arith.constant 0 : i32
    return %arg0, %arg1, %c0_i32, %c0_i32_0 : i32, i32, i32, i32
  }
  func.func @transform_1(%arg0: i32, %arg1: i32) -> (i32, i32, i32, i32, i32) {
    %c0_i32 = arith.constant 0 : i32
    %c0_i32_0 = arith.constant 0 : i32
    %c0_i32_1 = arith.constant 0 : i32
    %c0_i32_2 = arith.constant 0 : i32
    return %arg0, %arg1, %c0_i32, %c0_i32_0, %c0_i32_1 : i32, i32, i32, i32, i32
  }
  func.func @transform_2(%arg0: i32, %arg1: i32) -> (i32, i32, i32) {
    %c0_i32 = arith.constant 0 : i32
    %c0_i32_0 = arith.constant 0 : i32
    %c0_i32_1 = arith.constant 0 : i32
    %c0_i32_2 = arith.constant 0 : i32
    return %c0_i32, %c0_i32_0, %c0_i32_1 : i32, i32, i32
  }
  func.func @transform_3(%arg0: i32, %arg1: i32) -> (i32, i32, i32) {
    %c0_i32 = arith.constant 0 : i32
    %c0_i32_0 = arith.constant 0 : i32
    %c0_i32_1 = arith.constant 0 : i32
    %c0_i32_2 = arith.constant 0 : i32
    return %c0_i32, %c0_i32_0, %c0_i32_1 : i32, i32, i32
  }
  func.func @transform_4(%arg0: i32, %arg1: i32) -> (i32, i32, i32) {
    %c0_i32 = arith.constant 0 : i32
    %c0_i32_0 = arith.constant 0 : i32
    %c0_i32_1 = arith.constant 0 : i32
    %c0_i32_2 = arith.constant 0 : i32
    return %c0_i32, %c0_i32_0, %c0_i32_1 : i32, i32, i32
  }
  func.func @transform_5(%arg0: i32, %arg1: i32) -> (i32, i32) {
    %c0_i32 = arith.constant 0 : i32
    %c0_i32_0 = arith.constant 0 : i32
    %c0_i32_1 = arith.constant 0 : i32
    return %c0_i32, %c0_i32_0 : i32, i32
  }
  func.func @transform_6(%arg0: i32, %arg1: i32) -> (i32, i32, i32, i32) {
    %c0_i32 = arith.constant 0 : i32
    %c0_i32_0 = arith.constant 0 : i32
    %c0_i32_1 = arith.constant 0 : i32
    return %arg0, %arg1, %c0_i32, %c0_i32_0 : i32, i32, i32, i32
  }
  func.func @transform_7(%arg0: i32, %arg1: i32) -> (i32, i32, i32, i32) {
    %c0_i32 = arith.constant 0 : i32
    %c0_i32_0 = arith.constant 0 : i32
    %c0_i32_1 = arith.constant 0 : i32
    return %arg0, %arg1, %c0_i32, %c0_i32_0 : i32, i32, i32, i32
  }
}

</mosaic_0001>

<llo_original>
// kernel: down_forward.2
$region0: #{down_forward.2}
  #allocation0 [shape = 'u32[]', space=smem, size = 0x4, offset = 0x4, fixed_abs, tag = 'smem constant byte address 0x4 - core index']
  #allocation1 [shape = 'u32[144,128]{1,0:T(1,128)}', space=vmem, size = 0x12000, scoped, tag = 'internal scratch']
  #allocation2 [shape = 'bf16[10,10,4]{2,1,0:T(8,128)(2,1)}', space=vmem, size = 0xa000, scoped, tag = 'scratch operand']
  #allocation3 [shape = 'f32[64,8]{1,0:T(8,128)}', space=vmem, size = 0x8000, scoped, tag = 'scratch operand']
  %s0 = inlined_call_operand.vmem [shape: bf16[2,8,2,8,8], index: 0, kind: input, shape index: {}]
  %s1 = inlined_call_operand.vmem [shape: bf16[2,1,2,8,4], index: 1, kind: input, shape index: {}]
  %s2 = inlined_call_operand.vmem [shape: bf16[9,4,8], index: 2, kind: input, shape index: {}]
  %s3 = inlined_call_operand.vmem [shape: f32[1,8], index: 3, kind: input, shape index: {}]
  %s4 = inlined_call_operand.vmem [shape: bf16[2,8,8,8], index: 4, kind: output, shape index: {0}]
  %s5 = inlined_call_operand.vmem [shape: f32[2,1,2,8], index: 5, kind: output, shape index: {1}]
  %6 = xla_tuple %s4, %s5
  %s7 = sld [smem:[#allocation0]]
  $region57: #{down_forward.2} parent=0
    _
  %s9 = ssub.s32 1, %s7
  %s10 = scalar_select 0, %s9, %s7
  loop: start=0, step=1, limit=4
  $region2: #{down_forward.2} parent=0 // loop_pre_header
    _
  $region3: #{down_forward.2} parent=0 // loop_header
    %s12 = sphi 0, %s16
    %p13 = scmp.ge.s32.totalorder %s12, 4
    %s19 = sphi 0, %s31
    %s20 = sphi 0, %s27
    %s21 = sphi 0, %s19
    %s22 = sphi 0, %s20
    %s23 = sphi 0, %s21
    %s24 = sphi 0, %s22
    %s36 = sphi 0, %s38
    %s39 = sphi 0, %s36
    %s40 = sphi 0, %s39
    %s56 = sphi 0, %s40
    %s64 = sphi 0, %s66
    %s67 = sphi 0, %s64
    %s68 = sphi 0, %s67
    %s84 = sphi 0, %s68
    %s88 = sphi 0, %s88
    %s90 = sphi 0, %s88
    %s91 = sphi 0, %s90
    %s105 = sphi 0, %s91
    %s109 = sphi 0, %s109
    %s111 = sphi 0, %s109
    %s112 = sphi 0, %s111
    %s126 = sphi 0, %s112
    %s134 = sphi 0, %s136
    %s137 = sphi 0, %s134
    %s138 = sphi 0, %s137
    %s154 = sphi 0, %s138
    %s162 = sphi 0, %s164
    %s165 = sphi 0, %s162
    %s166 = sphi 0, %s165
    %s182 = sphi 0, %s166
  $region4: #{down_forward.2} parent=0 // loop_header_branch
    %15 = sbr.rel (%p13) target = $region8
  $region5: #{down_forward.2} parent=0 // loop_body
    %s17 = ssub.s32 %s12, 1
    %s18 = ssub.s32 %s12, 2
    %s25 = sadd.s32 1, %s20
    %p26 = scmp.ge.s32.totalorder %s25, 1
    %s27 = scalar_select %p26, 0, %s25
    %s28 = sadd.s32 1, %s19
    %s29 = scalar_select %p26, %s28, %s19
    %p30 = scmp.ge.s32.totalorder %s29, 2
    %s31 = scalar_select %p30, 0, %s29
    %s32 = ssub.s32 %s19, %s31
    %s33 = ssub.s32 %s20, %s27
    %s34 = sor.u32 %s32, %s33
    %p35 = scmp.eq.s32.totalorder %s34, 0
    %s37 = sadd.s32 %s36, 1
    %s38 = scalar_select %p35, %s36, %s37
    %p41 = pneg %p35
    %p42 = scmp.eq.s32.totalorder %s12, 1
    %p43 = por %p41, %p42
    %p44 = scmp.ne.s32.totalorder %s36, %s39
    %p45 = scmp.eq.s32.totalorder %s12, 0
    %p46 = por %p44, %p45
    %p47 = scmp.ne.s32.totalorder %s36, %s39
    %p48 = scmp.eq.s32.totalorder %s17, 1
    %p49 = por %p47, %p48
    %p50 = scmp.ne.s32.totalorder %s39, %s40
    %p51 = scmp.eq.s32.totalorder %s17, 0
    %p52 = por %p50, %p51
    %p53 = scmp.ne.s32.totalorder %s39, %s40
    %p54 = scmp.eq.s32.totalorder %s18, 1
    %p55 = por %p53, %p54
    %p57 = scmp.ne.s32.totalorder %s40, %s56
    %p58 = scmp.eq.s32.totalorder %s18, 0
    %p59 = por %p57, %p58
    %s60 = ssub.s32 %s19, %s31
    %s61 = ssub.s32 %s20, %s27
    %s62 = sor.u32 %s60, %s61
    %p63 = scmp.eq.s32.totalorder %s62, 0
    %s65 = sadd.s32 %s64, 1
    %s66 = scalar_select %p63, %s64, %s65
    %p69 = pneg %p63
    %p70 = scmp.eq.s32.totalorder %s12, 1
    %p71 = por %p69, %p70
    %p72 = scmp.ne.s32.totalorder %s64, %s67
    %p73 = scmp.eq.s32.totalorder %s12, 0
    %p74 = por %p72, %p73
    %p75 = scmp.ne.s32.totalorder %s64, %s67
    %p76 = scmp.eq.s32.totalorder %s17, 1
    %p77 = por %p75, %p76
    %p78 = scmp.ne.s32.totalorder %s67, %s68
    %p79 = scmp.eq.s32.totalorder %s17, 0
    %p80 = por %p78, %p79
    %p81 = scmp.ne.s32.totalorder %s67, %s68
    %p82 = scmp.eq.s32.totalorder %s18, 1
    %p83 = por %p81, %p82
    %p85 = scmp.ne.s32.totalorder %s68, %s84
    %p86 = scmp.eq.s32.totalorder %s18, 0
    %p87 = por %p85, %p86
    %s89 = sadd.s32 %s88, 1
    %p92 = scmp.eq.s32.totalorder %s12, 1
    %p93 = scmp.ne.s32.totalorder %s88, %s90
    %p94 = scmp.eq.s32.totalorder %s12, 0
    %p95 = por %p93, %p94
    %p96 = scmp.ne.s32.totalorder %s88, %s90
    %p97 = scmp.eq.s32.totalorder %s17, 1
    %p98 = por %p96, %p97
    %p99 = scmp.ne.s32.totalorder %s90, %s91
    %p100 = scmp.eq.s32.totalorder %s17, 0
    %p101 = por %p99, %p100
    %p102 = scmp.ne.s32.totalorder %s90, %s91
    %p103 = scmp.eq.s32.totalorder %s18, 1
    %p104 = por %p102, %p103
    %p106 = scmp.ne.s32.totalorder %s91, %s105
    %p107 = scmp.eq.s32.totalorder %s18, 0
    %p108 = por %p106, %p107
    %s110 = sadd.s32 %s109, 1
    %p113 = scmp.eq.s32.totalorder %s12, 1
    %p114 = scmp.ne.s32.totalorder %s109, %s111
    %p115 = scmp.eq.s32.totalorder %s12, 0
    %p116 = por %p114, %p115
    %p117 = scmp.ne.s32.totalorder %s109, %s111
    %p118 = scmp.eq.s32.totalorder %s17, 1
    %p119 = por %p117, %p118
    %p120 = scmp.ne.s32.totalorder %s111, %s112
    %p121 = scmp.eq.s32.totalorder %s17, 0
    %p122 = por %p120, %p121
    %p123 = scmp.ne.s32.totalorder %s111, %s112
    %p124 = scmp.eq.s32.totalorder %s18, 1
    %p125 = por %p123, %p124
    %p127 = scmp.ne.s32.totalorder %s112, %s126
    %p128 = scmp.eq.s32.totalorder %s18, 0
    %p129 = por %p127, %p128
    %s130 = ssub.s32 %s19, %s31
    %s131 = ssub.s32 %s20, %s27
    %s132 = sor.u32 %s130, %s131
    %p133 = scmp.eq.s32.totalorder %s132, 0
    %s135 = sadd.s32 %s134, 1
    %s136 = scalar_select %p133, %s134, %s135
    %p139 = pneg %p133
    %p140 = scmp.eq.s32.totalorder %s12, 1
    %p141 = por %p139, %p140
    %p142 = scmp.ne.s32.totalorder %s134, %s137
    %p143 = scmp.eq.s32.totalorder %s12, 0
    %p144 = por %p142, %p143
    %p145 = scmp.ne.s32.totalorder %s134, %s137
    %p146 = scmp.eq.s32.totalorder %s17, 1
    %p147 = por %p145, %p146
    %p148 = scmp.ne.s32.totalorder %s137, %s138
    %p149 = scmp.eq.s32.totalorder %s17, 0
    %p150 = por %p148, %p149
    %p151 = scmp.ne.s32.totalorder %s137, %s138
    %p152 = scmp.eq.s32.totalorder %s18, 1
    %p153 = por %p151, %p152
    %p155 = scmp.ne.s32.totalorder %s138, %s154
    %p156 = scmp.eq.s32.totalorder %s18, 0
    %p157 = por %p155, %p156
    %s158 = ssub.s32 %s19, %s31
    %s159 = ssub.s32 %s20, %s27
    %s160 = sor.u32 %s158, %s159
    %p161 = scmp.eq.s32.totalorder %s160, 0
    %s163 = sadd.s32 %s162, 1
    %s164 = scalar_select %p161, %s162, %s163
    %p167 = pneg %p161
    %p168 = scmp.eq.s32.totalorder %s12, 1
    %p169 = por %p167, %p168
    %p170 = scmp.ne.s32.totalorder %s162, %s165
    %p171 = scmp.eq.s32.totalorder %s12, 0
    %p172 = por %p170, %p171
    %p173 = scmp.ne.s32.totalorder %s162, %s165
    %p174 = scmp.eq.s32.totalorder %s17, 1
    %p175 = por %p173, %p174
    %p176 = scmp.ne.s32.totalorder %s165, %s166
    %p177 = scmp.eq.s32.totalorder %s17, 0
    %p178 = por %p176, %p177
    %p179 = scmp.ne.s32.totalorder %s165, %s166
    %p180 = scmp.eq.s32.totalorder %s18, 1
    %p181 = por %p179, %p180
    %p183 = scmp.ne.s32.totalorder %s166, %s182
    %p184 = scmp.eq.s32.totalorder %s18, 0
    %p185 = por %p183, %p184
    %p186 = scmp.le.s32.totalorder 1, %s12
    %p187 = scmp.lt.s32.totalorder %s12, 3
    %p188 = pnand %p186, %p187
    %p189 = pneg %p188
    // Predicated region
    $region9: #{down_forward.2} parent=5 // pred_check
      _
    $region10: #{down_forward.2} parent=5 // pred_check_branch
      %191 = sbr.rel (%p188) target = $region12
    $region11: #{down_forward.2} parent=5 // pred_region
      %s192 = ssub.s32 %s12, 1
      // Predicated region
      $region13: #{down_forward.2} parent=11 // pred_check
        %p193 = pneg %p101
      $region14: #{down_forward.2} parent=11 // pred_check_branch
        %195 = sbr.rel (%p193) target = $region16
      $region15: #{down_forward.2} parent=11 // pred_region
        _
      $region16: #{down_forward.2} parent=11 // pred_fallthru
        _
      // Predicated region
      $region17: #{down_forward.2} parent=11 // pred_check
        %p196 = pneg %p122
      $region18: #{down_forward.2} parent=11 // pred_check_branch
        %198 = sbr.rel (%p196) target = $region20
      $region19: #{down_forward.2} parent=11 // pred_region
        _
      $region20: #{down_forward.2} parent=11 // pred_fallthru
        _
    $region12: #{down_forward.2} parent=5 // pred_fallthru
      _
    %p199 = scmp.lt.s32.totalorder %s12, 2
    // Predicated region
    $region21: #{down_forward.2} parent=5 // pred_check
      %p200 = pneg %p199
    $region22: #{down_forward.2} parent=5 // pred_check_branch
      %202 = sbr.rel (%p200) target = $region24
    $region23: #{down_forward.2} parent=5 // pred_region
      // Predicated region
      $region25: #{down_forward.2} parent=23 // pred_check
        %p203 = pneg %p46
      $region26: #{down_forward.2} parent=23 // pred_check_branch
        %205 = sbr.rel (%p203) target = $region28
      $region27: #{down_forward.2} parent=23 // pred_region
        %s206 = smul.u32 8, %s20
        %p207 = scmp.lt.s32.totalorder %s19, 1
        %s208 = scalar_select %p207, %s19, 1
        %p209 = scmp.lt.s32.totalorder %s206, 7
        %s210 = scalar_select %p209, %s206, 7
        %s211 = smul.addr %s210, 2
        %s212 = smul.addr %s208, 16
        %s213 = sadd.s32 %s211, %s212
        %s214 = smul.addr %s213, 4
        %s215 = scalar_lea.vmem %s0, %s214
        %s216 = smul.u32 8, %s20
      $region28: #{down_forward.2} parent=23 // pred_fallthru
        _
      // Predicated region
      $region29: #{down_forward.2} parent=23 // pred_check
        %p217 = pneg %p74
      $region30: #{down_forward.2} parent=23 // pred_check_branch
        %219 = sbr.rel (%p217) target = $region32
      $region31: #{down_forward.2} parent=23 // pred_region
        %p220 = scmp.lt.s32.totalorder %s19, 1
        %s221 = scalar_select %p220, %s19, 1
        %p222 = scmp.lt.s32.totalorder %s20, 0
        %s223 = scalar_select %p222, %s20, 0
        %s224 = smul.addr %s223, 2
        %s225 = smul.addr %s221, 2
        %s226 = sadd.s32 %s224, %s225
        %s227 = smul.addr %s226, 4
        %s228 = scalar_lea.vmem %s1, %s227
      $region32: #{down_forward.2} parent=23 // pred_fallthru
        _
    $region24: #{down_forward.2} parent=5 // pred_fallthru
      _
    %p229 = scmp.le.s32.totalorder 1, %s12
    %p230 = scmp.lt.s32.totalorder %s12, 3
    %p231 = pnand %p229, %p230
    %p232 = pneg %p231
    // Predicated region
    $region33: #{down_forward.2} parent=5 // pred_check
      _
    $region34: #{down_forward.2} parent=5 // pred_check_branch
      %234 = sbr.rel (%p231) target = $region36
    $region35: #{down_forward.2} parent=5 // pred_region
      %s235 = ssub.s32 %s12, 1
      %s236 = smul.u32 8, %s22
      %p237 = scmp.lt.s32.totalorder %s21, 1
      %s238 = scalar_select %p237, %s21, 1
      %p239 = scmp.lt.s32.totalorder %s236, 7
      %s240 = scalar_select %p239, %s236, 7
      %s241 = smul.addr %s240, 2
      %s242 = smul.addr %s238, 16
      %s243 = sadd.s32 %s241, %s242
      %s244 = smul.addr %s243, 4
      %s245 = scalar_lea.vmem %s0, %s244
      %p246 = pneg %p52
      %p247 = pneg %p49
      %p248 = scmp.lt.s32.totalorder %s21, 1
      %s249 = scalar_select %p248, %s21, 1
      %p250 = scmp.lt.s32.totalorder %s22, 0
      %s251 = scalar_select %p250, %s22, 0
      %s252 = smul.addr %s251, 2
      %s253 = smul.addr %s249, 2
      %s254 = sadd.s32 %s252, %s253
      %s255 = smul.addr %s254, 4
      %s256 = scalar_lea.vmem %s1, %s255
      %p257 = pneg %p80
      %p258 = pneg %p77
      %p259 = pneg %p101
      %p260 = pneg %p98
      %p261 = pneg %p122
      %p262 = pneg %p119
      %p263 = pneg %p150
      %p264 = pneg %p147
      %s265 = smul.u32 8, %s22
      %p266 = scmp.lt.s32.totalorder %s21, 1
      %s267 = scalar_select %p266, %s21, 1
      %p268 = scmp.lt.s32.totalorder %s265, 7
      %s269 = scalar_select %p268, %s265, 7
      %s270 = smul.addr %s267, 8
      %s271 = sadd.s32 %s269, %s270
      %s272 = smul.addr %s271, 4
      %s273 = scalar_lea.vmem %s4, %s272
      %p274 = pneg %p178
      %p275 = pneg %p175
      %p276 = scmp.lt.s32.totalorder %s21, 1
      %s277 = scalar_select %p276, %s21, 1
      %p278 = scmp.lt.s32.totalorder %s22, 0
      %s279 = scalar_select %p278, %s22, 0
      %s280 = sadd.s32 %s279, %s277
      %s281 = smul.addr %s280, 2
      %s282 = scalar_lea.vmem %s5, %s281
      %s283 = smul.u32 8, %s22
      %p284 = scmp.lt.s32.totalorder %s21, 1
      %s285 = scalar_select %p284, %s21, 1
      %p286 = scmp.lt.s32.totalorder %s283, 7
      %s287 = scalar_select %p286, %s283, 7
      %s288 = smul.addr %s287, 2
      %s289 = smul.addr %s285, 16
      %s290 = sadd.s32 %s288, %s289
      %s291 = smul.addr %s290, 4
      %s292 = scalar_lea.vmem %s0, %s291
      %s293 = smul.u32 8, %s22
      %p294 = scmp.lt.s32.totalorder %s21, 1
      %s295 = scalar_select %p294, %s21, 1
      %p296 = scmp.lt.s32.totalorder %s22, 0
      %s297 = scalar_select %p296, %s22, 0
      %s298 = smul.addr %s297, 2
      %s299 = smul.addr %s295, 2
      %s300 = sadd.s32 %s298, %s299
      %s301 = smul.addr %s300, 4
      %s302 = scalar_lea.vmem %s1, %s301
      %s303 = smul.u32 8, %s22
      %p304 = scmp.lt.s32.totalorder %s21, 1
      %s305 = scalar_select %p304, %s21, 1
      %p306 = scmp.lt.s32.totalorder %s303, 7
      %s307 = scalar_select %p306, %s303, 7
      %s308 = smul.addr %s305, 8
      %s309 = sadd.s32 %s307, %s308
      %s310 = smul.addr %s309, 4
      %s311 = scalar_lea.vmem %s4, %s310
      %s312 = smul.u32 8, %s22
      %p313 = scmp.lt.s32.totalorder %s21, 1
      %s314 = scalar_select %p313, %s21, 1
      %p315 = scmp.lt.s32.totalorder %s22, 0
      %s316 = scalar_select %p315, %s22, 0
      %s317 = sadd.s32 %s316, %s314
      %s318 = smul.addr %s317, 2
      %s319 = scalar_lea.vmem %s5, %s318
      %v321 = vld [vmem:[%s292] sm:$0xf]
      %v322 = vld [vmem:[%s292 + $0x4] sm:$0xf]
      %v323 = vld [vmem:[%s292 + $0x8] sm:$0xf]
      %v324 = vld [vmem:[%s292 + $0xc] sm:$0xf]
      %v325 = vld [vmem:[%s292 + $0x10] sm:$0xf]
      %v326 = vld [vmem:[%s292 + $0x14] sm:$0xf]
      %v327 = vld [vmem:[%s292 + $0x18] sm:$0xf]
      %v328 = vld [vmem:[%s292 + $0x1c] sm:$0xf]
      %v329 = vld [vmem:[%s292 + $0x20] sm:$0xf]
      %v330 = vld [vmem:[%s292 + $0x24] sm:$0xf]
      %v331 = vld [vmem:[%s292 + $0x28] sm:$0xf]
      %v332 = vld [vmem:[%s292 + $0x2c] sm:$0xf]
      %v333 = vld [vmem:[%s292 + $0x30] sm:$0xf]
      %v334 = vld [vmem:[%s292 + $0x34] sm:$0xf]
      %v335 = vld [vmem:[%s292 + $0x38] sm:$0xf]
      %v336 = vld [vmem:[%s292 + $0x3c] sm:$0xf]
      %v337 = vmax.bf16 %v321, %v322
      %v338 = vmax.bf16 %v323, %v324
      %v339 = vmax.bf16 %v325, %v326
      %v340 = vmax.bf16 %v327, %v328
      %v341 = vmax.bf16 %v329, %v330
      %v342 = vmax.bf16 %v331, %v332
      %v343 = vmax.bf16 %v333, %v334
      %v344 = vmax.bf16 %v335, %v336
      %353 = vrot.lane.b32.xlu0 %v337, 124
      %v354 = vpop.permute.xlu0 %353
      %355 = vrot.lane.b32.xlu0 %v338, 124
      %v356 = vpop.permute.xlu0 %355
      %357 = vrot.lane.b32.xlu0 %v339, 124
      %v358 = vpop.permute.xlu0 %357
      %359 = vrot.lane.b32.xlu0 %v340, 124
      %v360 = vpop.permute.xlu0 %359
      %361 = vrot.lane.b32.xlu0 %v341, 124
      %v362 = vpop.permute.xlu0 %361
      %363 = vrot.lane.b32.xlu0 %v342, 124
      %v364 = vpop.permute.xlu0 %363
      %365 = vrot.lane.b32.xlu0 %v343, 124
      %v366 = vpop.permute.xlu0 %365
      %367 = vrot.lane.b32.xlu0 %v344, 124
      %v368 = vpop.permute.xlu0 %367
      %v377 = vmax.bf16 %v337, %v354
      %v378 = vmax.bf16 %v338, %v356
      %v379 = vmax.bf16 %v339, %v358
      %v380 = vmax.bf16 %v340, %v360
      %v381 = vmax.bf16 %v341, %v362
      %v382 = vmax.bf16 %v342, %v364
      %v383 = vmax.bf16 %v343, %v366
      %v384 = vmax.bf16 %v344, %v368
      %vm385 = vcmask 24576
      %vm386 = vsmask.f32 256
      %vm387 = vmand %vm385, %vm386
      %v388 = vld [vmem:[#allocation2] sm:$0x1]
      %v389 = vsel %vm387, 0, %v388
      %390 = vst [vmem:[#allocation2] sm:$0x1] %v389
      %v391 = vld [vmem:[#allocation2 + $0x8] sm:$0x1]
      %v392 = vsel %vm387, 0, %v391
      %393 = vst [vmem:[#allocation2 + $0x8] sm:$0x1] %v392
      %v394 = vld [vmem:[#allocation2 + $0x10] sm:$0x1]
      %v395 = vsel %vm387, 0, %v394
      %396 = vst [vmem:[#allocation2 + $0x10] sm:$0x1] %v395
      %v397 = vld [vmem:[#allocation2 + $0x18] sm:$0x1]
      %v398 = vsel %vm387, 0, %v397
      %399 = vst [vmem:[#allocation2 + $0x18] sm:$0x1] %v398
      %v400 = vld [vmem:[#allocation2 + $0x20] sm:$0x1]
      %v401 = vsel %vm387, 0, %v400
      %402 = vst [vmem:[#allocation2 + $0x20] sm:$0x1] %v401
      %v403 = vld [vmem:[#allocation2 + $0x28] sm:$0x1]
      %v404 = vsel %vm387, 0, %v403
      %405 = vst [vmem:[#allocation2 + $0x28] sm:$0x1] %v404
      %v406 = vld [vmem:[#allocation2 + $0x30] sm:$0x1]
      %v407 = vsel %vm387, 0, %v406
      %408 = vst [vmem:[#allocation2 + $0x30] sm:$0x1] %v407
      %v409 = vld [vmem:[#allocation2 + $0x38] sm:$0x1]
      %v410 = vsel %vm387, 0, %v409
      %411 = vst [vmem:[#allocation2 + $0x38] sm:$0x1] %v410
      %v412 = vld [vmem:[#allocation2 + $0x40] sm:$0x1]
      %v413 = vsel %vm387, 0, %v412
      %414 = vst [vmem:[#allocation2 + $0x40] sm:$0x1] %v413
      %v415 = vld [vmem:[#allocation2 + $0x48] sm:$0x1]
      %v416 = vsel %vm387, 0, %v415
      %417 = vst [vmem:[#allocation2 + $0x48] sm:$0x1] %v416
      %vm418 = vsmask.f32 7938
      %vm419 = vmand %vm385, %vm418
      %v420 = vld [vmem:[#allocation2 + $0x4] sm:$0x1]
      %v421 = vsel %vm419, 0, %v420
      %422 = vst [vmem:[#allocation2 + $0x4] sm:$0x1] %v421
      %v423 = vld [vmem:[#allocation2 + $0xc] sm:$0x1]
      %v424 = vsel %vm419, 0, %v423
      %425 = vst [vmem:[#allocation2 + $0xc] sm:$0x1] %v424
      %v426 = vld [vmem:[#allocation2 + $0x14] sm:$0x1]
      %v427 = vsel %vm419, 0, %v426
      %428 = vst [vmem:[#allocation2 + $0x14] sm:$0x1] %v427
      %v429 = vld [vmem:[#allocation2 + $0x1c] sm:$0x1]
      %v430 = vsel %vm419, 0, %v429
      %431 = vst [vmem:[#allocation2 + $0x1c] sm:$0x1] %v430
      %v432 = vld [vmem:[#allocation2 + $0x24] sm:$0x1]
      %v433 = vsel %vm419, 0, %v432
      %434 = vst [vmem:[#allocation2 + $0x24] sm:$0x1] %v433
      %v435 = vld [vmem:[#allocation2 + $0x2c] sm:$0x1]
      %v436 = vsel %vm419, 0, %v435
      %437 = vst [vmem:[#allocation2 + $0x2c] sm:$0x1] %v436
      %v438 = vld [vmem:[#allocation2 + $0x34] sm:$0x1]
      %v439 = vsel %vm419, 0, %v438
      %440 = vst [vmem:[#allocation2 + $0x34] sm:$0x1] %v439
      %v441 = vld [vmem:[#allocation2 + $0x3c] sm:$0x1]
      %v442 = vsel %vm419, 0, %v441
      %443 = vst [vmem:[#allocation2 + $0x3c] sm:$0x1] %v442
      %v444 = vld [vmem:[#allocation2 + $0x44] sm:$0x1]
      %v445 = vsel %vm419, 0, %v444
      %446 = vst [vmem:[#allocation2 + $0x44] sm:$0x1] %v445
      %v447 = vld [vmem:[#allocation2 + $0x4c] sm:$0x1]
      %v448 = vsel %vm419, 0, %v447
      %449 = vst [vmem:[#allocation2 + $0x4c] sm:$0x1] %v448
      %v450 = vld [vmem:[%s302] sm:$0xf]
      %v451 = vld [vmem:[%s302 + $0x4] sm:$0xf]
      %v453 = vshrl.u32 %v450, 16
      %v455 = vrot.slane %v453, 7
      %v456 = vshll.u32 %v450, 16
      %v458 = vor.u32 %v455, %v456
      %v459 = vrot.slane %v455, 4
      %vm462 = vcmask 27648
      %vm463 = vmand %vm462, %vm418
      %v464 = vld [vmem:[#allocation2] sm:$0xf]
      %v465 = vsel %vm463, %v458, %v464
      %466 = vst [vmem:[#allocation2] sm:$0xf] %v465
      %v467 = vld [vmem:[#allocation2 + $0x4] sm:$0x1]
      %v468 = vsel %vm387, %v459, %v467
      %469 = vst [vmem:[#allocation2 + $0x4] sm:$0x1] %v468
      %v471 = vshrl.u32 %v451, 16
      %v473 = vrot.slane %v471, 7
      %v474 = vshll.u32 %v451, 16
      %v476 = vor.u32 %v473, %v474
      %v477 = vrot.slane %v473, 4
      %s480 = scalar_lea.vmem [#allocation2], 72
      %v481 = vld [vmem:[%s480] sm:$0xf]
      %v482 = vsel %vm463, %v476, %v481
      %483 = vst [vmem:[%s480] sm:$0xf] %v482
      %v484 = vld [vmem:[%s480 + $0x4] sm:$0x1]
      %v485 = vsel %vm387, %v477, %v484
      %486 = vst [vmem:[%s480 + $0x4] sm:$0x1] %v485
      %v488 = vshrl.u32 %v377, 16
      %v490 = vrot.slane %v488, 7
      %v491 = vshll.u32 %v377, 16
      %v493 = vor.u32 %v490, %v491
      %v494 = vrot.slane %v490, 4
      %v496 = vshrl.u32 %v378, 16
      %v498 = vrot.slane %v496, 7
      %v499 = vshll.u32 %v378, 16
      %v501 = vor.u32 %v498, %v499
      %v502 = vrot.slane %v498, 4
      %v504 = vshrl.u32 %v379, 16
      %v506 = vrot.slane %v504, 7
      %v507 = vshll.u32 %v379, 16
      %v509 = vor.u32 %v506, %v507
      %v510 = vrot.slane %v506, 4
      %v512 = vshrl.u32 %v380, 16
      %v514 = vrot.slane %v512, 7
      %v515 = vshll.u32 %v380, 16
      %v517 = vor.u32 %v514, %v515
      %v518 = vrot.slane %v514, 4
      %v520 = vshrl.u32 %v381, 16
      %v522 = vrot.slane %v520, 7
      %v523 = vshll.u32 %v381, 16
      %v525 = vor.u32 %v522, %v523
      %v526 = vrot.slane %v522, 4
      %v528 = vshrl.u32 %v382, 16
      %v530 = vrot.slane %v528, 7
      %v531 = vshll.u32 %v382, 16
      %v533 = vor.u32 %v530, %v531
      %v534 = vrot.slane %v530, 4
      %v536 = vshrl.u32 %v383, 16
      %v538 = vrot.slane %v536, 7
      %v539 = vshll.u32 %v383, 16
      %v541 = vor.u32 %v538, %v539
      %v542 = vrot.slane %v538, 4
      %v544 = vshrl.u32 %v384, 16
      %v546 = vrot.slane %v544, 7
      %v547 = vshll.u32 %v384, 16
      %v549 = vor.u32 %v546, %v547
      %v550 = vrot.slane %v546, 4
      %s567 = scalar_lea.vmem [#allocation2], 8
      %v568 = vld [vmem:[%s567] sm:$0xf]
      %v569 = vsel %vm463, %v493, %v568
      %570 = vst [vmem:[%s567] sm:$0xf] %v569
      %v571 = vld [vmem:[%s567 + $0x4] sm:$0x1]
      %v572 = vsel %vm387, %v494, %v571
      %573 = vst [vmem:[%s567 + $0x4] sm:$0x1] %v572
      %v574 = vld [vmem:[%s567 + $0x8] sm:$0xf]
      %v575 = vsel %vm463, %v501, %v574
      %576 = vst [vmem:[%s567 + $0x8] sm:$0xf] %v575
      %v577 = vld [vmem:[%s567 + $0xc] sm:$0x1]
      %v578 = vsel %vm387, %v502, %v577
      %579 = vst [vmem:[%s567 + $0xc] sm:$0x1] %v578
      %v580 = vld [vmem:[%s567 + $0x10] sm:$0xf]
      %v581 = vsel %vm463, %v509, %v580
      %582 = vst [vmem:[%s567 + $0x10] sm:$0xf] %v581
      %v583 = vld [vmem:[%s567 + $0x14] sm:$0x1]
      %v584 = vsel %vm387, %v510, %v583
      %585 = vst [vmem:[%s567 + $0x14] sm:$0x1] %v584
      %v586 = vld [vmem:[%s567 + $0x18] sm:$0xf]
      %v587 = vsel %vm463, %v517, %v586
      %588 = vst [vmem:[%s567 + $0x18] sm:$0xf] %v587
      %v589 = vld [vmem:[%s567 + $0x1c] sm:$0x1]
      %v590 = vsel %vm387, %v518, %v589
      %591 = vst [vmem:[%s567 + $0x1c] sm:$0x1] %v590
      %v592 = vld [vmem:[%s567 + $0x20] sm:$0xf]
      %v593 = vsel %vm463, %v525, %v592
      %594 = vst [vmem:[%s567 + $0x20] sm:$0xf] %v593
      %v595 = vld [vmem:[%s567 + $0x24] sm:$0x1]
      %v596 = vsel %vm387, %v526, %v595
      %597 = vst [vmem:[%s567 + $0x24] sm:$0x1] %v596
      %v598 = vld [vmem:[%s567 + $0x28] sm:$0xf]
      %v599 = vsel %vm463, %v533, %v598
      %600 = vst [vmem:[%s567 + $0x28] sm:$0xf] %v599
      %v601 = vld [vmem:[%s567 + $0x2c] sm:$0x1]
      %v602 = vsel %vm387, %v534, %v601
      %603 = vst [vmem:[%s567 + $0x2c] sm:$0x1] %v602
      %v604 = vld [vmem:[%s567 + $0x30] sm:$0xf]
      %v605 = vsel %vm463, %v541, %v604
      %606 = vst [vmem:[%s567 + $0x30] sm:$0xf] %v605
      %v607 = vld [vmem:[%s567 + $0x34] sm:$0x1]
      %v608 = vsel %vm387, %v542, %v607
      %609 = vst [vmem:[%s567 + $0x34] sm:$0x1] %v608
      %v610 = vld [vmem:[%s567 + $0x38] sm:$0xf]
      %v611 = vsel %vm463, %v549, %v610
      %612 = vst [vmem:[%s567 + $0x38] sm:$0xf] %v611
      %v613 = vld [vmem:[%s567 + $0x3c] sm:$0x1]
      %v614 = vsel %vm387, %v550, %v613
      %615 = vst [vmem:[%s567 + $0x3c] sm:$0x1] %v614
      %v616 = vld [vmem:[#allocation2] sm:$0xf]
      %v617 = vld [vmem:[#allocation2 + $0x8] sm:$0xf]
      %v618 = vld [vmem:[#allocation2 + $0x10] sm:$0xf]
      %v619 = vld [vmem:[#allocation2 + $0x18] sm:$0xf]
      %v620 = vld [vmem:[#allocation2 + $0x20] sm:$0xf]
      %v621 = vld [vmem:[#allocation2 + $0x28] sm:$0xf]
      %v622 = vld [vmem:[#allocation2 + $0x30] sm:$0xf]
      %v623 = vld [vmem:[#allocation2 + $0x38] sm:$0xf]
      %v624 = vld [vmem:[%s2] sm:$0x3]
      %v633 = vunpack.c.l.b16 %v616
      %v634 = vunpack.c.l.b16 %v617
      %v635 = vunpack.c.l.b16 %v618
      %v636 = vunpack.c.l.b16 %v619
      %v637 = vunpack.c.l.b16 %v620
      %v638 = vunpack.c.l.b16 %v621
      %v639 = vunpack.c.l.b16 %v622
      %v640 = vunpack.c.l.b16 %v623
      %v641 = vpack.c.b16 %v634, %v633
      %v642 = vpack.c.b16 %v636, %v635
      %v643 = vpack.c.b16 %v638, %v637
      %v644 = vpack.c.b16 %v640, %v639
      %vm645 = vcmask 31744
      %v647 = vsel %vm645, %v641, 0
      %v650 = vsel %vm645, %v642, 0
      %v653 = vsel %vm645, %v643, 0
      %v656 = vsel %vm645, %v644, 0
      %vm658 = vcmask 1041408
      %v660 = vsel %vm658, %v624, 0
      %662 = vmatprep.subr.bf16.mxu0 0
      %663 = vmatpush1.bf16.msra.mxu0 0
      %664 = vmatprep.subr.bf16.mxu0 0
      %665 = vmatpush1.bf16.msra.mxu0 0
      %666 = vmatprep.subr.bf16.mxu0 0
      %667 = vmatpush1.bf16.msra.mxu0 0
      %668 = vmatprep.subr.bf16.mxu0 0
      %669 = vmatpush1.bf16.msra.mxu0 0
      %670 = vmatprep.subr.bf16.mxu0 0
      %671 = vmatpush1.bf16.msra.mxu0 0
      %672 = vmatprep.subr.bf16.mxu0 0
      %673 = vmatpush1.bf16.msra.mxu0 0
      %674 = vmatprep.subr.bf16.mxu0 0
      %675 = vmatpush1.bf16.msra.mxu0 0
      %676 = vmatprep.subr.bf16.mxu0 0
      %677 = vmatpush1.bf16.msra.mxu0 %v660
      %678 = vmatprep.subr.bf16.mxu0 0
      %679 = vmatpush2.bf16.msra.mxu0 0
      %680 = vmatprep.subr.bf16.mxu0 0
      %681 = vmatpush2.bf16.msra.mxu0 0
      %682 = vmatprep.subr.bf16.mxu0 0
      %683 = vmatpush2.bf16.msra.mxu0 0
      %684 = vmatprep.subr.bf16.mxu0 0
      %685 = vmatpush2.bf16.msra.mxu0 0
      %686 = vmatprep.subr.bf16.mxu0 0
      %687 = vmatpush2.bf16.msra.mxu0 0
      %688 = vmatprep.subr.bf16.mxu0 0
      %689 = vmatpush2.bf16.msra.mxu0 0
      %690 = vmatprep.subr.bf16.mxu0 0
      %691 = vmatpush2.bf16.msra.mxu0 0
      %692 = vmatprep.subr.bf16.mxu0 0
      %693 = vmatpush2.bf16.msra.mxu0 0
      %694 = vmatprep.mubr.bf16.mxu0 0
      %695 = vmatmul.mubr.bf16.gmra.mxu0 %v647
      %v696 = vpop.f32.mrf.mxu0
      %v697 = vadd.f32 0.0, %v696
      %v698 = vpop.f32.mrf.mxu0
      %v699 = vpop.f32.mrf.mxu0
      %v700 = vadd.f32 0.0, %v699
      %v701 = vpop.f32.mrf.mxu0
      %702 = vmatprep.mubr.bf16.mxu0 0
      %703 = vmatmul.mubr.bf16.gmra.mxu0 %v650
      %v704 = vpop.f32.mrf.mxu0
      %v705 = vadd.f32 0.0, %v704
      %v706 = vpop.f32.mrf.mxu0
      %v707 = vpop.f32.mrf.mxu0
      %v708 = vadd.f32 0.0, %v707
      %v709 = vpop.f32.mrf.mxu0
      %710 = vmatprep.mubr.bf16.mxu0 0
      %711 = vmatmul.mubr.bf16.gmra.mxu0 %v653
      %v712 = vpop.f32.mrf.mxu0
      %v713 = vadd.f32 0.0, %v712
      %v714 = vpop.f32.mrf.mxu0
      %v715 = vpop.f32.mrf.mxu0
      %v716 = vadd.f32 0.0, %v715
      %v717 = vpop.f32.mrf.mxu0
      %718 = vmatprep.mubr.bf16.mxu0 0
      %719 = vmatmul.mubr.bf16.gmra.mxu0 %v656
      %v720 = vpop.f32.mrf.mxu0
      %v721 = vadd.f32 0.0, %v720
      %v722 = vpop.f32.mrf.mxu0
      %v723 = vpop.f32.mrf.mxu0
      %v724 = vadd.f32 0.0, %v723
      %v725 = vpop.f32.mrf.mxu0
      %726 = vdwg.mxu0
      %vm727 = vcmask 64512
      %728 = vst.msk [vmem:[#allocation3] sm:$0xff] %vm727, %v697
      %729 = vst.msk [vmem:[#allocation3 + $0x8] sm:$0xff] %vm727, %v700
      %730 = vst.msk [vmem:[#allocation3 + $0x10] sm:$0xff] %vm727, %v705
      %731 = vst.msk [vmem:[#allocation3 + $0x18] sm:$0xff] %vm727, %v708
      %732 = vst.msk [vmem:[#allocation3 + $0x20] sm:$0xff] %vm727, %v713
      %733 = vst.msk [vmem:[#allocation3 + $0x28] sm:$0xff] %vm727, %v716
      %734 = vst.msk [vmem:[#allocation3 + $0x30] sm:$0xff] %vm727, %v721
      %735 = vst.msk [vmem:[#allocation3 + $0x38] sm:$0xff] %vm727, %v724
      %v736 = vld [vmem:[#allocation2] sm:$0xf]
      %v737 = vld [vmem:[#allocation2 + $0x4] sm:$0x1]
      %v738 = vld [vmem:[#allocation2 + $0x8] sm:$0xf]
      %v739 = vld [vmem:[#allocation2 + $0xc] sm:$0x1]
      %v740 = vld [vmem:[#allocation2 + $0x10] sm:$0xf]
      %v741 = vld [vmem:[#allocation2 + $0x14] sm:$0x1]
      %v742 = vld [vmem:[#allocation2 + $0x18] sm:$0xf]
      %v743 = vld [vmem:[#allocation2 + $0x1c] sm:$0x1]
      %v744 = vld [vmem:[#allocation2 + $0x20] sm:$0xf]
      %v745 = vld [vmem:[#allocation2 + $0x24] sm:$0x1]
      %v746 = vld [vmem:[#allocation2 + $0x28] sm:$0xf]
      %v747 = vld [vmem:[#allocation2 + $0x2c] sm:$0x1]
      %v748 = vld [vmem:[#allocation2 + $0x30] sm:$0xf]
      %v749 = vld [vmem:[#allocation2 + $0x34] sm:$0x1]
      %v750 = vld [vmem:[#allocation2 + $0x38] sm:$0xf]
      %v751 = vld [vmem:[#allocation2 + $0x3c] sm:$0x1]
      %vm752 = vsmask.f32 3328
      %vm753 = vsmask.f32 7440
      %vm754 = vmor %vm752, %vm753
      %v756 = vshrl.u32 %v736, 16
      %v758 = vrot.slane %v756, 4
      %v759 = vshll.u32 %v736, 16
      %v761 = vrot.slane %v759, 5
      %v762 = vor.u32 %v758, %v761
      %v763 = vrot.slane %v762, 4
      %v765 = vshll.u32 %v737, 16
      %v767 = vrot.slane %v765, 5
      %v768 = vsel %vm754, %v763, %v767
      %v770 = vshrl.u32 %v738, 16
      %v772 = vrot.slane %v770, 4
      %v773 = vshll.u32 %v738, 16
      %v775 = vrot.slane %v773, 5
      %v776 = vor.u32 %v772, %v775
      %v777 = vrot.slane %v776, 4
      %v779 = vshll.u32 %v739, 16
      %v781 = vrot.slane %v779, 5
      %v782 = vsel %vm754, %v777, %v781
      %v784 = vshrl.u32 %v740, 16
      %v786 = vrot.slane %v784, 4
      %v787 = vshll.u32 %v740, 16
      %v789 = vrot.slane %v787, 5
      %v790 = vor.u32 %v786, %v789
      %v791 = vrot.slane %v790, 4
      %v793 = vshll.u32 %v741, 16
      %v795 = vrot.slane %v793, 5
      %v796 = vsel %vm754, %v791, %v795
      %v798 = vshrl.u32 %v742, 16
      %v800 = vrot.slane %v798, 4
      %v801 = vshll.u32 %v742, 16
      %v803 = vrot.slane %v801, 5
      %v804 = vor.u32 %v800, %v803
      %v805 = vrot.slane %v804, 4
      %v807 = vshll.u32 %v743, 16
      %v809 = vrot.slane %v807, 5
      %v810 = vsel %vm754, %v805, %v809
      %v812 = vshrl.u32 %v744, 16
      %v814 = vrot.slane %v812, 4
      %v815 = vshll.u32 %v744, 16
      %v817 = vrot.slane %v815, 5
      %v818 = vor.u32 %v814, %v817
      %v819 = vrot.slane %v818, 4
      %v821 = vshll.u32 %v745, 16
      %v823 = vrot.slane %v821, 5
      %v824 = vsel %vm754, %v819, %v823
      %v826 = vshrl.u32 %v746, 16
      %v828 = vrot.slane %v826, 4
      %v829 = vshll.u32 %v746, 16
      %v831 = vrot.slane %v829, 5
      %v832 = vor.u32 %v828, %v831
      %v833 = vrot.slane %v832, 4
      %v835 = vshll.u32 %v747, 16
      %v837 = vrot.slane %v835, 5
      %v838 = vsel %vm754, %v833, %v837
      %v840 = vshrl.u32 %v748, 16
      %v842 = vrot.slane %v840, 4
      %v843 = vshll.u32 %v748, 16
      %v845 = vrot.slane %v843, 5
      %v846 = vor.u32 %v842, %v845
      %v847 = vrot.slane %v846, 4
      %v849 = vshll.u32 %v749, 16
      %v851 = vrot.slane %v849, 5
      %v852 = vsel %vm754, %v847, %v851
      %v854 = vshrl.u32 %v750, 16
      %v856 = vrot.slane %v854, 4
      %v857 = vshll.u32 %v750, 16
      %v859 = vrot.slane %v857, 5
      %v860 = vor.u32 %v856, %v859
      %v861 = vrot.slane %v860, 4
      %v863 = vshll.u32 %v751, 16
      %v865 = vrot.slane %v863, 5
      %v866 = vsel %vm754, %v861, %v865
      %s867 = scalar_lea.vmem %s2, 2
      %v868 = vld [vmem:[%s867] sm:$0x3]
      %v869 = vunpack.c.l.b16 %v768
      %v870 = vunpack.c.l.b16 %v782
      %v871 = vunpack.c.l.b16 %v796
      %v872 = vunpack.c.l.b16 %v810
      %v873 = vunpack.c.l.b16 %v824
      %v874 = vunpack.c.l.b16 %v838
      %v875 = vunpack.c.l.b16 %v852
      %v876 = vunpack.c.l.b16 %v866
      %v877 = vpack.c.b16 %v870, %v869
      %v878 = vpack.c.b16 %v872, %v871
      %v879 = vpack.c.b16 %v874, %v873
      %v880 = vpack.c.b16 %v876, %v875
      %v882 = vsel %vm645, %v877, 0
      %v885 = vsel %vm645, %v878, 0
      %v888 = vsel %vm645, %v879, 0
      %v891 = vsel %vm645, %v880, 0
      %v894 = vsel %vm658, %v868, 0
      %896 = vmatprep.subr.bf16.mxu0 0
      %897 = vmatpush1.bf16.msra.mxu0 0
      %898 = vmatprep.subr.bf16.mxu0 0
      %899 = vmatpush1.bf16.msra.mxu0 0
      %900 = vmatprep.subr.bf16.mxu0 0
      %901 = vmatpush1.bf16.msra.mxu0 0
      %902 = vmatprep.subr.bf16.mxu0 0
      %903 = vmatpush1.bf16.msra.mxu0 0
      %904 = vmatprep.subr.bf16.mxu0 0
      %905 = vmatpush1.bf16.msra.mxu0 0
      %906 = vmatprep.subr.bf16.mxu0 0
      %907 = vmatpush1.bf16.msra.mxu0 0
      %908 = vmatprep.subr.bf16.mxu0 0
      %909 = vmatpush1.bf16.msra.mxu0 0
      %910 = vmatprep.subr.bf16.mxu0 0
      %911 = vmatpush1.bf16.msra.mxu0 %v894
      %912 = vmatprep.subr.bf16.mxu0 0
      %913 = vmatpush2.bf16.msra.mxu0 0
      %914 = vmatprep.subr.bf16.mxu0 0
      %915 = vmatpush2.bf16.msra.mxu0 0
      %916 = vmatprep.subr.bf16.mxu0 0
      %917 = vmatpush2.bf16.msra.mxu0 0
      %918 = vmatprep.subr.bf16.mxu0 0
      %919 = vmatpush2.bf16.msra.mxu0 0
      %920 = vmatprep.subr.bf16.mxu0 0
      %921 = vmatpush2.bf16.msra.mxu0 0
      %922 = vmatprep.subr.bf16.mxu0 0
      %923 = vmatpush2.bf16.msra.mxu0 0
      %924 = vmatprep.subr.bf16.mxu0 0
      %925 = vmatpush2.bf16.msra.mxu0 0
      %926 = vmatprep.subr.bf16.mxu0 0
      %927 = vmatpush2.bf16.msra.mxu0 0
      %928 = vmatprep.mubr.bf16.mxu0 0
      %929 = vmatmul.mubr.bf16.gmra.mxu0 %v882
      %v930 = vpop.f32.mrf.mxu0
      %v931 = vadd.f32 0.0, %v930
      %v932 = vpop.f32.mrf.mxu0
      %v933 = vpop.f32.mrf.mxu0
      %v934 = vadd.f32 0.0, %v933
      %v935 = vpop.f32.mrf.mxu0
      %936 = vmatprep.mubr.bf16.mxu0 0
      %937 = vmatmul.mubr.bf16.gmra.mxu0 %v885
      %v938 = vpop.f32.mrf.mxu0
      %v939 = vadd.f32 0.0, %v938
      %v940 = vpop.f32.mrf.mxu0
      %v941 = vpop.f32.mrf.mxu0
      %v942 = vadd.f32 0.0, %v941
      %v943 = vpop.f32.mrf.mxu0
      %944 = vmatprep.mubr.bf16.mxu0 0
      %945 = vmatmul.mubr.bf16.gmra.mxu0 %v888
      %v946 = vpop.f32.mrf.mxu0
      %v947 = vadd.f32 0.0, %v946
      %v948 = vpop.f32.mrf.mxu0
      %v949 = vpop.f32.mrf.mxu0
      %v950 = vadd.f32 0.0, %v949
      %v951 = vpop.f32.mrf.mxu0
      %952 = vmatprep.mubr.bf16.mxu0 0
      %953 = vmatmul.mubr.bf16.gmra.mxu0 %v891
      %v954 = vpop.f32.mrf.mxu0
      %v955 = vadd.f32 0.0, %v954
      %v956 = vpop.f32.mrf.mxu0
      %v957 = vpop.f32.mrf.mxu0
      %v958 = vadd.f32 0.0, %v957
      %v959 = vpop.f32.mrf.mxu0
      %960 = vdwg.mxu0
      %v961 = vld [vmem:[#allocation3] sm:$0xff]
      %v962 = vld [vmem:[#allocation3 + $0x8] sm:$0xff]
      %v963 = vld [vmem:[#allocation3 + $0x10] sm:$0xff]
      %v964 = vld [vmem:[#allocation3 + $0x18] sm:$0xff]
      %v965 = vld [vmem:[#allocation3 + $0x20] sm:$0xff]
      %v966 = vld [vmem:[#allocation3 + $0x28] sm:$0xff]
      %v967 = vld [vmem:[#allocation3 + $0x30] sm:$0xff]
      %v968 = vld [vmem:[#allocation3 + $0x38] sm:$0xff]
      %v969 = vadd.f32 %v961, %v931
      %v970 = vadd.f32 %v962, %v934
      %v971 = vadd.f32 %v963, %v939
      %v972 = vadd.f32 %v964, %v942
      %v973 = vadd.f32 %v965, %v947
      %v974 = vadd.f32 %v966, %v950
      %v975 = vadd.f32 %v967, %v955
      %v976 = vadd.f32 %v968, %v958
      %977 = vst.msk [vmem:[#allocation3] sm:$0xff] %vm727, %v969
      %978 = vst.msk [vmem:[#allocation3 + $0x8] sm:$0xff] %vm727, %v970
      %979 = vst.msk [vmem:[#allocation3 + $0x10] sm:$0xff] %vm727, %v971
      %980 = vst.msk [vmem:[#allocation3 + $0x18] sm:$0xff] %vm727, %v972
      %981 = vst.msk [vmem:[#allocation3 + $0x20] sm:$0xff] %vm727, %v973
      %982 = vst.msk [vmem:[#allocation3 + $0x28] sm:$0xff] %vm727, %v974
      %983 = vst.msk [vmem:[#allocation3 + $0x30] sm:$0xff] %vm727, %v975
      %984 = vst.msk [vmem:[#allocation3 + $0x38] sm:$0xff] %vm727, %v976
      %v985 = vld [vmem:[#allocation2] sm:$0xe]
      %v986 = vld [vmem:[#allocation2 + $0x4] sm:$0x1]
      %v987 = vld [vmem:[#allocation2 + $0x8] sm:$0xe]
      %v988 = vld [vmem:[#allocation2 + $0xc] sm:$0x1]
      %v989 = vld [vmem:[#allocation2 + $0x10] sm:$0xe]
      %v990 = vld [vmem:[#allocation2 + $0x14] sm:$0x1]
      %v991 = vld [vmem:[#allocation2 + $0x18] sm:$0xe]
      %v992 = vld [vmem:[#allocation2 + $0x1c] sm:$0x1]
      %v993 = vld [vmem:[#allocation2 + $0x20] sm:$0xe]
      %v994 = vld [vmem:[#allocation2 + $0x24] sm:$0x1]
      %v995 = vld [vmem:[#allocation2 + $0x28] sm:$0xe]
      %v996 = vld [vmem:[#allocation2 + $0x2c] sm:$0x1]
      %v997 = vld [vmem:[#allocation2 + $0x30] sm:$0xe]
      %v998 = vld [vmem:[#allocation2 + $0x34] sm:$0x1]
      %v999 = vld [vmem:[#allocation2 + $0x38] sm:$0xe]
      %v1000 = vld [vmem:[#allocation2 + $0x3c] sm:$0x1]
      %vm1017 = vcmask 1042432
      %vm1018 = vcmask 1046532
      %vm1019 = vmor %vm1017, %vm1018
      %v1020 = vrot.slane %v985, 5
      %v1021 = vrot.slane %v1020, 4
      %v1022 = vrot.slane %v986, 5
      %v1023 = vsel %vm1019, %v1021, %v1022
      %v1024 = vrot.slane %v987, 5
      %v1025 = vrot.slane %v1024, 4
      %v1026 = vrot.slane %v988, 5
      %v1027 = vsel %vm1019, %v1025, %v1026
      %v1028 = vrot.slane %v989, 5
      %v1029 = vrot.slane %v1028, 4
      %v1030 = vrot.slane %v990, 5
      %v1031 = vsel %vm1019, %v1029, %v1030
      %v1032 = vrot.slane %v991, 5
      %v1033 = vrot.slane %v1032, 4
      %v1034 = vrot.slane %v992, 5
      %v1035 = vsel %vm1019, %v1033, %v1034
      %v1036 = vrot.slane %v993, 5
      %v1037 = vrot.slane %v1036, 4
      %v1038 = vrot.slane %v994, 5
      %v1039 = vsel %vm1019, %v1037, %v1038
      %v1040 = vrot.slane %v995, 5
      %v1041 = vrot.slane %v1040, 4
      %v1042 = vrot.slane %v996, 5
      %v1043 = vsel %vm1019, %v1041, %v1042
      %v1044 = vrot.slane %v997, 5
      %v1045 = vrot.slane %v1044, 4
      %v1046 = vrot.slane %v998, 5
      %v1047 = vsel %vm1019, %v1045, %v1046
      %v1048 = vrot.slane %v999, 5
      %v1049 = vrot.slane %v1048, 4
      %v1050 = vrot.slane %v1000, 5
      %v1051 = vsel %vm1019, %v1049, %v1050
      %s1052 = scalar_lea.vmem %s2, 4
      %v1053 = vld [vmem:[%s1052] sm:$0x3]
      %v1054 = vunpack.c.l.b16 %v1023
      %v1055 = vunpack.c.l.b16 %v1027
      %v1056 = vunpack.c.l.b16 %v1031
      %v1057 = vunpack.c.l.b16 %v1035
      %v1058 = vunpack.c.l.b16 %v1039
      %v1059 = vunpack.c.l.b16 %v1043
      %v1060 = vunpack.c.l.b16 %v1047
      %v1061 = vunpack.c.l.b16 %v1051
      %v1062 = vpack.c.b16 %v1055, %v1054
      %v1063 = vpack.c.b16 %v1057, %v1056
      %v1064 = vpack.c.b16 %v1059, %v1058
      %v1065 = vpack.c.b16 %v1061, %v1060
      %v1067 = vsel %vm645, %v1062, 0
      %v1070 = vsel %vm645, %v1063, 0
      %v1073 = vsel %vm645, %v1064, 0
      %v1076 = vsel %vm645, %v1065, 0
      %v1079 = vsel %vm658, %v1053, 0
      %1081 = vmatprep.subr.bf16.mxu0 0
      %1082 = vmatpush1.bf16.msra.mxu0 0
      %1083 = vmatprep.subr.bf16.mxu0 0
      %1084 = vmatpush1.bf16.msra.mxu0 0
      %1085 = vmatprep.subr.bf16.mxu0 0
      %1086 = vmatpush1.bf16.msra.mxu0 0
      %1087 = vmatprep.subr.bf16.mxu0 0
      %1088 = vmatpush1.bf16.msra.mxu0 0
      %1089 = vmatprep.subr.bf16.mxu0 0
      %1090 = vmatpush1.bf16.msra.mxu0 0
      %1091 = vmatprep.subr.bf16.mxu0 0
      %1092 = vmatpush1.bf16.msra.mxu0 0
      %1093 = vmatprep.subr.bf16.mxu0 0
      %1094 = vmatpush1.bf16.msra.mxu0 0
      %1095 = vmatprep.subr.bf16.mxu0 0
      %1096 = vmatpush1.bf16.msra.mxu0 %v1079
      %1097 = vmatprep.subr.bf16.mxu0 0
      %1098 = vmatpush2.bf16.msra.mxu0 0
      %1099 = vmatprep.subr.bf16.mxu0 0
      %1100 = vmatpush2.bf16.msra.mxu0 0
      %1101 = vmatprep.subr.bf16.mxu0 0
      %1102 = vmatpush2.bf16.msra.mxu0 0
      %1103 = vmatprep.subr.bf16.mxu0 0
      %1104 = vmatpush2.bf16.msra.mxu0 0
      %1105 = vmatprep.subr.bf16.mxu0 0
      %1106 = vmatpush2.bf16.msra.mxu0 0
      %1107 = vmatprep.subr.bf16.mxu0 0
      %1108 = vmatpush2.bf16.msra.mxu0 0
      %1109 = vmatprep.subr.bf16.mxu0 0
      %1110 = vmatpush2.bf16.msra.mxu0 0
      %1111 = vmatprep.subr.bf16.mxu0 0
      %1112 = vmatpush2.bf16.msra.mxu0 0
      %1113 = vmatprep.mubr.bf16.mxu0 0
      %1114 = vmatmul.mubr.bf16.gmra.mxu0 %v1067
      %v1115 = vpop.f32.mrf.mxu0
      %v1116 = vadd.f32 0.0, %v1115
      %v1117 = vpop.f32.mrf.mxu0
      %v1118 = vpop.f32.mrf.mxu0
      %v1119 = vadd.f32 0.0, %v1118
      %v1120 = vpop.f32.mrf.mxu0
      %1121 = vmatprep.mubr.bf16.mxu0 0
      %1122 = vmatmul.mubr.bf16.gmra.mxu0 %v1070
      %v1123 = vpop.f32.mrf.mxu0
      %v1124 = vadd.f32 0.0, %v1123
      %v1125 = vpop.f32.mrf.mxu0
      %v1126 = vpop.f32.mrf.mxu0
      %v1127 = vadd.f32 0.0, %v1126
      %v1128 = vpop.f32.mrf.mxu0
      %1129 = vmatprep.mubr.bf16.mxu0 0
      %1130 = vmatmul.mubr.bf16.gmra.mxu0 %v1073
      %v1131 = vpop.f32.mrf.mxu0
      %v1132 = vadd.f32 0.0, %v1131
      %v1133 = vpop.f32.mrf.mxu0
      %v1134 = vpop.f32.mrf.mxu0
      %v1135 = vadd.f32 0.0, %v1134
      %v1136 = vpop.f32.mrf.mxu0
      %1137 = vmatprep.mubr.bf16.mxu0 0
      %1138 = vmatmul.mubr.bf16.gmra.mxu0 %v1076
      %v1139 = vpop.f32.mrf.mxu0
      %v1140 = vadd.f32 0.0, %v1139
      %v1141 = vpop.f32.mrf.mxu0
      %v1142 = vpop.f32.mrf.mxu0
      %v1143 = vadd.f32 0.0, %v1142
      %v1144 = vpop.f32.mrf.mxu0
      %1145 = vdwg.mxu0
      %v1146 = vld [vmem:[#allocation3] sm:$0xff]
      %v1147 = vld [vmem:[#allocation3 + $0x8] sm:$0xff]
      %v1148 = vld [vmem:[#allocation3 + $0x10] sm:$0xff]
      %v1149 = vld [vmem:[#allocation3 + $0x18] sm:$0xff]
      %v1150 = vld [vmem:[#allocation3 + $0x20] sm:$0xff]
      %v1151 = vld [vmem:[#allocation3 + $0x28] sm:$0xff]
      %v1152 = vld [vmem:[#allocation3 + $0x30] sm:$0xff]
      %v1153 = vld [vmem:[#allocation3 + $0x38] sm:$0xff]
      %v1154 = vadd.f32 %v1146, %v1116
      %v1155 = vadd.f32 %v1147, %v1119
      %v1156 = vadd.f32 %v1148, %v1124
      %v1157 = vadd.f32 %v1149, %v1127
      %v1158 = vadd.f32 %v1150, %v1132
      %v1159 = vadd.f32 %v1151, %v1135
      %v1160 = vadd.f32 %v1152, %v1140
      %v1161 = vadd.f32 %v1153, %v1143
      %1162 = vst.msk [vmem:[#allocation3] sm:$0xff] %vm727, %v1154
      %1163 = vst.msk [vmem:[#allocation3 + $0x8] sm:$0xff] %vm727, %v1155
      %1164 = vst.msk [vmem:[#allocation3 + $0x10] sm:$0xff] %vm727, %v1156
      %1165 = vst.msk [vmem:[#allocation3 + $0x18] sm:$0xff] %vm727, %v1157
      %1166 = vst.msk [vmem:[#allocation3 + $0x20] sm:$0xff] %vm727, %v1158
      %1167 = vst.msk [vmem:[#allocation3 + $0x28] sm:$0xff] %vm727, %v1159
      %1168 = vst.msk [vmem:[#allocation3 + $0x30] sm:$0xff] %vm727, %v1160
      %1169 = vst.msk [vmem:[#allocation3 + $0x38] sm:$0xff] %vm727, %v1161
      %v1170 = vld [vmem:[%s567] sm:$0xf]
      %v1171 = vld [vmem:[%s567 + $0x8] sm:$0xf]
      %v1172 = vld [vmem:[%s567 + $0x10] sm:$0xf]
      %v1173 = vld [vmem:[%s567 + $0x18] sm:$0xf]
      %v1174 = vld [vmem:[%s567 + $0x20] sm:$0xf]
      %v1175 = vld [vmem:[%s567 + $0x28] sm:$0xf]
      %v1176 = vld [vmem:[%s567 + $0x30] sm:$0xf]
      %v1177 = vld [vmem:[%s567 + $0x38] sm:$0xf]
      %s1178 = scalar_lea.vmem %s2, 6
      %v1179 = vld [vmem:[%s1178] sm:$0x3]
      %v1188 = vunpack.c.l.b16 %v1170
      %v1189 = vunpack.c.l.b16 %v1171
      %v1190 = vunpack.c.l.b16 %v1172
      %v1191 = vunpack.c.l.b16 %v1173
      %v1192 = vunpack.c.l.b16 %v1174
      %v1193 = vunpack.c.l.b16 %v1175
      %v1194 = vunpack.c.l.b16 %v1176
      %v1195 = vunpack.c.l.b16 %v1177
      %v1196 = vpack.c.b16 %v1189, %v1188
      %v1197 = vpack.c.b16 %v1191, %v1190
      %v1198 = vpack.c.b16 %v1193, %v1192
      %v1199 = vpack.c.b16 %v1195, %v1194
      %v1201 = vsel %vm645, %v1196, 0
      %v1204 = vsel %vm645, %v1197, 0
      %v1207 = vsel %vm645, %v1198, 0
      %v1210 = vsel %vm645, %v1199, 0
      %v1213 = vsel %vm658, %v1179, 0
      %1215 = vmatprep.subr.bf16.mxu0 0
      %1216 = vmatpush1.bf16.msra.mxu0 0
      %1217 = vmatprep.subr.bf16.mxu0 0
      %1218 = vmatpush1.bf16.msra.mxu0 0
      %1219 = vmatprep.subr.bf16.mxu0 0
      %1220 = vmatpush1.bf16.msra.mxu0 0
      %1221 = vmatprep.subr.bf16.mxu0 0
      %1222 = vmatpush1.bf16.msra.mxu0 0
      %1223 = vmatprep.subr.bf16.mxu0 0
      %1224 = vmatpush1.bf16.msra.mxu0 0
      %1225 = vmatprep.subr.bf16.mxu0 0
      %1226 = vmatpush1.bf16.msra.mxu0 0
      %1227 = vmatprep.subr.bf16.mxu0 0
      %1228 = vmatpush1.bf16.msra.mxu0 0
      %1229 = vmatprep.subr.bf16.mxu0 0
      %1230 = vmatpush1.bf16.msra.mxu0 %v1213
      %1231 = vmatprep.subr.bf16.mxu0 0
      %1232 = vmatpush2.bf16.msra.mxu0 0
      %1233 = vmatprep.subr.bf16.mxu0 0
      %1234 = vmatpush2.bf16.msra.mxu0 0
      %1235 = vmatprep.subr.bf16.mxu0 0
      %1236 = vmatpush2.bf16.msra.mxu0 0
      %1237 = vmatprep.subr.bf16.mxu0 0
      %1238 = vmatpush2.bf16.msra.mxu0 0
      %1239 = vmatprep.subr.bf16.mxu0 0
      %1240 = vmatpush2.bf16.msra.mxu0 0
      %1241 = vmatprep.subr.bf16.mxu0 0
      %1242 = vmatpush2.bf16.msra.mxu0 0
      %1243 = vmatprep.subr.bf16.mxu0 0
      %1244 = vmatpush2.bf16.msra.mxu0 0
      %1245 = vmatprep.subr.bf16.mxu0 0
      %1246 = vmatpush2.bf16.msra.mxu0 0
      %1247 = vmatprep.mubr.bf16.mxu0 0
      %1248 = vmatmul.mubr.bf16.gmra.mxu0 %v1201
      %v1249 = vpop.f32.mrf.mxu0
      %v1250 = vadd.f32 0.0, %v1249
      %v1251 = vpop.f32.mrf.mxu0
      %v1252 = vpop.f32.mrf.mxu0
      %v1253 = vadd.f32 0.0, %v1252
      %v1254 = vpop.f32.mrf.mxu0
      %1255 = vmatprep.mubr.bf16.mxu0 0
      %1256 = vmatmul.mubr.bf16.gmra.mxu0 %v1204
      %v1257 = vpop.f32.mrf.mxu0
      %v1258 = vadd.f32 0.0, %v1257
      %v1259 = vpop.f32.mrf.mxu0
      %v1260 = vpop.f32.mrf.mxu0
      %v1261 = vadd.f32 0.0, %v1260
      %v1262 = vpop.f32.mrf.mxu0
      %1263 = vmatprep.mubr.bf16.mxu0 0
      %1264 = vmatmul.mubr.bf16.gmra.mxu0 %v1207
      %v1265 = vpop.f32.mrf.mxu0
      %v1266 = vadd.f32 0.0, %v1265
      %v1267 = vpop.f32.mrf.mxu0
      %v1268 = vpop.f32.mrf.mxu0
      %v1269 = vadd.f32 0.0, %v1268
      %v1270 = vpop.f32.mrf.mxu0
      %1271 = vmatprep.mubr.bf16.mxu0 0
      %1272 = vmatmul.mubr.bf16.gmra.mxu0 %v1210
      %v1273 = vpop.f32.mrf.mxu0
      %v1274 = vadd.f32 0.0, %v1273
      %v1275 = vpop.f32.mrf.mxu0
      %v1276 = vpop.f32.mrf.mxu0
      %v1277 = vadd.f32 0.0, %v1276
      %v1278 = vpop.f32.mrf.mxu0
      %1279 = vdwg.mxu0
      %v1280 = vld [vmem:[#allocation3] sm:$0xff]
      %v1281 = vld [vmem:[#allocation3 + $0x8] sm:$0xff]
      %v1282 = vld [vmem:[#allocation3 + $0x10] sm:$0xff]
      %v1283 = vld [vmem:[#allocation3 + $0x18] sm:$0xff]
      %v1284 = vld [vmem:[#allocation3 + $0x20] sm:$0xff]
      %v1285 = vld [vmem:[#allocation3 + $0x28] sm:$0xff]
      %v1286 = vld [vmem:[#allocation3 + $0x30] sm:$0xff]
      %v1287 = vld [vmem:[#allocation3 + $0x38] sm:$0xff]
      %v1288 = vadd.f32 %v1280, %v1250
      %v1289 = vadd.f32 %v1281, %v1253
      %v1290 = vadd.f32 %v1282, %v1258
      %v1291 = vadd.f32 %v1283, %v1261
      %v1292 = vadd.f32 %v1284, %v1266
      %v1293 = vadd.f32 %v1285, %v1269
      %v1294 = vadd.f32 %v1286, %v1274
      %v1295 = vadd.f32 %v1287, %v1277
      %1296 = vst.msk [vmem:[#allocation3] sm:$0xff] %vm727, %v1288
      %1297 = vst.msk [vmem:[#allocation3 + $0x8] sm:$0xff] %vm727, %v1289
      %1298 = vst.msk [vmem:[#allocation3 + $0x10] sm:$0xff] %vm727, %v1290
      %1299 = vst.msk [vmem:[#allocation3 + $0x18] sm:$0xff] %vm727, %v1291
      %1300 = vst.msk [vmem:[#allocation3 + $0x20] sm:$0xff] %vm727, %v1292
      %1301 = vst.msk [vmem:[#allocation3 + $0x28] sm:$0xff] %vm727, %v1293
      %1302 = vst.msk [vmem:[#allocation3 + $0x30] sm:$0xff] %vm727, %v1294
      %1303 = vst.msk [vmem:[#allocation3 + $0x38] sm:$0xff] %vm727, %v1295
      %v1304 = vld [vmem:[%s567] sm:$0xf]
      %v1305 = vld [vmem:[%s567 + $0x4] sm:$0x1]
      %v1306 = vld [vmem:[%s567 + $0x8] sm:$0xf]
      %v1307 = vld [vmem:[%s567 + $0xc] sm:$0x1]
      %v1308 = vld [vmem:[%s567 + $0x10] sm:$0xf]
      %v1309 = vld [vmem:[%s567 + $0x14] sm:$0x1]
      %v1310 = vld [vmem:[%s567 + $0x18] sm:$0xf]
      %v1311 = vld [vmem:[%s567 + $0x1c] sm:$0x1]
      %v1312 = vld [vmem:[%s567 + $0x20] sm:$0xf]
      %v1313 = vld [vmem:[%s567 + $0x24] sm:$0x1]
      %v1314 = vld [vmem:[%s567 + $0x28] sm:$0xf]
      %v1315 = vld [vmem:[%s567 + $0x2c] sm:$0x1]
      %v1316 = vld [vmem:[%s567 + $0x30] sm:$0xf]
      %v1317 = vld [vmem:[%s567 + $0x34] sm:$0x1]
      %v1318 = vld [vmem:[%s567 + $0x38] sm:$0xf]
      %v1319 = vld [vmem:[%s567 + $0x3c] sm:$0x1]
      %v1321 = vshrl.u32 %v1304, 16
      %v1323 = vrot.slane %v1321, 4
      %v1324 = vshll.u32 %v1304, 16
      %v1326 = vrot.slane %v1324, 5
      %v1327 = vor.u32 %v1323, %v1326
      %v1328 = vrot.slane %v1327, 4
      %v1330 = vshll.u32 %v1305, 16
      %v1332 = vrot.slane %v1330, 5
      %v1333 = vsel %vm754, %v1328, %v1332
      %v1335 = vshrl.u32 %v1306, 16
      %v1337 = vrot.slane %v1335, 4
      %v1338 = vshll.u32 %v1306, 16
      %v1340 = vrot.slane %v1338, 5
      %v1341 = vor.u32 %v1337, %v1340
      %v1342 = vrot.slane %v1341, 4
      %v1344 = vshll.u32 %v1307, 16
      %v1346 = vrot.slane %v1344, 5
      %v1347 = vsel %vm754, %v1342, %v1346
      %v1349 = vshrl.u32 %v1308, 16
      %v1351 = vrot.slane %v1349, 4
      %v1352 = vshll.u32 %v1308, 16
      %v1354 = vrot.slane %v1352, 5
      %v1355 = vor.u32 %v1351, %v1354
      %v1356 = vrot.slane %v1355, 4
      %v1358 = vshll.u32 %v1309, 16
      %v1360 = vrot.slane %v1358, 5
      %v1361 = vsel %vm754, %v1356, %v1360
      %v1363 = vshrl.u32 %v1310, 16
      %v1365 = vrot.slane %v1363, 4
      %v1366 = vshll.u32 %v1310, 16
      %v1368 = vrot.slane %v1366, 5
      %v1369 = vor.u32 %v1365, %v1368
      %v1370 = vrot.slane %v1369, 4
      %v1372 = vshll.u32 %v1311, 16
      %v1374 = vrot.slane %v1372, 5
      %v1375 = vsel %vm754, %v1370, %v1374
      %v1377 = vshrl.u32 %v1312, 16
      %v1379 = vrot.slane %v1377, 4
      %v1380 = vshll.u32 %v1312, 16
      %v1382 = vrot.slane %v1380, 5
      %v1383 = vor.u32 %v1379, %v1382
      %v1384 = vrot.slane %v1383, 4
      %v1386 = vshll.u32 %v1313, 16
      %v1388 = vrot.slane %v1386, 5
      %v1389 = vsel %vm754, %v1384, %v1388
      %v1391 = vshrl.u32 %v1314, 16
      %v1393 = vrot.slane %v1391, 4
      %v1394 = vshll.u32 %v1314, 16
      %v1396 = vrot.slane %v1394, 5
      %v1397 = vor.u32 %v1393, %v1396
      %v1398 = vrot.slane %v1397, 4
      %v1400 = vshll.u32 %v1315, 16
      %v1402 = vrot.slane %v1400, 5
      %v1403 = vsel %vm754, %v1398, %v1402
      %v1405 = vshrl.u32 %v1316, 16
      %v1407 = vrot.slane %v1405, 4
      %v1408 = vshll.u32 %v1316, 16
      %v1410 = vrot.slane %v1408, 5
      %v1411 = vor.u32 %v1407, %v1410
      %v1412 = vrot.slane %v1411, 4
      %v1414 = vshll.u32 %v1317, 16
      %v1416 = vrot.slane %v1414, 5
      %v1417 = vsel %vm754, %v1412, %v1416
      %v1419 = vshrl.u32 %v1318, 16
      %v1421 = vrot.slane %v1419, 4
      %v1422 = vshll.u32 %v1318, 16
      %v1424 = vrot.slane %v1422, 5
      %v1425 = vor.u32 %v1421, %v1424
      %v1426 = vrot.slane %v1425, 4
      %v1428 = vshll.u32 %v1319, 16
      %v1430 = vrot.slane %v1428, 5
      %v1431 = vsel %vm754, %v1426, %v1430
      %s1432 = scalar_lea.vmem %s2, 8
      %v1433 = vld [vmem:[%s1432] sm:$0x3]
      %v1434 = vunpack.c.l.b16 %v1333
      %v1435 = vunpack.c.l.b16 %v1347
      %v1436 = vunpack.c.l.b16 %v1361
      %v1437 = vunpack.c.l.b16 %v1375
      %v1438 = vunpack.c.l.b16 %v1389
      %v1439 = vunpack.c.l.b16 %v1403
      %v1440 = vunpack.c.l.b16 %v1417
      %v1441 = vunpack.c.l.b16 %v1431
      %v1442 = vpack.c.b16 %v1435, %v1434
      %v1443 = vpack.c.b16 %v1437, %v1436
      %v1444 = vpack.c.b16 %v1439, %v1438
      %v1445 = vpack.c.b16 %v1441, %v1440
      %v1447 = vsel %vm645, %v1442, 0
      %v1450 = vsel %vm645, %v1443, 0
      %v1453 = vsel %vm645, %v1444, 0
      %v1456 = vsel %vm645, %v1445, 0
      %v1459 = vsel %vm658, %v1433, 0
      %1461 = vmatprep.subr.bf16.mxu0 0
      %1462 = vmatpush1.bf16.msra.mxu0 0
      %1463 = vmatprep.subr.bf16.mxu0 0
      %1464 = vmatpush1.bf16.msra.mxu0 0
      %1465 = vmatprep.subr.bf16.mxu0 0
      %1466 = vmatpush1.bf16.msra.mxu0 0
      %1467 = vmatprep.subr.bf16.mxu0 0
      %1468 = vmatpush1.bf16.msra.mxu0 0
      %1469 = vmatprep.subr.bf16.mxu0 0
      %1470 = vmatpush1.bf16.msra.mxu0 0
      %1471 = vmatprep.subr.bf16.mxu0 0
      %1472 = vmatpush1.bf16.msra.mxu0 0
      %1473 = vmatprep.subr.bf16.mxu0 0
      %1474 = vmatpush1.bf16.msra.mxu0 0
      %1475 = vmatprep.subr.bf16.mxu0 0
      %1476 = vmatpush1.bf16.msra.mxu0 %v1459
      %1477 = vmatprep.subr.bf16.mxu0 0
      %1478 = vmatpush2.bf16.msra.mxu0 0
      %1479 = vmatprep.subr.bf16.mxu0 0
      %1480 = vmatpush2.bf16.msra.mxu0 0
      %1481 = vmatprep.subr.bf16.mxu0 0
      %1482 = vmatpush2.bf16.msra.mxu0 0
      %1483 = vmatprep.subr.bf16.mxu0 0
      %1484 = vmatpush2.bf16.msra.mxu0 0
      %1485 = vmatprep.subr.bf16.mxu0 0
      %1486 = vmatpush2.bf16.msra.mxu0 0
      %1487 = vmatprep.subr.bf16.mxu0 0
      %1488 = vmatpush2.bf16.msra.mxu0 0
      %1489 = vmatprep.subr.bf16.mxu0 0
      %1490 = vmatpush2.bf16.msra.mxu0 0
      %1491 = vmatprep.subr.bf16.mxu0 0
      %1492 = vmatpush2.bf16.msra.mxu0 0
      %1493 = vmatprep.mubr.bf16.mxu0 0
      %1494 = vmatmul.mubr.bf16.gmra.mxu0 %v1447
      %v1495 = vpop.f32.mrf.mxu0
      %v1496 = vadd.f32 0.0, %v1495
      %v1497 = vpop.f32.mrf.mxu0
      %v1498 = vpop.f32.mrf.mxu0
      %v1499 = vadd.f32 0.0, %v1498
      %v1500 = vpop.f32.mrf.mxu0
      %1501 = vmatprep.mubr.bf16.mxu0 0
      %1502 = vmatmul.mubr.bf16.gmra.mxu0 %v1450
      %v1503 = vpop.f32.mrf.mxu0
      %v1504 = vadd.f32 0.0, %v1503
      %v1505 = vpop.f32.mrf.mxu0
      %v1506 = vpop.f32.mrf.mxu0
      %v1507 = vadd.f32 0.0, %v1506
      %v1508 = vpop.f32.mrf.mxu0
      %1509 = vmatprep.mubr.bf16.mxu0 0
      %1510 = vmatmul.mubr.bf16.gmra.mxu0 %v1453
      %v1511 = vpop.f32.mrf.mxu0
      %v1512 = vadd.f32 0.0, %v1511
      %v1513 = vpop.f32.mrf.mxu0
      %v1514 = vpop.f32.mrf.mxu0
      %v1515 = vadd.f32 0.0, %v1514
      %v1516 = vpop.f32.mrf.mxu0
      %1517 = vmatprep.mubr.bf16.mxu0 0
      %1518 = vmatmul.mubr.bf16.gmra.mxu0 %v1456
      %v1519 = vpop.f32.mrf.mxu0
      %v1520 = vadd.f32 0.0, %v1519
      %v1521 = vpop.f32.mrf.mxu0
      %v1522 = vpop.f32.mrf.mxu0
      %v1523 = vadd.f32 0.0, %v1522
      %v1524 = vpop.f32.mrf.mxu0
      %1525 = vdwg.mxu0
      %v1526 = vld [vmem:[#allocation3] sm:$0xff]
      %v1527 = vld [vmem:[#allocation3 + $0x8] sm:$0xff]
      %v1528 = vld [vmem:[#allocation3 + $0x10] sm:$0xff]
      %v1529 = vld [vmem:[#allocation3 + $0x18] sm:$0xff]
      %v1530 = vld [vmem:[#allocation3 + $0x20] sm:$0xff]
      %v1531 = vld [vmem:[#allocation3 + $0x28] sm:$0xff]
      %v1532 = vld [vmem:[#allocation3 + $0x30] sm:$0xff]
      %v1533 = vld [vmem:[#allocation3 + $0x38] sm:$0xff]
      %v1534 = vadd.f32 %v1526, %v1496
      %v1535 = vadd.f32 %v1527, %v1499
      %v1536 = vadd.f32 %v1528, %v1504
      %v1537 = vadd.f32 %v1529, %v1507
      %v1538 = vadd.f32 %v1530, %v1512
      %v1539 = vadd.f32 %v1531, %v1515
      %v1540 = vadd.f32 %v1532, %v1520
      %v1541 = vadd.f32 %v1533, %v1523
      %1542 = vst.msk [vmem:[#allocation3] sm:$0xff] %vm727, %v1534
      %1543 = vst.msk [vmem:[#allocation3 + $0x8] sm:$0xff] %vm727, %v1535
      %1544 = vst.msk [vmem:[#allocation3 + $0x10] sm:$0xff] %vm727, %v1536
      %1545 = vst.msk [vmem:[#allocation3 + $0x18] sm:$0xff] %vm727, %v1537
      %1546 = vst.msk [vmem:[#allocation3 + $0x20] sm:$0xff] %vm727, %v1538
      %1547 = vst.msk [vmem:[#allocation3 + $0x28] sm:$0xff] %vm727, %v1539
      %1548 = vst.msk [vmem:[#allocation3 + $0x30] sm:$0xff] %vm727, %v1540
      %1549 = vst.msk [vmem:[#allocation3 + $0x38] sm:$0xff] %vm727, %v1541
      %v1550 = vld [vmem:[%s567] sm:$0xe]
      %v1551 = vld [vmem:[%s567 + $0x4] sm:$0x1]
      %v1552 = vld [vmem:[%s567 + $0x8] sm:$0xe]
      %v1553 = vld [vmem:[%s567 + $0xc] sm:$0x1]
      %v1554 = vld [vmem:[%s567 + $0x10] sm:$0xe]
      %v1555 = vld [vmem:[%s567 + $0x14] sm:$0x1]
      %v1556 = vld [vmem:[%s567 + $0x18] sm:$0xe]
      %v1557 = vld [vmem:[%s567 + $0x1c] sm:$0x1]
      %v1558 = vld [vmem:[%s567 + $0x20] sm:$0xe]
      %v1559 = vld [vmem:[%s567 + $0x24] sm:$0x1]
      %v1560 = vld [vmem:[%s567 + $0x28] sm:$0xe]
      %v1561 = vld [vmem:[%s567 + $0x2c] sm:$0x1]
      %v1562 = vld [vmem:[%s567 + $0x30] sm:$0xe]
      %v1563 = vld [vmem:[%s567 + $0x34] sm:$0x1]
      %v1564 = vld [vmem:[%s567 + $0x38] sm:$0xe]
      %v1565 = vld [vmem:[%s567 + $0x3c] sm:$0x1]
      %v1582 = vrot.slane %v1550, 5
      %v1583 = vrot.slane %v1582, 4
      %v1584 = vrot.slane %v1551, 5
      %v1585 = vsel %vm1019, %v1583, %v1584
      %v1586 = vrot.slane %v1552, 5
      %v1587 = vrot.slane %v1586, 4
      %v1588 = vrot.slane %v1553, 5
      %v1589 = vsel %vm1019, %v1587, %v1588
      %v1590 = vrot.slane %v1554, 5
      %v1591 = vrot.slane %v1590, 4
      %v1592 = vrot.slane %v1555, 5
      %v1593 = vsel %vm1019, %v1591, %v1592
      %v1594 = vrot.slane %v1556, 5
      %v1595 = vrot.slane %v1594, 4
      %v1596 = vrot.slane %v1557, 5
      %v1597 = vsel %vm1019, %v1595, %v1596
      %v1598 = vrot.slane %v1558, 5
      %v1599 = vrot.slane %v1598, 4
      %v1600 = vrot.slane %v1559, 5
      %v1601 = vsel %vm1019, %v1599, %v1600
      %v1602 = vrot.slane %v1560, 5
      %v1603 = vrot.slane %v1602, 4
      %v1604 = vrot.slane %v1561, 5
      %v1605 = vsel %vm1019, %v1603, %v1604
      %v1606 = vrot.slane %v1562, 5
      %v1607 = vrot.slane %v1606, 4
      %v1608 = vrot.slane %v1563, 5
      %v1609 = vsel %vm1019, %v1607, %v1608
      %v1610 = vrot.slane %v1564, 5
      %v1611 = vrot.slane %v1610, 4
      %v1612 = vrot.slane %v1565, 5
      %v1613 = vsel %vm1019, %v1611, %v1612
      %s1614 = scalar_lea.vmem %s2, 10
      %v1615 = vld [vmem:[%s1614] sm:$0x3]
      %v1616 = vunpack.c.l.b16 %v1585
      %v1617 = vunpack.c.l.b16 %v1589
      %v1618 = vunpack.c.l.b16 %v1593
      %v1619 = vunpack.c.l.b16 %v1597
      %v1620 = vunpack.c.l.b16 %v1601
      %v1621 = vunpack.c.l.b16 %v1605
      %v1622 = vunpack.c.l.b16 %v1609
      %v1623 = vunpack.c.l.b16 %v1613
      %v1624 = vpack.c.b16 %v1617, %v1616
      %v1625 = vpack.c.b16 %v1619, %v1618
      %v1626 = vpack.c.b16 %v1621, %v1620
      %v1627 = vpack.c.b16 %v1623, %v1622
      %v1629 = vsel %vm645, %v1624, 0
      %v1632 = vsel %vm645, %v1625, 0
      %v1635 = vsel %vm645, %v1626, 0
      %v1638 = vsel %vm645, %v1627, 0
      %v1641 = vsel %vm658, %v1615, 0
      %1643 = vmatprep.subr.bf16.mxu0 0
      %1644 = vmatpush1.bf16.msra.mxu0 0
      %1645 = vmatprep.subr.bf16.mxu0 0
      %1646 = vmatpush1.bf16.msra.mxu0 0
      %1647 = vmatprep.subr.bf16.mxu0 0
      %1648 = vmatpush1.bf16.msra.mxu0 0
      %1649 = vmatprep.subr.bf16.mxu0 0
      %1650 = vmatpush1.bf16.msra.mxu0 0
      %1651 = vmatprep.subr.bf16.mxu0 0
      %1652 = vmatpush1.bf16.msra.mxu0 0
      %1653 = vmatprep.subr.bf16.mxu0 0
      %1654 = vmatpush1.bf16.msra.mxu0 0
      %1655 = vmatprep.subr.bf16.mxu0 0
      %1656 = vmatpush1.bf16.msra.mxu0 0
      %1657 = vmatprep.subr.bf16.mxu0 0
      %1658 = vmatpush1.bf16.msra.mxu0 %v1641
      %1659 = vmatprep.subr.bf16.mxu0 0
      %1660 = vmatpush2.bf16.msra.mxu0 0
      %1661 = vmatprep.subr.bf16.mxu0 0
      %1662 = vmatpush2.bf16.msra.mxu0 0
      %1663 = vmatprep.subr.bf16.mxu0 0
      %1664 = vmatpush2.bf16.msra.mxu0 0
      %1665 = vmatprep.subr.bf16.mxu0 0
      %1666 = vmatpush2.bf16.msra.mxu0 0
      %1667 = vmatprep.subr.bf16.mxu0 0
      %1668 = vmatpush2.bf16.msra.mxu0 0
      %1669 = vmatprep.subr.bf16.mxu0 0
      %1670 = vmatpush2.bf16.msra.mxu0 0
      %1671 = vmatprep.subr.bf16.mxu0 0
      %1672 = vmatpush2.bf16.msra.mxu0 0
      %1673 = vmatprep.subr.bf16.mxu0 0
      %1674 = vmatpush2.bf16.msra.mxu0 0
      %1675 = vmatprep.mubr.bf16.mxu0 0
      %1676 = vmatmul.mubr.bf16.gmra.mxu0 %v1629
      %v1677 = vpop.f32.mrf.mxu0
      %v1678 = vadd.f32 0.0, %v1677
      %v1679 = vpop.f32.mrf.mxu0
      %v1680 = vpop.f32.mrf.mxu0
      %v1681 = vadd.f32 0.0, %v1680
      %v1682 = vpop.f32.mrf.mxu0
      %1683 = vmatprep.mubr.bf16.mxu0 0
      %1684 = vmatmul.mubr.bf16.gmra.mxu0 %v1632
      %v1685 = vpop.f32.mrf.mxu0
      %v1686 = vadd.f32 0.0, %v1685
      %v1687 = vpop.f32.mrf.mxu0
      %v1688 = vpop.f32.mrf.mxu0
      %v1689 = vadd.f32 0.0, %v1688
      %v1690 = vpop.f32.mrf.mxu0
      %1691 = vmatprep.mubr.bf16.mxu0 0
      %1692 = vmatmul.mubr.bf16.gmra.mxu0 %v1635
      %v1693 = vpop.f32.mrf.mxu0
      %v1694 = vadd.f32 0.0, %v1693
      %v1695 = vpop.f32.mrf.mxu0
      %v1696 = vpop.f32.mrf.mxu0
      %v1697 = vadd.f32 0.0, %v1696
      %v1698 = vpop.f32.mrf.mxu0
      %1699 = vmatprep.mubr.bf16.mxu0 0
      %1700 = vmatmul.mubr.bf16.gmra.mxu0 %v1638
      %v1701 = vpop.f32.mrf.mxu0
      %v1702 = vadd.f32 0.0, %v1701
      %v1703 = vpop.f32.mrf.mxu0
      %v1704 = vpop.f32.mrf.mxu0
      %v1705 = vadd.f32 0.0, %v1704
      %v1706 = vpop.f32.mrf.mxu0
      %1707 = vdwg.mxu0
      %v1708 = vld [vmem:[#allocation3] sm:$0xff]
      %v1709 = vld [vmem:[#allocation3 + $0x8] sm:$0xff]
      %v1710 = vld [vmem:[#allocation3 + $0x10] sm:$0xff]
      %v1711 = vld [vmem:[#allocation3 + $0x18] sm:$0xff]
      %v1712 = vld [vmem:[#allocation3 + $0x20] sm:$0xff]
      %v1713 = vld [vmem:[#allocation3 + $0x28] sm:$0xff]
      %v1714 = vld [vmem:[#allocation3 + $0x30] sm:$0xff]
      %v1715 = vld [vmem:[#allocation3 + $0x38] sm:$0xff]
      %v1716 = vadd.f32 %v1708, %v1678
      %v1717 = vadd.f32 %v1709, %v1681
      %v1718 = vadd.f32 %v1710, %v1686
      %v1719 = vadd.f32 %v1711, %v1689
      %v1720 = vadd.f32 %v1712, %v1694
      %v1721 = vadd.f32 %v1713, %v1697
      %v1722 = vadd.f32 %v1714, %v1702
      %v1723 = vadd.f32 %v1715, %v1705
      %1724 = vst.msk [vmem:[#allocation3] sm:$0xff] %vm727, %v1716
      %1725 = vst.msk [vmem:[#allocation3 + $0x8] sm:$0xff] %vm727, %v1717
      %1726 = vst.msk [vmem:[#allocation3 + $0x10] sm:$0xff] %vm727, %v1718
      %1727 = vst.msk [vmem:[#allocation3 + $0x18] sm:$0xff] %vm727, %v1719
      %1728 = vst.msk [vmem:[#allocation3 + $0x20] sm:$0xff] %vm727, %v1720
      %1729 = vst.msk [vmem:[#allocation3 + $0x28] sm:$0xff] %vm727, %v1721
      %1730 = vst.msk [vmem:[#allocation3 + $0x30] sm:$0xff] %vm727, %v1722
      %1731 = vst.msk [vmem:[#allocation3 + $0x38] sm:$0xff] %vm727, %v1723
      %s1732 = scalar_lea.vmem [#allocation2], 16
      %v1733 = vld [vmem:[%s1732] sm:$0xf]
      %v1734 = vld [vmem:[%s1732 + $0x8] sm:$0xf]
      %v1735 = vld [vmem:[%s1732 + $0x10] sm:$0xf]
      %v1736 = vld [vmem:[%s1732 + $0x18] sm:$0xf]
      %v1737 = vld [vmem:[%s1732 + $0x20] sm:$0xf]
      %v1738 = vld [vmem:[%s1732 + $0x28] sm:$0xf]
      %v1739 = vld [vmem:[%s1732 + $0x30] sm:$0xf]
      %v1740 = vld [vmem:[%s1732 + $0x38] sm:$0xf]
      %s1741 = scalar_lea.vmem %s2, 12
      %v1742 = vld [vmem:[%s1741] sm:$0x3]
      %v1751 = vunpack.c.l.b16 %v1733
      %v1752 = vunpack.c.l.b16 %v1734
      %v1753 = vunpack.c.l.b16 %v1735
      %v1754 = vunpack.c.l.b16 %v1736
      %v1755 = vunpack.c.l.b16 %v1737
      %v1756 = vunpack.c.l.b16 %v1738
      %v1757 = vunpack.c.l.b16 %v1739
      %v1758 = vunpack.c.l.b16 %v1740
      %v1759 = vpack.c.b16 %v1752, %v1751
      %v1760 = vpack.c.b16 %v1754, %v1753
      %v1761 = vpack.c.b16 %v1756, %v1755
      %v1762 = vpack.c.b16 %v1758, %v1757
      %v1764 = vsel %vm645, %v1759, 0
      %v1767 = vsel %vm645, %v1760, 0
      %v1770 = vsel %vm645, %v1761, 0
      %v1773 = vsel %vm645, %v1762, 0
      %v1776 = vsel %vm658, %v1742, 0
      %1778 = vmatprep.subr.bf16.mxu0 0
      %1779 = vmatpush1.bf16.msra.mxu0 0
      %1780 = vmatprep.subr.bf16.mxu0 0
      %1781 = vmatpush1.bf16.msra.mxu0 0
      %1782 = vmatprep.subr.bf16.mxu0 0
      %1783 = vmatpush1.bf16.msra.mxu0 0
      %1784 = vmatprep.subr.bf16.mxu0 0
      %1785 = vmatpush1.bf16.msra.mxu0 0
      %1786 = vmatprep.subr.bf16.mxu0 0
      %1787 = vmatpush1.bf16.msra.mxu0 0
      %1788 = vmatprep.subr.bf16.mxu0 0
      %1789 = vmatpush1.bf16.msra.mxu0 0
      %1790 = vmatprep.subr.bf16.mxu0 0
      %1791 = vmatpush1.bf16.msra.mxu0 0
      %1792 = vmatprep.subr.bf16.mxu0 0
      %1793 = vmatpush1.bf16.msra.mxu0 %v1776
      %1794 = vmatprep.subr.bf16.mxu0 0
      %1795 = vmatpush2.bf16.msra.mxu0 0
      %1796 = vmatprep.subr.bf16.mxu0 0
      %1797 = vmatpush2.bf16.msra.mxu0 0
      %1798 = vmatprep.subr.bf16.mxu0 0
      %1799 = vmatpush2.bf16.msra.mxu0 0
      %1800 = vmatprep.subr.bf16.mxu0 0
      %1801 = vmatpush2.bf16.msra.mxu0 0
      %1802 = vmatprep.subr.bf16.mxu0 0
      %1803 = vmatpush2.bf16.msra.mxu0 0
      %1804 = vmatprep.subr.bf16.mxu0 0
      %1805 = vmatpush2.bf16.msra.mxu0 0
      %1806 = vmatprep.subr.bf16.mxu0 0
      %1807 = vmatpush2.bf16.msra.mxu0 0
      %1808 = vmatprep.subr.bf16.mxu0 0
      %1809 = vmatpush2.bf16.msra.mxu0 0
      %1810 = vmatprep.mubr.bf16.mxu0 0
      %1811 = vmatmul.mubr.bf16.gmra.mxu0 %v1764
      %v1812 = vpop.f32.mrf.mxu0
      %v1813 = vadd.f32 0.0, %v1812
      %v1814 = vpop.f32.mrf.mxu0
      %v1815 = vpop.f32.mrf.mxu0
      %v1816 = vadd.f32 0.0, %v1815
      %v1817 = vpop.f32.mrf.mxu0
      %1818 = vmatprep.mubr.bf16.mxu0 0
      %1819 = vmatmul.mubr.bf16.gmra.mxu0 %v1767
      %v1820 = vpop.f32.mrf.mxu0
      %v1821 = vadd.f32 0.0, %v1820
      %v1822 = vpop.f32.mrf.mxu0
      %v1823 = vpop.f32.mrf.mxu0
      %v1824 = vadd.f32 0.0, %v1823
      %v1825 = vpop.f32.mrf.mxu0
      %1826 = vmatprep.mubr.bf16.mxu0 0
      %1827 = vmatmul.mubr.bf16.gmra.mxu0 %v1770
      %v1828 = vpop.f32.mrf.mxu0
      %v1829 = vadd.f32 0.0, %v1828
      %v1830 = vpop.f32.mrf.mxu0
      %v1831 = vpop.f32.mrf.mxu0
      %v1832 = vadd.f32 0.0, %v1831
      %v1833 = vpop.f32.mrf.mxu0
      %1834 = vmatprep.mubr.bf16.mxu0 0
      %1835 = vmatmul.mubr.bf16.gmra.mxu0 %v1773
      %v1836 = vpop.f32.mrf.mxu0
      %v1837 = vadd.f32 0.0, %v1836
      %v1838 = vpop.f32.mrf.mxu0
      %v1839 = vpop.f32.mrf.mxu0
      %v1840 = vadd.f32 0.0, %v1839
      %v1841 = vpop.f32.mrf.mxu0
      %1842 = vdwg.mxu0
      %v1843 = vld [vmem:[#allocation3] sm:$0xff]
      %v1844 = vld [vmem:[#allocation3 + $0x8] sm:$0xff]
      %v1845 = vld [vmem:[#allocation3 + $0x10] sm:$0xff]
      %v1846 = vld [vmem:[#allocation3 + $0x18] sm:$0xff]
      %v1847 = vld [vmem:[#allocation3 + $0x20] sm:$0xff]
      %v1848 = vld [vmem:[#allocation3 + $0x28] sm:$0xff]
      %v1849 = vld [vmem:[#allocation3 + $0x30] sm:$0xff]
      %v1850 = vld [vmem:[#allocation3 + $0x38] sm:$0xff]
      %v1851 = vadd.f32 %v1843, %v1813
      %v1852 = vadd.f32 %v1844, %v1816
      %v1853 = vadd.f32 %v1845, %v1821
      %v1854 = vadd.f32 %v1846, %v1824
      %v1855 = vadd.f32 %v1847, %v1829
      %v1856 = vadd.f32 %v1848, %v1832
      %v1857 = vadd.f32 %v1849, %v1837
      %v1858 = vadd.f32 %v1850, %v1840
      %1859 = vst.msk [vmem:[#allocation3] sm:$0xff] %vm727, %v1851
      %1860 = vst.msk [vmem:[#allocation3 + $0x8] sm:$0xff] %vm727, %v1852
      %1861 = vst.msk [vmem:[#allocation3 + $0x10] sm:$0xff] %vm727, %v1853
      %1862 = vst.msk [vmem:[#allocation3 + $0x18] sm:$0xff] %vm727, %v1854
      %1863 = vst.msk [vmem:[#allocation3 + $0x20] sm:$0xff] %vm727, %v1855
      %1864 = vst.msk [vmem:[#allocation3 + $0x28] sm:$0xff] %vm727, %v1856
      %1865 = vst.msk [vmem:[#allocation3 + $0x30] sm:$0xff] %vm727, %v1857
      %1866 = vst.msk [vmem:[#allocation3 + $0x38] sm:$0xff] %vm727, %v1858
      %v1867 = vld [vmem:[%s1732] sm:$0xf]
      %v1868 = vld [vmem:[%s1732 + $0x4] sm:$0x1]
      %v1869 = vld [vmem:[%s1732 + $0x8] sm:$0xf]
      %v1870 = vld [vmem:[%s1732 + $0xc] sm:$0x1]
      %v1871 = vld [vmem:[%s1732 + $0x10] sm:$0xf]
      %v1872 = vld [vmem:[%s1732 + $0x14] sm:$0x1]
      %v1873 = vld [vmem:[%s1732 + $0x18] sm:$0xf]
      %v1874 = vld [vmem:[%s1732 + $0x1c] sm:$0x1]
      %v1875 = vld [vmem:[%s1732 + $0x20] sm:$0xf]
      %v1876 = vld [vmem:[%s1732 + $0x24] sm:$0x1]
      %v1877 = vld [vmem:[%s1732 + $0x28] sm:$0xf]
      %v1878 = vld [vmem:[%s1732 + $0x2c] sm:$0x1]
      %v1879 = vld [vmem:[%s1732 + $0x30] sm:$0xf]
      %v1880 = vld [vmem:[%s1732 + $0x34] sm:$0x1]
      %v1881 = vld [vmem:[%s1732 + $0x38] sm:$0xf]
      %v1882 = vld [vmem:[%s1732 + $0x3c] sm:$0x1]
      %v1884 = vshrl.u32 %v1867, 16
      %v1886 = vrot.slane %v1884, 4
      %v1887 = vshll.u32 %v1867, 16
      %v1889 = vrot.slane %v1887, 5
      %v1890 = vor.u32 %v1886, %v1889
      %v1891 = vrot.slane %v1890, 4
      %v1893 = vshll.u32 %v1868, 16
      %v1895 = vrot.slane %v1893, 5
      %v1896 = vsel %vm754, %v1891, %v1895
      %v1898 = vshrl.u32 %v1869, 16
      %v1900 = vrot.slane %v1898, 4
      %v1901 = vshll.u32 %v1869, 16
      %v1903 = vrot.slane %v1901, 5
      %v1904 = vor.u32 %v1900, %v1903
      %v1905 = vrot.slane %v1904, 4
      %v1907 = vshll.u32 %v1870, 16
      %v1909 = vrot.slane %v1907, 5
      %v1910 = vsel %vm754, %v1905, %v1909
      %v1912 = vshrl.u32 %v1871, 16
      %v1914 = vrot.slane %v1912, 4
      %v1915 = vshll.u32 %v1871, 16
      %v1917 = vrot.slane %v1915, 5
      %v1918 = vor.u32 %v1914, %v1917
      %v1919 = vrot.slane %v1918, 4
      %v1921 = vshll.u32 %v1872, 16
      %v1923 = vrot.slane %v1921, 5
      %v1924 = vsel %vm754, %v1919, %v1923
      %v1926 = vshrl.u32 %v1873, 16
      %v1928 = vrot.slane %v1926, 4
      %v1929 = vshll.u32 %v1873, 16
      %v1931 = vrot.slane %v1929, 5
      %v1932 = vor.u32 %v1928, %v1931
      %v1933 = vrot.slane %v1932, 4
      %v1935 = vshll.u32 %v1874, 16
      %v1937 = vrot.slane %v1935, 5
      %v1938 = vsel %vm754, %v1933, %v1937
      %v1940 = vshrl.u32 %v1875, 16
      %v1942 = vrot.slane %v1940, 4
      %v1943 = vshll.u32 %v1875, 16
      %v1945 = vrot.slane %v1943, 5
      %v1946 = vor.u32 %v1942, %v1945
      %v1947 = vrot.slane %v1946, 4
      %v1949 = vshll.u32 %v1876, 16
      %v1951 = vrot.slane %v1949, 5
      %v1952 = vsel %vm754, %v1947, %v1951
      %v1954 = vshrl.u32 %v1877, 16
      %v1956 = vrot.slane %v1954, 4
      %v1957 = vshll.u32 %v1877, 16
      %v1959 = vrot.slane %v1957, 5
      %v1960 = vor.u32 %v1956, %v1959
      %v1961 = vrot.slane %v1960, 4
      %v1963 = vshll.u32 %v1878, 16
      %v1965 = vrot.slane %v1963, 5
      %v1966 = vsel %vm754, %v1961, %v1965
      %v1968 = vshrl.u32 %v1879, 16
      %v1970 = vrot.slane %v1968, 4
      %v1971 = vshll.u32 %v1879, 16
      %v1973 = vrot.slane %v1971, 5
      %v1974 = vor.u32 %v1970, %v1973
      %v1975 = vrot.slane %v1974, 4
      %v1977 = vshll.u32 %v1880, 16
      %v1979 = vrot.slane %v1977, 5
      %v1980 = vsel %vm754, %v1975, %v1979
      %v1982 = vshrl.u32 %v1881, 16
      %v1984 = vrot.slane %v1982, 4
      %v1985 = vshll.u32 %v1881, 16
      %v1987 = vrot.slane %v1985, 5
      %v1988 = vor.u32 %v1984, %v1987
      %v1989 = vrot.slane %v1988, 4
      %v1991 = vshll.u32 %v1882, 16
      %v1993 = vrot.slane %v1991, 5
      %v1994 = vsel %vm754, %v1989, %v1993
      %s1995 = scalar_lea.vmem %s2, 14
      %v1996 = vld [vmem:[%s1995] sm:$0x3]
      %v1997 = vunpack.c.l.b16 %v1896
      %v1998 = vunpack.c.l.b16 %v1910
      %v1999 = vunpack.c.l.b16 %v1924
      %v2000 = vunpack.c.l.b16 %v1938
      %v2001 = vunpack.c.l.b16 %v1952
      %v2002 = vunpack.c.l.b16 %v1966
      %v2003 = vunpack.c.l.b16 %v1980
      %v2004 = vunpack.c.l.b16 %v1994
      %v2005 = vpack.c.b16 %v1998, %v1997
      %v2006 = vpack.c.b16 %v2000, %v1999
      %v2007 = vpack.c.b16 %v2002, %v2001
      %v2008 = vpack.c.b16 %v2004, %v2003
      %v2010 = vsel %vm645, %v2005, 0
      %v2013 = vsel %vm645, %v2006, 0
      %v2016 = vsel %vm645, %v2007, 0
      %v2019 = vsel %vm645, %v2008, 0
      %v2022 = vsel %vm658, %v1996, 0
      %2024 = vmatprep.subr.bf16.mxu0 0
      %2025 = vmatpush1.bf16.msra.mxu0 0
      %2026 = vmatprep.subr.bf16.mxu0 0
      %2027 = vmatpush1.bf16.msra.mxu0 0
      %2028 = vmatprep.subr.bf16.mxu0 0
      %2029 = vmatpush1.bf16.msra.mxu0 0
      %2030 = vmatprep.subr.bf16.mxu0 0
      %2031 = vmatpush1.bf16.msra.mxu0 0
      %2032 = vmatprep.subr.bf16.mxu0 0
      %2033 = vmatpush1.bf16.msra.mxu0 0
      %2034 = vmatprep.subr.bf16.mxu0 0
      %2035 = vmatpush1.bf16.msra.mxu0 0
      %2036 = vmatprep.subr.bf16.mxu0 0
      %2037 = vmatpush1.bf16.msra.mxu0 0
      %2038 = vmatprep.subr.bf16.mxu0 0
      %2039 = vmatpush1.bf16.msra.mxu0 %v2022
      %2040 = vmatprep.subr.bf16.mxu0 0
      %2041 = vmatpush2.bf16.msra.mxu0 0
      %2042 = vmatprep.subr.bf16.mxu0 0
      %2043 = vmatpush2.bf16.msra.mxu0 0
      %2044 = vmatprep.subr.bf16.mxu0 0
      %2045 = vmatpush2.bf16.msra.mxu0 0
      %2046 = vmatprep.subr.bf16.mxu0 0
      %2047 = vmatpush2.bf16.msra.mxu0 0
      %2048 = vmatprep.subr.bf16.mxu0 0
      %2049 = vmatpush2.bf16.msra.mxu0 0
      %2050 = vmatprep.subr.bf16.mxu0 0
      %2051 = vmatpush2.bf16.msra.mxu0 0
      %2052 = vmatprep.subr.bf16.mxu0 0
      %2053 = vmatpush2.bf16.msra.mxu0 0
      %2054 = vmatprep.subr.bf16.mxu0 0
      %2055 = vmatpush2.bf16.msra.mxu0 0
      %2056 = vmatprep.mubr.bf16.mxu0 0
      %2057 = vmatmul.mubr.bf16.gmra.mxu0 %v2010
      %v2058 = vpop.f32.mrf.mxu0
      %v2059 = vadd.f32 0.0, %v2058
      %v2060 = vpop.f32.mrf.mxu0
      %v2061 = vpop.f32.mrf.mxu0
      %v2062 = vadd.f32 0.0, %v2061
      %v2063 = vpop.f32.mrf.mxu0
      %2064 = vmatprep.mubr.bf16.mxu0 0
      %2065 = vmatmul.mubr.bf16.gmra.mxu0 %v2013
      %v2066 = vpop.f32.mrf.mxu0
      %v2067 = vadd.f32 0.0, %v2066
      %v2068 = vpop.f32.mrf.mxu0
      %v2069 = vpop.f32.mrf.mxu0
      %v2070 = vadd.f32 0.0, %v2069
      %v2071 = vpop.f32.mrf.mxu0
      %2072 = vmatprep.mubr.bf16.mxu0 0
      %2073 = vmatmul.mubr.bf16.gmra.mxu0 %v2016
      %v2074 = vpop.f32.mrf.mxu0
      %v2075 = vadd.f32 0.0, %v2074
      %v2076 = vpop.f32.mrf.mxu0
      %v2077 = vpop.f32.mrf.mxu0
      %v2078 = vadd.f32 0.0, %v2077
      %v2079 = vpop.f32.mrf.mxu0
      %2080 = vmatprep.mubr.bf16.mxu0 0
      %2081 = vmatmul.mubr.bf16.gmra.mxu0 %v2019
      %v2082 = vpop.f32.mrf.mxu0
      %v2083 = vadd.f32 0.0, %v2082
      %v2084 = vpop.f32.mrf.mxu0
      %v2085 = vpop.f32.mrf.mxu0
      %v2086 = vadd.f32 0.0, %v2085
      %v2087 = vpop.f32.mrf.mxu0
      %2088 = vdwg.mxu0
      %v2089 = vld [vmem:[#allocation3] sm:$0xff]
      %v2090 = vld [vmem:[#allocation3 + $0x8] sm:$0xff]
      %v2091 = vld [vmem:[#allocation3 + $0x10] sm:$0xff]
      %v2092 = vld [vmem:[#allocation3 + $0x18] sm:$0xff]
      %v2093 = vld [vmem:[#allocation3 + $0x20] sm:$0xff]
      %v2094 = vld [vmem:[#allocation3 + $0x28] sm:$0xff]
      %v2095 = vld [vmem:[#allocation3 + $0x30] sm:$0xff]
      %v2096 = vld [vmem:[#allocation3 + $0x38] sm:$0xff]
      %v2097 = vadd.f32 %v2089, %v2059
      %v2098 = vadd.f32 %v2090, %v2062
      %v2099 = vadd.f32 %v2091, %v2067
      %v2100 = vadd.f32 %v2092, %v2070
      %v2101 = vadd.f32 %v2093, %v2075
      %v2102 = vadd.f32 %v2094, %v2078
      %v2103 = vadd.f32 %v2095, %v2083
      %v2104 = vadd.f32 %v2096, %v2086
      %2105 = vst.msk [vmem:[#allocation3] sm:$0xff] %vm727, %v2097
      %2106 = vst.msk [vmem:[#allocation3 + $0x8] sm:$0xff] %vm727, %v2098
      %2107 = vst.msk [vmem:[#allocation3 + $0x10] sm:$0xff] %vm727, %v2099
      %2108 = vst.msk [vmem:[#allocation3 + $0x18] sm:$0xff] %vm727, %v2100
      %2109 = vst.msk [vmem:[#allocation3 + $0x20] sm:$0xff] %vm727, %v2101
      %2110 = vst.msk [vmem:[#allocation3 + $0x28] sm:$0xff] %vm727, %v2102
      %2111 = vst.msk [vmem:[#allocation3 + $0x30] sm:$0xff] %vm727, %v2103
      %2112 = vst.msk [vmem:[#allocation3 + $0x38] sm:$0xff] %vm727, %v2104
      %v2113 = vld [vmem:[%s1732] sm:$0xe]
      %v2114 = vld [vmem:[%s1732 + $0x4] sm:$0x1]
      %v2115 = vld [vmem:[%s1732 + $0x8] sm:$0xe]
      %v2116 = vld [vmem:[%s1732 + $0xc] sm:$0x1]
      %v2117 = vld [vmem:[%s1732 + $0x10] sm:$0xe]
      %v2118 = vld [vmem:[%s1732 + $0x14] sm:$0x1]
      %v2119 = vld [vmem:[%s1732 + $0x18] sm:$0xe]
      %v2120 = vld [vmem:[%s1732 + $0x1c] sm:$0x1]
      %v2121 = vld [vmem:[%s1732 + $0x20] sm:$0xe]
      %v2122 = vld [vmem:[%s1732 + $0x24] sm:$0x1]
      %v2123 = vld [vmem:[%s1732 + $0x28] sm:$0xe]
      %v2124 = vld [vmem:[%s1732 + $0x2c] sm:$0x1]
      %v2125 = vld [vmem:[%s1732 + $0x30] sm:$0xe]
      %v2126 = vld [vmem:[%s1732 + $0x34] sm:$0x1]
      %v2127 = vld [vmem:[%s1732 + $0x38] sm:$0xe]
      %v2128 = vld [vmem:[%s1732 + $0x3c] sm:$0x1]
      %v2145 = vrot.slane %v2113, 5
      %v2146 = vrot.slane %v2145, 4
      %v2147 = vrot.slane %v2114, 5
      %v2148 = vsel %vm1019, %v2146, %v2147
      %v2149 = vrot.slane %v2115, 5
      %v2150 = vrot.slane %v2149, 4
      %v2151 = vrot.slane %v2116, 5
      %v2152 = vsel %vm1019, %v2150, %v2151
      %v2153 = vrot.slane %v2117, 5
      %v2154 = vrot.slane %v2153, 4
      %v2155 = vrot.slane %v2118, 5
      %v2156 = vsel %vm1019, %v2154, %v2155
      %v2157 = vrot.slane %v2119, 5
      %v2158 = vrot.slane %v2157, 4
      %v2159 = vrot.slane %v2120, 5
      %v2160 = vsel %vm1019, %v2158, %v2159
      %v2161 = vrot.slane %v2121, 5
      %v2162 = vrot.slane %v2161, 4
      %v2163 = vrot.slane %v2122, 5
      %v2164 = vsel %vm1019, %v2162, %v2163
      %v2165 = vrot.slane %v2123, 5
      %v2166 = vrot.slane %v2165, 4
      %v2167 = vrot.slane %v2124, 5
      %v2168 = vsel %vm1019, %v2166, %v2167
      %v2169 = vrot.slane %v2125, 5
      %v2170 = vrot.slane %v2169, 4
      %v2171 = vrot.slane %v2126, 5
      %v2172 = vsel %vm1019, %v2170, %v2171
      %v2173 = vrot.slane %v2127, 5
      %v2174 = vrot.slane %v2173, 4
      %v2175 = vrot.slane %v2128, 5
      %v2176 = vsel %vm1019, %v2174, %v2175
      %s2177 = scalar_lea.vmem %s2, 16
      %v2178 = vld [vmem:[%s2177] sm:$0x3]
      %v2179 = vunpack.c.l.b16 %v2148
      %v2180 = vunpack.c.l.b16 %v2152
      %v2181 = vunpack.c.l.b16 %v2156
      %v2182 = vunpack.c.l.b16 %v2160
      %v2183 = vunpack.c.l.b16 %v2164
      %v2184 = vunpack.c.l.b16 %v2168
      %v2185 = vunpack.c.l.b16 %v2172
      %v2186 = vunpack.c.l.b16 %v2176
      %v2187 = vpack.c.b16 %v2180, %v2179
      %v2188 = vpack.c.b16 %v2182, %v2181
      %v2189 = vpack.c.b16 %v2184, %v2183
      %v2190 = vpack.c.b16 %v2186, %v2185
      %v2192 = vsel %vm645, %v2187, 0
      %v2195 = vsel %vm645, %v2188, 0
      %v2198 = vsel %vm645, %v2189, 0
      %v2201 = vsel %vm645, %v2190, 0
      %v2204 = vsel %vm658, %v2178, 0
      %2206 = vmatprep.subr.bf16.mxu0 0
      %2207 = vmatpush1.bf16.msra.mxu0 0
      %2208 = vmatprep.subr.bf16.mxu0 0
      %2209 = vmatpush1.bf16.msra.mxu0 0
      %2210 = vmatprep.subr.bf16.mxu0 0
      %2211 = vmatpush1.bf16.msra.mxu0 0
      %2212 = vmatprep.subr.bf16.mxu0 0
      %2213 = vmatpush1.bf16.msra.mxu0 0
      %2214 = vmatprep.subr.bf16.mxu0 0
      %2215 = vmatpush1.bf16.msra.mxu0 0
      %2216 = vmatprep.subr.bf16.mxu0 0
      %2217 = vmatpush1.bf16.msra.mxu0 0
      %2218 = vmatprep.subr.bf16.mxu0 0
      %2219 = vmatpush1.bf16.msra.mxu0 0
      %2220 = vmatprep.subr.bf16.mxu0 0
      %2221 = vmatpush1.bf16.msra.mxu0 %v2204
      %2222 = vmatprep.subr.bf16.mxu0 0
      %2223 = vmatpush2.bf16.msra.mxu0 0
      %2224 = vmatprep.subr.bf16.mxu0 0
      %2225 = vmatpush2.bf16.msra.mxu0 0
      %2226 = vmatprep.subr.bf16.mxu0 0
      %2227 = vmatpush2.bf16.msra.mxu0 0
      %2228 = vmatprep.subr.bf16.mxu0 0
      %2229 = vmatpush2.bf16.msra.mxu0 0
      %2230 = vmatprep.subr.bf16.mxu0 0
      %2231 = vmatpush2.bf16.msra.mxu0 0
      %2232 = vmatprep.subr.bf16.mxu0 0
      %2233 = vmatpush2.bf16.msra.mxu0 0
      %2234 = vmatprep.subr.bf16.mxu0 0
      %2235 = vmatpush2.bf16.msra.mxu0 0
      %2236 = vmatprep.subr.bf16.mxu0 0
      %2237 = vmatpush2.bf16.msra.mxu0 0
      %2238 = vmatprep.mubr.bf16.mxu0 0
      %2239 = vmatmul.mubr.bf16.gmra.mxu0 %v2192
      %v2240 = vpop.f32.mrf.mxu0
      %v2241 = vadd.f32 0.0, %v2240
      %v2242 = vpop.f32.mrf.mxu0
      %v2243 = vpop.f32.mrf.mxu0
      %v2244 = vadd.f32 0.0, %v2243
      %v2245 = vpop.f32.mrf.mxu0
      %2246 = vmatprep.mubr.bf16.mxu0 0
      %2247 = vmatmul.mubr.bf16.gmra.mxu0 %v2195
      %v2248 = vpop.f32.mrf.mxu0
      %v2249 = vadd.f32 0.0, %v2248
      %v2250 = vpop.f32.mrf.mxu0
      %v2251 = vpop.f32.mrf.mxu0
      %v2252 = vadd.f32 0.0, %v2251
      %v2253 = vpop.f32.mrf.mxu0
      %2254 = vmatprep.mubr.bf16.mxu0 0
      %2255 = vmatmul.mubr.bf16.gmra.mxu0 %v2198
      %v2256 = vpop.f32.mrf.mxu0
      %v2257 = vadd.f32 0.0, %v2256
      %v2258 = vpop.f32.mrf.mxu0
      %v2259 = vpop.f32.mrf.mxu0
      %v2260 = vadd.f32 0.0, %v2259
      %v2261 = vpop.f32.mrf.mxu0
      %2262 = vmatprep.mubr.bf16.mxu0 0
      %2263 = vmatmul.mubr.bf16.gmra.mxu0 %v2201
      %v2264 = vpop.f32.mrf.mxu0
      %v2265 = vadd.f32 0.0, %v2264
      %v2266 = vpop.f32.mrf.mxu0
      %v2267 = vpop.f32.mrf.mxu0
      %v2268 = vadd.f32 0.0, %v2267
      %v2269 = vpop.f32.mrf.mxu0
      %2270 = vdwg.mxu0
      %v2271 = vld [vmem:[#allocation3] sm:$0xff]
      %v2272 = vld [vmem:[#allocation3 + $0x8] sm:$0xff]
      %v2273 = vld [vmem:[#allocation3 + $0x10] sm:$0xff]
      %v2274 = vld [vmem:[#allocation3 + $0x18] sm:$0xff]
      %v2275 = vld [vmem:[#allocation3 + $0x20] sm:$0xff]
      %v2276 = vld [vmem:[#allocation3 + $0x28] sm:$0xff]
      %v2277 = vld [vmem:[#allocation3 + $0x30] sm:$0xff]
      %v2278 = vld [vmem:[#allocation3 + $0x38] sm:$0xff]
      %v2279 = vadd.f32 %v2271, %v2241
      %v2280 = vadd.f32 %v2272, %v2244
      %v2281 = vadd.f32 %v2273, %v2249
      %v2282 = vadd.f32 %v2274, %v2252
      %v2283 = vadd.f32 %v2275, %v2257
      %v2284 = vadd.f32 %v2276, %v2260
      %v2285 = vadd.f32 %v2277, %v2265
      %v2286 = vadd.f32 %v2278, %v2268
      %2287 = vst.msk [vmem:[#allocation3] sm:$0xff] %vm727, %v2279
      %2288 = vst.msk [vmem:[#allocation3 + $0x8] sm:$0xff] %vm727, %v2280
      %2289 = vst.msk [vmem:[#allocation3 + $0x10] sm:$0xff] %vm727, %v2281
      %2290 = vst.msk [vmem:[#allocation3 + $0x18] sm:$0xff] %vm727, %v2282
      %2291 = vst.msk [vmem:[#allocation3 + $0x20] sm:$0xff] %vm727, %v2283
      %2292 = vst.msk [vmem:[#allocation3 + $0x28] sm:$0xff] %vm727, %v2284
      %2293 = vst.msk [vmem:[#allocation3 + $0x30] sm:$0xff] %vm727, %v2285
      %2294 = vst.msk [vmem:[#allocation3 + $0x38] sm:$0xff] %vm727, %v2286
      %v2295 = vld [vmem:[#allocation3] sm:$0xff]
      %v2296 = vld [vmem:[#allocation3 + $0x8] sm:$0xff]
      %v2297 = vld [vmem:[#allocation3 + $0x10] sm:$0xff]
      %v2298 = vld [vmem:[#allocation3 + $0x18] sm:$0xff]
      %v2299 = vld [vmem:[#allocation3 + $0x20] sm:$0xff]
      %v2300 = vld [vmem:[#allocation3 + $0x28] sm:$0xff]
      %v2301 = vld [vmem:[#allocation3 + $0x30] sm:$0xff]
      %v2302 = vld [vmem:[#allocation3 + $0x38] sm:$0xff]
      %v2303 = vld [vmem:[%s3] sm:$0x1]
      %v2305 = vlaneseq
      %v2306 = vshrl.u32 %v2305, 7
      %v2307 = vsub.s32 0, %v2306
      %v2308 = vrot.slane %v2303, %v2307
      %v2310 = vadd.f32 %v2295, %v2308
      %v2311 = vadd.f32 %v2296, %v2308
      %v2312 = vadd.f32 %v2297, %v2308
      %v2313 = vadd.f32 %v2298, %v2308
      %v2314 = vadd.f32 %v2299, %v2308
      %v2315 = vadd.f32 %v2300, %v2308
      %v2316 = vadd.f32 %v2301, %v2308
      %v2317 = vadd.f32 %v2302, %v2308
      %v2318 = vsel %vm727, %v2310, 0.0
      %v2319 = vsel %vm727, %v2311, 0.0
      %v2320 = vadd.f32 %v2318, %v2319
      %v2321 = vsel %vm727, %v2312, 0.0
      %v2322 = vadd.f32 %v2320, %v2321
      %v2323 = vsel %vm727, %v2313, 0.0
      %v2324 = vadd.f32 %v2322, %v2323
      %v2325 = vsel %vm727, %v2314, 0.0
      %v2326 = vadd.f32 %v2324, %v2325
      %v2327 = vsel %vm727, %v2315, 0.0
      %v2328 = vadd.f32 %v2326, %v2327
      %v2329 = vsel %vm727, %v2316, 0.0
      %v2330 = vadd.f32 %v2328, %v2329
      %v2331 = vsel %vm727, %v2317, 0.0
      %v2332 = vadd.f32 %v2330, %v2331
      %v2333 = vrot.slane %v2332, 4
      %v2334 = vadd.f32 %v2332, %v2333
      %v2335 = vrot.slane %v2334, 2
      %v2336 = vadd.f32 %v2334, %v2335
      %v2337 = vrot.slane %v2336, 1
      %v2338 = vadd.f32 %v2336, %v2337
      %v2339 = vmul.f32 %v2338, 0.015625
      %v2340 = vsub.f32 %v2310, %v2339
      %v2341 = vsub.f32 %v2311, %v2339
      %v2342 = vsub.f32 %v2312, %v2339
      %v2343 = vsub.f32 %v2313, %v2339
      %v2344 = vsub.f32 %v2314, %v2339
      %v2345 = vsub.f32 %v2315, %v2339
      %v2346 = vsub.f32 %v2316, %v2339
      %v2347 = vsub.f32 %v2317, %v2339
      %v2348 = vmul.f32 %v2340, %v2340
      %v2349 = vmul.f32 %v2341, %v2341
      %v2350 = vmul.f32 %v2342, %v2342
      %v2351 = vmul.f32 %v2343, %v2343
      %v2352 = vmul.f32 %v2344, %v2344
      %v2353 = vmul.f32 %v2345, %v2345
      %v2354 = vmul.f32 %v2346, %v2346
      %v2355 = vmul.f32 %v2347, %v2347
      %v2356 = vsel %vm727, %v2348, 0.0
      %v2357 = vsel %vm727, %v2349, 0.0
      %v2358 = vadd.f32 %v2356, %v2357
      %v2359 = vsel %vm727, %v2350, 0.0
      %v2360 = vadd.f32 %v2358, %v2359
      %v2361 = vsel %vm727, %v2351, 0.0
      %v2362 = vadd.f32 %v2360, %v2361
      %v2363 = vsel %vm727, %v2352, 0.0
      %v2364 = vadd.f32 %v2362, %v2363
      %v2365 = vsel %vm727, %v2353, 0.0
      %v2366 = vadd.f32 %v2364, %v2365
      %v2367 = vsel %vm727, %v2354, 0.0
      %v2368 = vadd.f32 %v2366, %v2367
      %v2369 = vsel %vm727, %v2355, 0.0
      %v2370 = vadd.f32 %v2368, %v2369
      %v2371 = vrot.slane %v2370, 4
      %v2372 = vadd.f32 %v2370, %v2371
      %v2373 = vrot.slane %v2372, 2
      %v2374 = vadd.f32 %v2372, %v2373
      %v2375 = vrot.slane %v2374, 1
      %v2376 = vadd.f32 %v2374, %v2375
      %vm2377 = vcmask 57344
      %2378 = vst.msk [vmem:[%s319] sm:$0x1] %vm2377, %v2338
      %2379 = vst.msk [vmem:[%s319 + $0x1] sm:$0x1] %vm2377, %v2376
      %v2380 = vpack.c.bf16 %v2310, %v2310
      %v2381 = vpack.c.bf16 %v2311, %v2311
      %v2382 = vpack.c.bf16 %v2312, %v2312
      %v2383 = vpack.c.bf16 %v2313, %v2313
      %v2384 = vpack.c.bf16 %v2314, %v2314
      %v2385 = vpack.c.bf16 %v2315, %v2315
      %v2386 = vpack.c.bf16 %v2316, %v2316
      %v2387 = vpack.c.bf16 %v2317, %v2317
      %vm2388 = vcmask 60416
      %2389 = vst.msk [vmem:[%s311] sm:$0xf] %vm2388, %v2380
      %2390 = vst.msk [vmem:[%s311 + $0x4] sm:$0xf] %vm2388, %v2381
      %2391 = vst.msk [vmem:[%s311 + $0x8] sm:$0xf] %vm2388, %v2382
      %2392 = vst.msk [vmem:[%s311 + $0xc] sm:$0xf] %vm2388, %v2383
      %2393 = vst.msk [vmem:[%s311 + $0x10] sm:$0xf] %vm2388, %v2384
      %2394 = vst.msk [vmem:[%s311 + $0x14] sm:$0xf] %vm2388, %v2385
      %2395 = vst.msk [vmem:[%s311 + $0x18] sm:$0xf] %vm2388, %v2386
      %2396 = vst.msk [vmem:[%s311 + $0x1c] sm:$0xf] %vm2388, %v2387
      %s2397 = smul.u32 8, %s22
      %p2398 = scmp.lt.s32.totalorder %s21, 1
      %s2399 = scalar_select %p2398, %s21, 1
      %p2400 = scmp.lt.s32.totalorder %s2397, 7
      %s2401 = scalar_select %p2400, %s2397, 7
      %s2402 = smul.addr %s2399, 8
      %s2403 = sadd.s32 %s2401, %s2402
      %s2404 = smul.addr %s2403, 4
      %s2405 = scalar_lea.vmem %s4, %s2404
      %p2406 = scmp.lt.s32.totalorder %s21, 1
      %s2407 = scalar_select %p2406, %s21, 1
      %p2408 = scmp.lt.s32.totalorder %s22, 0
      %s2409 = scalar_select %p2408, %s22, 0
      %s2410 = sadd.s32 %s2409, %s2407
      %s2411 = smul.addr %s2410, 2
      %s2412 = scalar_lea.vmem %s5, %s2411
      // Predicated region
      $region37: #{down_forward.2} parent=35 // pred_check
        %p2413 = pneg %p147
      $region38: #{down_forward.2} parent=35 // pred_check_branch
        %2415 = sbr.rel (%p2413) target = $region40
      $region39: #{down_forward.2} parent=35 // pred_region
        %s2416 = smul.u32 8, %s22
      $region40: #{down_forward.2} parent=35 // pred_fallthru
        _
      // Predicated region
      $region41: #{down_forward.2} parent=35 // pred_check
        %p2417 = pneg %p175
      $region42: #{down_forward.2} parent=35 // pred_check_branch
        %2419 = sbr.rel (%p2417) target = $region44
      $region43: #{down_forward.2} parent=35 // pred_region
        _
      $region44: #{down_forward.2} parent=35 // pred_fallthru
        _
    $region36: #{down_forward.2} parent=5 // pred_fallthru
      _
    %p2420 = scmp.le.s32.totalorder 2, %s12
    // Predicated region
    $region45: #{down_forward.2} parent=5 // pred_check
      %p2421 = pneg %p2420
    $region46: #{down_forward.2} parent=5 // pred_check_branch
      %2423 = sbr.rel (%p2421) target = $region48
    $region47: #{down_forward.2} parent=5 // pred_region
      %s2424 = ssub.s32 %s12, 2
      // Predicated region
      $region49: #{down_forward.2} parent=47 // pred_check
        %p2425 = pneg %p153
      $region50: #{down_forward.2} parent=47 // pred_check_branch
        %2427 = sbr.rel (%p2425) target = $region52
      $region51: #{down_forward.2} parent=47 // pred_region
        %s2428 = smul.u32 8, %s24
        %p2429 = scmp.lt.s32.totalorder %s23, 1
        %s2430 = scalar_select %p2429, %s23, 1
        %p2431 = scmp.lt.s32.totalorder %s2428, 7
        %s2432 = scalar_select %p2431, %s2428, 7
        %s2433 = smul.addr %s2430, 8
        %s2434 = sadd.s32 %s2432, %s2433
        %s2435 = smul.addr %s2434, 4
        %s2436 = scalar_lea.vmem %s4, %s2435
      $region52: #{down_forward.2} parent=47 // pred_fallthru
        _
      // Predicated region
      $region53: #{down_forward.2} parent=47 // pred_check
        %p2437 = pneg %p181
      $region54: #{down_forward.2} parent=47 // pred_check_branch
        %2439 = sbr.rel (%p2437) target = $region56
      $region55: #{down_forward.2} parent=47 // pred_region
        %p2440 = scmp.lt.s32.totalorder %s23, 1
        %s2441 = scalar_select %p2440, %s23, 1
        %p2442 = scmp.lt.s32.totalorder %s24, 0
        %s2443 = scalar_select %p2442, %s24, 0
        %s2444 = sadd.s32 %s2443, %s2441
        %s2445 = smul.addr %s2444, 2
        %s2446 = scalar_lea.vmem %s5, %s2445
      $region56: #{down_forward.2} parent=47 // pred_fallthru
        _
    $region48: #{down_forward.2} parent=5 // pred_fallthru
      _
  $region6: #{down_forward.2} parent=0 // loop_footer
    %s16 = sadd.s32 1, %s12
  $region7: #{down_forward.2} parent=0 // loop_footer_branch
    %11 = sbr.rel target = $region3
  $region8: #{down_forward.2} parent=0 // loop_exit
    _

// kernel: down_forward.3
$region0: #{down_forward.3}
  #allocation0 [shape = 'u32[]', space=smem, size = 0x4, offset = 0x4, fixed_abs, tag = 'smem constant byte address 0x4 - core index']
  #allocation1 [shape = 'u32[144,128]{1,0:T(1,128)}', space=vmem, size = 0x12000, scoped, tag = 'internal scratch']
  #allocation2 [shape = 'bf16[10,10,8]{2,1,0:T(8,128)(2,1)}', space=vmem, size = 0xa000, scoped, tag = 'scratch operand']
  #allocation3 [shape = 'f32[64,8]{1,0:T(8,128)}', space=vmem, size = 0x8000, scoped, tag = 'scratch operand']
  %s0 = inlined_call_operand.vmem [shape: bf16[2,8,8,8], index: 0, kind: input, shape index: {}]
  %s1 = inlined_call_operand.vmem [shape: bf16[2,1,2,8,8], index: 1, kind: input, shape index: {}]
  %s2 = inlined_call_operand.vmem [shape: f32[1,1,8], index: 2, kind: input, shape index: {}]
  %s3 = inlined_call_operand.vmem [shape: f32[1,1,8], index: 3, kind: input, shape index: {}]
  %s4 = inlined_call_operand.vmem [shape: bf16[9,8,8], index: 4, kind: input, shape index: {}]
  %s5 = inlined_call_operand.vmem [shape: f32[1,8], index: 5, kind: input, shape index: {}]
  %s6 = inlined_call_operand.vmem [shape: bf16[2,8,8,8], index: 6, kind: output, shape index: {0}]
  %s7 = inlined_call_operand.vmem [shape: f32[2,1,2,8], index: 7, kind: output, shape index: {1}]
  %8 = xla_tuple %s6, %s7
  %s9 = sld [smem:[#allocation0]]
  $region65: #{down_forward.3} parent=0
    _
  %s11 = ssub.s32 1, %s9
  %s12 = scalar_select 0, %s11, %s9
  loop: start=0, step=1, limit=4
  $region2: #{down_forward.3} parent=0 // loop_pre_header
    _
  $region3: #{down_forward.3} parent=0 // loop_header
    %s14 = sphi 0, %s18
    %p15 = scmp.ge.s32.totalorder %s14, 4
    %s21 = sphi 0, %s33
    %s22 = sphi 0, %s29
    %s23 = sphi 0, %s21
    %s24 = sphi 0, %s22
    %s25 = sphi 0, %s23
    %s26 = sphi 0, %s24
    %s38 = sphi 0, %s40
    %s41 = sphi 0, %s38
    %s42 = sphi 0, %s41
    %s58 = sphi 0, %s42
    %s66 = sphi 0, %s68
    %s69 = sphi 0, %s66
    %s70 = sphi 0, %s69
    %s86 = sphi 0, %s70
    %s90 = sphi 0, %s90
    %s92 = sphi 0, %s90
    %s93 = sphi 0, %s92
    %s107 = sphi 0, %s93
    %s111 = sphi 0, %s111
    %s113 = sphi 0, %s111
    %s114 = sphi 0, %s113
    %s128 = sphi 0, %s114
    %s132 = sphi 0, %s132
    %s134 = sphi 0, %s132
    %s135 = sphi 0, %s134
    %s149 = sphi 0, %s135
    %s153 = sphi 0, %s153
    %s155 = sphi 0, %s153
    %s156 = sphi 0, %s155
    %s170 = sphi 0, %s156
    %s178 = sphi 0, %s180
    %s181 = sphi 0, %s178
    %s182 = sphi 0, %s181
    %s198 = sphi 0, %s182
    %s206 = sphi 0, %s208
    %s209 = sphi 0, %s206
    %s210 = sphi 0, %s209
    %s226 = sphi 0, %s210
  $region4: #{down_forward.3} parent=0 // loop_header_branch
    %17 = sbr.rel (%p15) target = $region8
  $region5: #{down_forward.3} parent=0 // loop_body
    %s19 = ssub.s32 %s14, 1
    %s20 = ssub.s32 %s14, 2
    %s27 = sadd.s32 1, %s22
    %p28 = scmp.ge.s32.totalorder %s27, 1
    %s29 = scalar_select %p28, 0, %s27
    %s30 = sadd.s32 1, %s21
    %s31 = scalar_select %p28, %s30, %s21
    %p32 = scmp.ge.s32.totalorder %s31, 2
    %s33 = scalar_select %p32, 0, %s31
    %s34 = ssub.s32 %s21, %s33
    %s35 = ssub.s32 %s22, %s29
    %s36 = sor.u32 %s34, %s35
    %p37 = scmp.eq.s32.totalorder %s36, 0
    %s39 = sadd.s32 %s38, 1
    %s40 = scalar_select %p37, %s38, %s39
    %p43 = pneg %p37
    %p44 = scmp.eq.s32.totalorder %s14, 1
    %p45 = por %p43, %p44
    %p46 = scmp.ne.s32.totalorder %s38, %s41
    %p47 = scmp.eq.s32.totalorder %s14, 0
    %p48 = por %p46, %p47
    %p49 = scmp.ne.s32.totalorder %s38, %s41
    %p50 = scmp.eq.s32.totalorder %s19, 1
    %p51 = por %p49, %p50
    %p52 = scmp.ne.s32.totalorder %s41, %s42
    %p53 = scmp.eq.s32.totalorder %s19, 0
    %p54 = por %p52, %p53
    %p55 = scmp.ne.s32.totalorder %s41, %s42
    %p56 = scmp.eq.s32.totalorder %s20, 1
    %p57 = por %p55, %p56
    %p59 = scmp.ne.s32.totalorder %s42, %s58
    %p60 = scmp.eq.s32.totalorder %s20, 0
    %p61 = por %p59, %p60
    %s62 = ssub.s32 %s21, %s33
    %s63 = ssub.s32 %s22, %s29
    %s64 = sor.u32 %s62, %s63
    %p65 = scmp.eq.s32.totalorder %s64, 0
    %s67 = sadd.s32 %s66, 1
    %s68 = scalar_select %p65, %s66, %s67
    %p71 = pneg %p65
    %p72 = scmp.eq.s32.totalorder %s14, 1
    %p73 = por %p71, %p72
    %p74 = scmp.ne.s32.totalorder %s66, %s69
    %p75 = scmp.eq.s32.totalorder %s14, 0
    %p76 = por %p74, %p75
    %p77 = scmp.ne.s32.totalorder %s66, %s69
    %p78 = scmp.eq.s32.totalorder %s19, 1
    %p79 = por %p77, %p78
    %p80 = scmp.ne.s32.totalorder %s69, %s70
    %p81 = scmp.eq.s32.totalorder %s19, 0
    %p82 = por %p80, %p81
    %p83 = scmp.ne.s32.totalorder %s69, %s70
    %p84 = scmp.eq.s32.totalorder %s20, 1
    %p85 = por %p83, %p84
    %p87 = scmp.ne.s32.totalorder %s70, %s86
    %p88 = scmp.eq.s32.totalorder %s20, 0
    %p89 = por %p87, %p88
    %s91 = sadd.s32 %s90, 1
    %p94 = scmp.eq.s32.totalorder %s14, 1
    %p95 = scmp.ne.s32.totalorder %s90, %s92
    %p96 = scmp.eq.s32.totalorder %s14, 0
    %p97 = por %p95, %p96
    %p98 = scmp.ne.s32.totalorder %s90, %s92
    %p99 = scmp.eq.s32.totalorder %s19, 1
    %p100 = por %p98, %p99
    %p101 = scmp.ne.s32.totalorder %s92, %s93
    %p102 = scmp.eq.s32.totalorder %s19, 0
    %p103 = por %p101, %p102
    %p104 = scmp.ne.s32.totalorder %s92, %s93
    %p105 = scmp.eq.s32.totalorder %s20, 1
    %p106 = por %p104, %p105
    %p108 = scmp.ne.s32.totalorder %s93, %s107
    %p109 = scmp.eq.s32.totalorder %s20, 0
    %p110 = por %p108, %p109
    %s112 = sadd.s32 %s111, 1
    %p115 = scmp.eq.s32.totalorder %s14, 1
    %p116 = scmp.ne.s32.totalorder %s111, %s113
    %p117 = scmp.eq.s32.totalorder %s14, 0
    %p118 = por %p116, %p117
    %p119 = scmp.ne.s32.totalorder %s111, %s113
    %p120 = scmp.eq.s32.totalorder %s19, 1
    %p121 = por %p119, %p120
    %p122 = scmp.ne.s32.totalorder %s113, %s114
    %p123 = scmp.eq.s32.totalorder %s19, 0
    %p124 = por %p122, %p123
    %p125 = scmp.ne.s32.totalorder %s113, %s114
    %p126 = scmp.eq.s32.totalorder %s20, 1
    %p127 = por %p125, %p126
    %p129 = scmp.ne.s32.totalorder %s114, %s128
    %p130 = scmp.eq.s32.totalorder %s20, 0
    %p131 = por %p129, %p130
    %s133 = sadd.s32 %s132, 1
    %p136 = scmp.eq.s32.totalorder %s14, 1
    %p137 = scmp.ne.s32.totalorder %s132, %s134
    %p138 = scmp.eq.s32.totalorder %s14, 0
    %p139 = por %p137, %p138
    %p140 = scmp.ne.s32.totalorder %s132, %s134
    %p141 = scmp.eq.s32.totalorder %s19, 1
    %p142 = por %p140, %p141
    %p143 = scmp.ne.s32.totalorder %s134, %s135
    %p144 = scmp.eq.s32.totalorder %s19, 0
    %p145 = por %p143, %p144
    %p146 = scmp.ne.s32.totalorder %s134, %s135
    %p147 = scmp.eq.s32.totalorder %s20, 1
    %p148 = por %p146, %p147
    %p150 = scmp.ne.s32.totalorder %s135, %s149
    %p151 = scmp.eq.s32.totalorder %s20, 0
    %p152 = por %p150, %p151
    %s154 = sadd.s32 %s153, 1
    %p157 = scmp.eq.s32.totalorder %s14, 1
    %p158 = scmp.ne.s32.totalorder %s153, %s155
    %p159 = scmp.eq.s32.totalorder %s14, 0
    %p160 = por %p158, %p159
    %p161 = scmp.ne.s32.totalorder %s153, %s155
    %p162 = scmp.eq.s32.totalorder %s19, 1
    %p163 = por %p161, %p162
    %p164 = scmp.ne.s32.totalorder %s155, %s156
    %p165 = scmp.eq.s32.totalorder %s19, 0
    %p166 = por %p164, %p165
    %p167 = scmp.ne.s32.totalorder %s155, %s156
    %p168 = scmp.eq.s32.totalorder %s20, 1
    %p169 = por %p167, %p168
    %p171 = scmp.ne.s32.totalorder %s156, %s170
    %p172 = scmp.eq.s32.totalorder %s20, 0
    %p173 = por %p171, %p172
    %s174 = ssub.s32 %s21, %s33
    %s175 = ssub.s32 %s22, %s29
    %s176 = sor.u32 %s174, %s175
    %p177 = scmp.eq.s32.totalorder %s176, 0
    %s179 = sadd.s32 %s178, 1
    %s180 = scalar_select %p177, %s178, %s179
    %p183 = pneg %p177
    %p184 = scmp.eq.s32.totalorder %s14, 1
    %p185 = por %p183, %p184
    %p186 = scmp.ne.s32.totalorder %s178, %s181
    %p187 = scmp.eq.s32.totalorder %s14, 0
    %p188 = por %p186, %p187
    %p189 = scmp.ne.s32.totalorder %s178, %s181
    %p190 = scmp.eq.s32.totalorder %s19, 1
    %p191 = por %p189, %p190
    %p192 = scmp.ne.s32.totalorder %s181, %s182
    %p193 = scmp.eq.s32.totalorder %s19, 0
    %p194 = por %p192, %p193
    %p195 = scmp.ne.s32.totalorder %s181, %s182
    %p196 = scmp.eq.s32.totalorder %s20, 1
    %p197 = por %p195, %p196
    %p199 = scmp.ne.s32.totalorder %s182, %s198
    %p200 = scmp.eq.s32.totalorder %s20, 0
    %p201 = por %p199, %p200
    %s202 = ssub.s32 %s21, %s33
    %s203 = ssub.s32 %s22, %s29
    %s204 = sor.u32 %s202, %s203
    %p205 = scmp.eq.s32.totalorder %s204, 0
    %s207 = sadd.s32 %s206, 1
    %s208 = scalar_select %p205, %s206, %s207
    %p211 = pneg %p205
    %p212 = scmp.eq.s32.totalorder %s14, 1
    %p213 = por %p211, %p212
    %p214 = scmp.ne.s32.totalorder %s206, %s209
    %p215 = scmp.eq.s32.totalorder %s14, 0
    %p216 = por %p214, %p215
    %p217 = scmp.ne.s32.totalorder %s206, %s209
    %p218 = scmp.eq.s32.totalorder %s19, 1
    %p219 = por %p217, %p218
    %p220 = scmp.ne.s32.totalorder %s209, %s210
    %p221 = scmp.eq.s32.totalorder %s19, 0
    %p222 = por %p220, %p221
    %p223 = scmp.ne.s32.totalorder %s209, %s210
    %p224 = scmp.eq.s32.totalorder %s20, 1
    %p225 = por %p223, %p224
    %p227 = scmp.ne.s32.totalorder %s210, %s226
    %p228 = scmp.eq.s32.totalorder %s20, 0
    %p229 = por %p227, %p228
    %p230 = scmp.le.s32.totalorder 1, %s14
    %p231 = scmp.lt.s32.totalorder %s14, 3
    %p232 = pnand %p230, %p231
    %p233 = pneg %p232
    // Predicated region
    $region9: #{down_forward.3} parent=5 // pred_check
      _
    $region10: #{down_forward.3} parent=5 // pred_check_branch
      %235 = sbr.rel (%p232) target = $region12
    $region11: #{down_forward.3} parent=5 // pred_region
      %s236 = ssub.s32 %s14, 1
      // Predicated region
      $region13: #{down_forward.3} parent=11 // pred_check
        %p237 = pneg %p103
      $region14: #{down_forward.3} parent=11 // pred_check_branch
        %239 = sbr.rel (%p237) target = $region16
      $region15: #{down_forward.3} parent=11 // pred_region
        _
      $region16: #{down_forward.3} parent=11 // pred_fallthru
        _
      // Predicated region
      $region17: #{down_forward.3} parent=11 // pred_check
        %p240 = pneg %p124
      $region18: #{down_forward.3} parent=11 // pred_check_branch
        %242 = sbr.rel (%p240) target = $region20
      $region19: #{down_forward.3} parent=11 // pred_region
        _
      $region20: #{down_forward.3} parent=11 // pred_fallthru
        _
      // Predicated region
      $region21: #{down_forward.3} parent=11 // pred_check
        %p243 = pneg %p145
      $region22: #{down_forward.3} parent=11 // pred_check_branch
        %245 = sbr.rel (%p243) target = $region24
      $region23: #{down_forward.3} parent=11 // pred_region
        _
      $region24: #{down_forward.3} parent=11 // pred_fallthru
        _
      // Predicated region
      $region25: #{down_forward.3} parent=11 // pred_check
        %p246 = pneg %p166
      $region26: #{down_forward.3} parent=11 // pred_check_branch
        %248 = sbr.rel (%p246) target = $region28
      $region27: #{down_forward.3} parent=11 // pred_region
        _
      $region28: #{down_forward.3} parent=11 // pred_fallthru
        _
    $region12: #{down_forward.3} parent=5 // pred_fallthru
      _
    %p249 = scmp.lt.s32.totalorder %s14, 2
    // Predicated region
    $region29: #{down_forward.3} parent=5 // pred_check
      %p250 = pneg %p249
    $region30: #{down_forward.3} parent=5 // pred_check_branch
      %252 = sbr.rel (%p250) target = $region32
    $region31: #{down_forward.3} parent=5 // pred_region
      // Predicated region
      $region33: #{down_forward.3} parent=31 // pred_check
        %p253 = pneg %p48
      $region34: #{down_forward.3} parent=31 // pred_check_branch
        %255 = sbr.rel (%p253) target = $region36
      $region35: #{down_forward.3} parent=31 // pred_region
        %s256 = smul.u32 8, %s22
        %p257 = scmp.lt.s32.totalorder %s21, 1
        %s258 = scalar_select %p257, %s21, 1
        %p259 = scmp.lt.s32.totalorder %s256, 7
        %s260 = scalar_select %p259, %s256, 7
        %s261 = smul.addr %s258, 8
        %s262 = sadd.s32 %s260, %s261
        %s263 = smul.addr %s262, 4
        %s264 = scalar_lea.vmem %s0, %s263
        %s265 = smul.u32 8, %s22
      $region36: #{down_forward.3} parent=31 // pred_fallthru
        _
      // Predicated region
      $region37: #{down_forward.3} parent=31 // pred_check
        %p266 = pneg %p76
      $region38: #{down_forward.3} parent=31 // pred_check_branch
        %268 = sbr.rel (%p266) target = $region40
      $region39: #{down_forward.3} parent=31 // pred_region
        %p269 = scmp.lt.s32.totalorder %s21, 1
        %s270 = scalar_select %p269, %s21, 1
        %p271 = scmp.lt.s32.totalorder %s22, 0
        %s272 = scalar_select %p271, %s22, 0
        %s273 = smul.addr %s272, 2
        %s274 = smul.addr %s270, 2
        %s275 = sadd.s32 %s273, %s274
        %s276 = smul.addr %s275, 4
        %s277 = scalar_lea.vmem %s1, %s276
      $region40: #{down_forward.3} parent=31 // pred_fallthru
        _
    $region32: #{down_forward.3} parent=5 // pred_fallthru
      _
    %p278 = scmp.le.s32.totalorder 1, %s14
    %p279 = scmp.lt.s32.totalorder %s14, 3
    %p280 = pnand %p278, %p279
    %p281 = pneg %p280
    // Predicated region
    $region41: #{down_forward.3} parent=5 // pred_check
      _
    $region42: #{down_forward.3} parent=5 // pred_check_branch
      %283 = sbr.rel (%p280) target = $region44
    $region43: #{down_forward.3} parent=5 // pred_region
      %s284 = ssub.s32 %s14, 1
      %s285 = smul.u32 8, %s24
      %p286 = scmp.lt.s32.totalorder %s23, 1
      %s287 = scalar_select %p286, %s23, 1
      %p288 = scmp.lt.s32.totalorder %s285, 7
      %s289 = scalar_select %p288, %s285, 7
      %s290 = smul.addr %s287, 8
      %s291 = sadd.s32 %s289, %s290
      %s292 = smul.addr %s291, 4
      %s293 = scalar_lea.vmem %s0, %s292
      %p294 = pneg %p54
      %p295 = pneg %p51
      %p296 = scmp.lt.s32.totalorder %s23, 1
      %s297 = scalar_select %p296, %s23, 1
      %p298 = scmp.lt.s32.totalorder %s24, 0
      %s299 = scalar_select %p298, %s24, 0
      %s300 = smul.addr %s299, 2
      %s301 = smul.addr %s297, 2
      %s302 = sadd.s32 %s300, %s301
      %s303 = smul.addr %s302, 4
      %s304 = scalar_lea.vmem %s1, %s303
      %p305 = pneg %p82
      %p306 = pneg %p79
      %p307 = pneg %p103
      %p308 = pneg %p100
      %p309 = pneg %p124
      %p310 = pneg %p121
      %p311 = pneg %p145
      %p312 = pneg %p142
      %p313 = pneg %p166
      %p314 = pneg %p163
      %p315 = pneg %p194
      %p316 = pneg %p191
      %s317 = smul.u32 8, %s24
      %p318 = scmp.lt.s32.totalorder %s23, 1
      %s319 = scalar_select %p318, %s23, 1
      %p320 = scmp.lt.s32.totalorder %s317, 7
      %s321 = scalar_select %p320, %s317, 7
      %s322 = smul.addr %s319, 8
      %s323 = sadd.s32 %s321, %s322
      %s324 = smul.addr %s323, 4
      %s325 = scalar_lea.vmem %s6, %s324
      %p326 = pneg %p222
      %p327 = pneg %p219
      %p328 = scmp.lt.s32.totalorder %s23, 1
      %s329 = scalar_select %p328, %s23, 1
      %p330 = scmp.lt.s32.totalorder %s24, 0
      %s331 = scalar_select %p330, %s24, 0
      %s332 = sadd.s32 %s331, %s329
      %s333 = smul.addr %s332, 2
      %s334 = scalar_lea.vmem %s7, %s333
      %s335 = smul.u32 8, %s24
      %p336 = scmp.lt.s32.totalorder %s23, 1
      %s337 = scalar_select %p336, %s23, 1
      %p338 = scmp.lt.s32.totalorder %s335, 7
      %s339 = scalar_select %p338, %s335, 7
      %s340 = smul.addr %s337, 8
      %s341 = sadd.s32 %s339, %s340
      %s342 = smul.addr %s341, 4
      %s343 = scalar_lea.vmem %s0, %s342
      %s344 = smul.u32 8, %s24
      %p345 = scmp.lt.s32.totalorder %s23, 1
      %s346 = scalar_select %p345, %s23, 1
      %p347 = scmp.lt.s32.totalorder %s24, 0
      %s348 = scalar_select %p347, %s24, 0
      %s349 = smul.addr %s348, 2
      %s350 = smul.addr %s346, 2
      %s351 = sadd.s32 %s349, %s350
      %s352 = smul.addr %s351, 4
      %s353 = scalar_lea.vmem %s1, %s352
      %s354 = smul.u32 8, %s24
      %p355 = scmp.lt.s32.totalorder %s23, 1
      %s356 = scalar_select %p355, %s23, 1
      %p357 = scmp.lt.s32.totalorder %s354, 7
      %s358 = scalar_select %p357, %s354, 7
      %s359 = smul.addr %s356, 8
      %s360 = sadd.s32 %s358, %s359
      %s361 = smul.addr %s360, 4
      %s362 = scalar_lea.vmem %s6, %s361
      %s363 = smul.u32 8, %s24
      %p364 = scmp.lt.s32.totalorder %s23, 1
      %s365 = scalar_select %p364, %s23, 1
      %p366 = scmp.lt.s32.totalorder %s24, 0
      %s367 = scalar_select %p366, %s24, 0
      %s368 = sadd.s32 %s367, %s365
      %s369 = smul.addr %s368, 2
      %s370 = scalar_lea.vmem %s7, %s369
      %v372 = vld [vmem:[%s343] sm:$0xf]
      %v373 = vld [vmem:[%s343 + $0x4] sm:$0xf]
      %v374 = vld [vmem:[%s343 + $0x8] sm:$0xf]
      %v375 = vld [vmem:[%s343 + $0xc] sm:$0xf]
      %v376 = vld [vmem:[%s343 + $0x10] sm:$0xf]
      %v377 = vld [vmem:[%s343 + $0x14] sm:$0xf]
      %v378 = vld [vmem:[%s343 + $0x18] sm:$0xf]
      %v379 = vld [vmem:[%s343 + $0x1c] sm:$0xf]
      %v380 = vunpack.c.l.bf16 %v372
      %v381 = vunpack.c.l.bf16 %v373
      %v382 = vunpack.c.l.bf16 %v374
      %v383 = vunpack.c.l.bf16 %v375
      %v384 = vunpack.c.l.bf16 %v376
      %v385 = vunpack.c.l.bf16 %v377
      %v386 = vunpack.c.l.bf16 %v378
      %v387 = vunpack.c.l.bf16 %v379
      %v388 = vld [vmem:[%s2] sm:$0x1]
      %v390 = vlaneseq
      %v391 = vshrl.u32 %v390, 7
      %v392 = vsub.s32 0, %v391
      %v393 = vrot.slane %v388, %v392
      %v395 = vmul.f32 %v380, %v393
      %v396 = vmul.f32 %v381, %v393
      %v397 = vmul.f32 %v382, %v393
      %v398 = vmul.f32 %v383, %v393
      %v399 = vmul.f32 %v384, %v393
      %v400 = vmul.f32 %v385, %v393
      %v401 = vmul.f32 %v386, %v393
      %v402 = vmul.f32 %v387, %v393
      %v403 = vld [vmem:[%s3] sm:$0x1]
      %v405 = vlaneseq
      %v406 = vshrl.u32 %v405, 7
      %v407 = vsub.s32 0, %v406
      %v408 = vrot.slane %v403, %v407
      %v410 = vadd.f32 %v395, %v408
      %v411 = vadd.f32 %v396, %v408
      %v412 = vadd.f32 %v397, %v408
      %v413 = vadd.f32 %v398, %v408
      %v414 = vadd.f32 %v399, %v408
      %v415 = vadd.f32 %v400, %v408
      %v416 = vadd.f32 %v401, %v408
      %v417 = vadd.f32 %v402, %v408
      %v418 = vmax.f32 %v410, 0.0
      %v419 = vmax.f32 %v411, 0.0
      %v420 = vmax.f32 %v412, 0.0
      %v421 = vmax.f32 %v413, 0.0
      %v422 = vmax.f32 %v414, 0.0
      %v423 = vmax.f32 %v415, 0.0
      %v424 = vmax.f32 %v416, 0.0
      %v425 = vmax.f32 %v417, 0.0
      %v426 = vpack.c.bf16 %v418, %v418
      %v427 = vpack.c.bf16 %v419, %v419
      %v428 = vpack.c.bf16 %v420, %v420
      %v429 = vpack.c.bf16 %v421, %v421
      %v430 = vpack.c.bf16 %v422, %v422
      %v431 = vpack.c.bf16 %v423, %v423
      %v432 = vpack.c.bf16 %v424, %v424
      %v433 = vpack.c.bf16 %v425, %v425
      %vm434 = vcmask 57344
      %vm435 = vsmask.f32 256
      %vm436 = vmand %vm434, %vm435
      %v437 = vld [vmem:[#allocation2] sm:$0x1]
      %v438 = vsel %vm436, 0, %v437
      %439 = vst [vmem:[#allocation2] sm:$0x1] %v438
      %v440 = vld [vmem:[#allocation2 + $0x8] sm:$0x1]
      %v441 = vsel %vm436, 0, %v440
      %442 = vst [vmem:[#allocation2 + $0x8] sm:$0x1] %v441
      %v443 = vld [vmem:[#allocation2 + $0x10] sm:$0x1]
      %v444 = vsel %vm436, 0, %v443
      %445 = vst [vmem:[#allocation2 + $0x10] sm:$0x1] %v444
      %v446 = vld [vmem:[#allocation2 + $0x18] sm:$0x1]
      %v447 = vsel %vm436, 0, %v446
      %448 = vst [vmem:[#allocation2 + $0x18] sm:$0x1] %v447
      %v449 = vld [vmem:[#allocation2 + $0x20] sm:$0x1]
      %v450 = vsel %vm436, 0, %v449
      %451 = vst [vmem:[#allocation2 + $0x20] sm:$0x1] %v450
      %v452 = vld [vmem:[#allocation2 + $0x28] sm:$0x1]
      %v453 = vsel %vm436, 0, %v452
      %454 = vst [vmem:[#allocation2 + $0x28] sm:$0x1] %v453
      %v455 = vld [vmem:[#allocation2 + $0x30] sm:$0x1]
      %v456 = vsel %vm436, 0, %v455
      %457 = vst [vmem:[#allocation2 + $0x30] sm:$0x1] %v456
      %v458 = vld [vmem:[#allocation2 + $0x38] sm:$0x1]
      %v459 = vsel %vm436, 0, %v458
      %460 = vst [vmem:[#allocation2 + $0x38] sm:$0x1] %v459
      %v461 = vld [vmem:[#allocation2 + $0x40] sm:$0x1]
      %v462 = vsel %vm436, 0, %v461
      %463 = vst [vmem:[#allocation2 + $0x40] sm:$0x1] %v462
      %v464 = vld [vmem:[#allocation2 + $0x48] sm:$0x1]
      %v465 = vsel %vm436, 0, %v464
      %466 = vst [vmem:[#allocation2 + $0x48] sm:$0x1] %v465
      %vm467 = vsmask.f32 7938
      %vm468 = vmand %vm434, %vm467
      %v469 = vld [vmem:[#allocation2 + $0x4] sm:$0x1]
      %v470 = vsel %vm468, 0, %v469
      %471 = vst [vmem:[#allocation2 + $0x4] sm:$0x1] %v470
      %v472 = vld [vmem:[#allocation2 + $0xc] sm:$0x1]
      %v473 = vsel %vm468, 0, %v472
      %474 = vst [vmem:[#allocation2 + $0xc] sm:$0x1] %v473
      %v475 = vld [vmem:[#allocation2 + $0x14] sm:$0x1]
      %v476 = vsel %vm468, 0, %v475
      %477 = vst [vmem:[#allocation2 + $0x14] sm:$0x1] %v476
      %v478 = vld [vmem:[#allocation2 + $0x1c] sm:$0x1]
      %v479 = vsel %vm468, 0, %v478
      %480 = vst [vmem:[#allocation2 + $0x1c] sm:$0x1] %v479
      %v481 = vld [vmem:[#allocation2 + $0x24] sm:$0x1]
      %v482 = vsel %vm468, 0, %v481
      %483 = vst [vmem:[#allocation2 + $0x24] sm:$0x1] %v482
      %v484 = vld [vmem:[#allocation2 + $0x2c] sm:$0x1]
      %v485 = vsel %vm468, 0, %v484
      %486 = vst [vmem:[#allocation2 + $0x2c] sm:$0x1] %v485
      %v487 = vld [vmem:[#allocation2 + $0x34] sm:$0x1]
      %v488 = vsel %vm468, 0, %v487
      %489 = vst [vmem:[#allocation2 + $0x34] sm:$0x1] %v488
      %v490 = vld [vmem:[#allocation2 + $0x3c] sm:$0x1]
      %v491 = vsel %vm468, 0, %v490
      %492 = vst [vmem:[#allocation2 + $0x3c] sm:$0x1] %v491
      %v493 = vld [vmem:[#allocation2 + $0x44] sm:$0x1]
      %v494 = vsel %vm468, 0, %v493
      %495 = vst [vmem:[#allocation2 + $0x44] sm:$0x1] %v494
      %v496 = vld [vmem:[#allocation2 + $0x4c] sm:$0x1]
      %v497 = vsel %vm468, 0, %v496
      %498 = vst [vmem:[#allocation2 + $0x4c] sm:$0x1] %v497
      %v499 = vld [vmem:[%s353] sm:$0xf]
      %v500 = vld [vmem:[%s353 + $0x4] sm:$0xf]
      %v502 = vshrl.u32 %v499, 16
      %v504 = vrot.slane %v502, 7
      %v505 = vshll.u32 %v499, 16
      %v507 = vor.u32 %v504, %v505
      %v508 = vrot.slane %v504, 4
      %vm511 = vcmask 60416
      %vm512 = vmand %vm511, %vm467
      %v513 = vld [vmem:[#allocation2] sm:$0xf]
      %v514 = vsel %vm512, %v507, %v513
      %515 = vst [vmem:[#allocation2] sm:$0xf] %v514
      %v516 = vld [vmem:[#allocation2 + $0x4] sm:$0x1]
      %v517 = vsel %vm436, %v508, %v516
      %518 = vst [vmem:[#allocation2 + $0x4] sm:$0x1] %v517
      %v520 = vshrl.u32 %v500, 16
      %v522 = vrot.slane %v520, 7
      %v523 = vshll.u32 %v500, 16
      %v525 = vor.u32 %v522, %v523
      %v526 = vrot.slane %v522, 4
      %s529 = scalar_lea.vmem [#allocation2], 72
      %v530 = vld [vmem:[%s529] sm:$0xf]
      %v531 = vsel %vm512, %v525, %v530
      %532 = vst [vmem:[%s529] sm:$0xf] %v531
      %v533 = vld [vmem:[%s529 + $0x4] sm:$0x1]
      %v534 = vsel %vm436, %v526, %v533
      %535 = vst [vmem:[%s529 + $0x4] sm:$0x1] %v534
      %v544 = vunpack.c.l.b16 %v426
      %v545 = vunpack.c.l.b16 %v427
      %v546 = vunpack.c.l.b16 %v428
      %v547 = vunpack.c.l.b16 %v429
      %v548 = vunpack.c.l.b16 %v430
      %v549 = vunpack.c.l.b16 %v431
      %v550 = vunpack.c.l.b16 %v432
      %v551 = vunpack.c.l.b16 %v433
      %v552 = vpack.c.b16 %v544, %v544
      %v553 = vpack.c.b16 %v545, %v545
      %v554 = vpack.c.b16 %v546, %v546
      %v555 = vpack.c.b16 %v547, %v547
      %v556 = vpack.c.b16 %v548, %v548
      %v557 = vpack.c.b16 %v549, %v549
      %v558 = vpack.c.b16 %v550, %v550
      %v559 = vpack.c.b16 %v551, %v551
      %v561 = vshrl.u32 %v552, 16
      %v563 = vrot.slane %v561, 7
      %v564 = vshll.u32 %v552, 16
      %v566 = vor.u32 %v563, %v564
      %v567 = vrot.slane %v563, 4
      %v569 = vshrl.u32 %v553, 16
      %v571 = vrot.slane %v569, 7
      %v572 = vshll.u32 %v553, 16
      %v574 = vor.u32 %v571, %v572
      %v575 = vrot.slane %v571, 4
      %v577 = vshrl.u32 %v554, 16
      %v579 = vrot.slane %v577, 7
      %v580 = vshll.u32 %v554, 16
      %v582 = vor.u32 %v579, %v580
      %v583 = vrot.slane %v579, 4
      %v585 = vshrl.u32 %v555, 16
      %v587 = vrot.slane %v585, 7
      %v588 = vshll.u32 %v555, 16
      %v590 = vor.u32 %v587, %v588
      %v591 = vrot.slane %v587, 4
      %v593 = vshrl.u32 %v556, 16
      %v595 = vrot.slane %v593, 7
      %v596 = vshll.u32 %v556, 16
      %v598 = vor.u32 %v595, %v596
      %v599 = vrot.slane %v595, 4
      %v601 = vshrl.u32 %v557, 16
      %v603 = vrot.slane %v601, 7
      %v604 = vshll.u32 %v557, 16
      %v606 = vor.u32 %v603, %v604
      %v607 = vrot.slane %v603, 4
      %v609 = vshrl.u32 %v558, 16
      %v611 = vrot.slane %v609, 7
      %v612 = vshll.u32 %v558, 16
      %v614 = vor.u32 %v611, %v612
      %v615 = vrot.slane %v611, 4
      %v617 = vshrl.u32 %v559, 16
      %v619 = vrot.slane %v617, 7
      %v620 = vshll.u32 %v559, 16
      %v622 = vor.u32 %v619, %v620
      %v623 = vrot.slane %v619, 4
      %s640 = scalar_lea.vmem [#allocation2], 8
      %v641 = vld [vmem:[%s640] sm:$0xf]
      %v642 = vsel %vm512, %v566, %v641
      %643 = vst [vmem:[%s640] sm:$0xf] %v642
      %v644 = vld [vmem:[%s640 + $0x4] sm:$0x1]
      %v645 = vsel %vm436, %v567, %v644
      %646 = vst [vmem:[%s640 + $0x4] sm:$0x1] %v645
      %v647 = vld [vmem:[%s640 + $0x8] sm:$0xf]
      %v648 = vsel %vm512, %v574, %v647
      %649 = vst [vmem:[%s640 + $0x8] sm:$0xf] %v648
      %v650 = vld [vmem:[%s640 + $0xc] sm:$0x1]
      %v651 = vsel %vm436, %v575, %v650
      %652 = vst [vmem:[%s640 + $0xc] sm:$0x1] %v651
      %v653 = vld [vmem:[%s640 + $0x10] sm:$0xf]
      %v654 = vsel %vm512, %v582, %v653
      %655 = vst [vmem:[%s640 + $0x10] sm:$0xf] %v654
      %v656 = vld [vmem:[%s640 + $0x14] sm:$0x1]
      %v657 = vsel %vm436, %v583, %v656
      %658 = vst [vmem:[%s640 + $0x14] sm:$0x1] %v657
      %v659 = vld [vmem:[%s640 + $0x18] sm:$0xf]
      %v660 = vsel %vm512, %v590, %v659
      %661 = vst [vmem:[%s640 + $0x18] sm:$0xf] %v660
      %v662 = vld [vmem:[%s640 + $0x1c] sm:$0x1]
      %v663 = vsel %vm436, %v591, %v662
      %664 = vst [vmem:[%s640 + $0x1c] sm:$0x1] %v663
      %v665 = vld [vmem:[%s640 + $0x20] sm:$0xf]
      %v666 = vsel %vm512, %v598, %v665
      %667 = vst [vmem:[%s640 + $0x20] sm:$0xf] %v666
      %v668 = vld [vmem:[%s640 + $0x24] sm:$0x1]
      %v669 = vsel %vm436, %v599, %v668
      %670 = vst [vmem:[%s640 + $0x24] sm:$0x1] %v669
      %v671 = vld [vmem:[%s640 + $0x28] sm:$0xf]
      %v672 = vsel %vm512, %v606, %v671
      %673 = vst [vmem:[%s640 + $0x28] sm:$0xf] %v672
      %v674 = vld [vmem:[%s640 + $0x2c] sm:$0x1]
      %v675 = vsel %vm436, %v607, %v674
      %676 = vst [vmem:[%s640 + $0x2c] sm:$0x1] %v675
      %v677 = vld [vmem:[%s640 + $0x30] sm:$0xf]
      %v678 = vsel %vm512, %v614, %v677
      %679 = vst [vmem:[%s640 + $0x30] sm:$0xf] %v678
      %v680 = vld [vmem:[%s640 + $0x34] sm:$0x1]
      %v681 = vsel %vm436, %v615, %v680
      %682 = vst [vmem:[%s640 + $0x34] sm:$0x1] %v681
      %v683 = vld [vmem:[%s640 + $0x38] sm:$0xf]
      %v684 = vsel %vm512, %v622, %v683
      %685 = vst [vmem:[%s640 + $0x38] sm:$0xf] %v684
      %v686 = vld [vmem:[%s640 + $0x3c] sm:$0x1]
      %v687 = vsel %vm436, %v623, %v686
      %688 = vst [vmem:[%s640 + $0x3c] sm:$0x1] %v687
      %v689 = vld [vmem:[#allocation2] sm:$0xf]
      %v690 = vld [vmem:[#allocation2 + $0x8] sm:$0xf]
      %v691 = vld [vmem:[#allocation2 + $0x10] sm:$0xf]
      %v692 = vld [vmem:[#allocation2 + $0x18] sm:$0xf]
      %v693 = vld [vmem:[#allocation2 + $0x20] sm:$0xf]
      %v694 = vld [vmem:[#allocation2 + $0x28] sm:$0xf]
      %v695 = vld [vmem:[#allocation2 + $0x30] sm:$0xf]
      %v696 = vld [vmem:[#allocation2 + $0x38] sm:$0xf]
      %v697 = vld [vmem:[%s4] sm:$0xf]
      %v706 = vunpack.c.l.b16 %v689
      %v707 = vunpack.c.l.b16 %v690
      %v708 = vunpack.c.l.b16 %v691
      %v709 = vunpack.c.l.b16 %v692
      %v710 = vunpack.c.l.b16 %v693
      %v711 = vunpack.c.l.b16 %v694
      %v712 = vunpack.c.l.b16 %v695
      %v713 = vunpack.c.l.b16 %v696
      %v714 = vpack.c.b16 %v707, %v706
      %v715 = vpack.c.b16 %v709, %v708
      %v716 = vpack.c.b16 %v711, %v710
      %v717 = vpack.c.b16 %v713, %v712
      %vm718 = vcmask 64512
      %v720 = vsel %vm718, %v714, 0
      %v723 = vsel %vm718, %v715, 0
      %v726 = vsel %vm718, %v716, 0
      %v729 = vsel %vm718, %v717, 0
      %vm731 = vcmask 1043456
      %v733 = vsel %vm731, %v697, 0
      %735 = vmatprep.subr.bf16.mxu0 0
      %736 = vmatpush1.bf16.msra.mxu0 0
      %737 = vmatprep.subr.bf16.mxu0 0
      %738 = vmatpush1.bf16.msra.mxu0 0
      %739 = vmatprep.subr.bf16.mxu0 0
      %740 = vmatpush1.bf16.msra.mxu0 0
      %741 = vmatprep.subr.bf16.mxu0 0
      %742 = vmatpush1.bf16.msra.mxu0 0
      %743 = vmatprep.subr.bf16.mxu0 0
      %744 = vmatpush1.bf16.msra.mxu0 0
      %745 = vmatprep.subr.bf16.mxu0 0
      %746 = vmatpush1.bf16.msra.mxu0 0
      %747 = vmatprep.subr.bf16.mxu0 0
      %748 = vmatpush1.bf16.msra.mxu0 0
      %749 = vmatprep.subr.bf16.mxu0 0
      %750 = vmatpush1.bf16.msra.mxu0 %v733
      %751 = vmatprep.subr.bf16.mxu0 0
      %752 = vmatpush2.bf16.msra.mxu0 0
      %753 = vmatprep.subr.bf16.mxu0 0
      %754 = vmatpush2.bf16.msra.mxu0 0
      %755 = vmatprep.subr.bf16.mxu0 0
      %756 = vmatpush2.bf16.msra.mxu0 0
      %757 = vmatprep.subr.bf16.mxu0 0
      %758 = vmatpush2.bf16.msra.mxu0 0
      %759 = vmatprep.subr.bf16.mxu0 0
      %760 = vmatpush2.bf16.msra.mxu0 0
      %761 = vmatprep.subr.bf16.mxu0 0
      %762 = vmatpush2.bf16.msra.mxu0 0
      %763 = vmatprep.subr.bf16.mxu0 0
      %764 = vmatpush2.bf16.msra.mxu0 0
      %765 = vmatprep.subr.bf16.mxu0 0
      %766 = vmatpush2.bf16.msra.mxu0 0
      %767 = vmatprep.mubr.bf16.mxu0 0
      %768 = vmatmul.mubr.bf16.gmra.mxu0 %v720
      %v769 = vpop.f32.mrf.mxu0
      %v770 = vadd.f32 0.0, %v769
      %v771 = vpop.f32.mrf.mxu0
      %v772 = vpop.f32.mrf.mxu0
      %v773 = vadd.f32 0.0, %v772
      %v774 = vpop.f32.mrf.mxu0
      %775 = vmatprep.mubr.bf16.mxu0 0
      %776 = vmatmul.mubr.bf16.gmra.mxu0 %v723
      %v777 = vpop.f32.mrf.mxu0
      %v778 = vadd.f32 0.0, %v777
      %v779 = vpop.f32.mrf.mxu0
      %v780 = vpop.f32.mrf.mxu0
      %v781 = vadd.f32 0.0, %v780
      %v782 = vpop.f32.mrf.mxu0
      %783 = vmatprep.mubr.bf16.mxu0 0
      %784 = vmatmul.mubr.bf16.gmra.mxu0 %v726
      %v785 = vpop.f32.mrf.mxu0
      %v786 = vadd.f32 0.0, %v785
      %v787 = vpop.f32.mrf.mxu0
      %v788 = vpop.f32.mrf.mxu0
      %v789 = vadd.f32 0.0, %v788
      %v790 = vpop.f32.mrf.mxu0
      %791 = vmatprep.mubr.bf16.mxu0 0
      %792 = vmatmul.mubr.bf16.gmra.mxu0 %v729
      %v793 = vpop.f32.mrf.mxu0
      %v794 = vadd.f32 0.0, %v793
      %v795 = vpop.f32.mrf.mxu0
      %v796 = vpop.f32.mrf.mxu0
      %v797 = vadd.f32 0.0, %v796
      %v798 = vpop.f32.mrf.mxu0
      %799 = vdwg.mxu0
      %800 = vst.msk [vmem:[#allocation3] sm:$0xff] %vm718, %v770
      %801 = vst.msk [vmem:[#allocation3 + $0x8] sm:$0xff] %vm718, %v773
      %802 = vst.msk [vmem:[#allocation3 + $0x10] sm:$0xff] %vm718, %v778
      %803 = vst.msk [vmem:[#allocation3 + $0x18] sm:$0xff] %vm718, %v781
      %804 = vst.msk [vmem:[#allocation3 + $0x20] sm:$0xff] %vm718, %v786
      %805 = vst.msk [vmem:[#allocation3 + $0x28] sm:$0xff] %vm718, %v789
      %806 = vst.msk [vmem:[#allocation3 + $0x30] sm:$0xff] %vm718, %v794
      %807 = vst.msk [vmem:[#allocation3 + $0x38] sm:$0xff] %vm718, %v797
      %v808 = vld [vmem:[#allocation2] sm:$0xf]
      %v809 = vld [vmem:[#allocation2 + $0x4] sm:$0x1]
      %v810 = vld [vmem:[#allocation2 + $0x8] sm:$0xf]
      %v811 = vld [vmem:[#allocation2 + $0xc] sm:$0x1]
      %v812 = vld [vmem:[#allocation2 + $0x10] sm:$0xf]
      %v813 = vld [vmem:[#allocation2 + $0x14] sm:$0x1]
      %v814 = vld [vmem:[#allocation2 + $0x18] sm:$0xf]
      %v815 = vld [vmem:[#allocation2 + $0x1c] sm:$0x1]
      %v816 = vld [vmem:[#allocation2 + $0x20] sm:$0xf]
      %v817 = vld [vmem:[#allocation2 + $0x24] sm:$0x1]
      %v818 = vld [vmem:[#allocation2 + $0x28] sm:$0xf]
      %v819 = vld [vmem:[#allocation2 + $0x2c] sm:$0x1]
      %v820 = vld [vmem:[#allocation2 + $0x30] sm:$0xf]
      %v821 = vld [vmem:[#allocation2 + $0x34] sm:$0x1]
      %v822 = vld [vmem:[#allocation2 + $0x38] sm:$0xf]
      %v823 = vld [vmem:[#allocation2 + $0x3c] sm:$0x1]
      %vm824 = vsmask.f32 3328
      %vm825 = vsmask.f32 7440
      %vm826 = vmor %vm824, %vm825
      %v828 = vshrl.u32 %v808, 16
      %v830 = vrot.slane %v828, 4
      %v831 = vshll.u32 %v808, 16
      %v833 = vrot.slane %v831, 5
      %v834 = vor.u32 %v830, %v833
      %v835 = vrot.slane %v834, 4
      %v837 = vshll.u32 %v809, 16
      %v839 = vrot.slane %v837, 5
      %v840 = vsel %vm826, %v835, %v839
      %v842 = vshrl.u32 %v810, 16
      %v844 = vrot.slane %v842, 4
      %v845 = vshll.u32 %v810, 16
      %v847 = vrot.slane %v845, 5
      %v848 = vor.u32 %v844, %v847
      %v849 = vrot.slane %v848, 4
      %v851 = vshll.u32 %v811, 16
      %v853 = vrot.slane %v851, 5
      %v854 = vsel %vm826, %v849, %v853
      %v856 = vshrl.u32 %v812, 16
      %v858 = vrot.slane %v856, 4
      %v859 = vshll.u32 %v812, 16
      %v861 = vrot.slane %v859, 5
      %v862 = vor.u32 %v858, %v861
      %v863 = vrot.slane %v862, 4
      %v865 = vshll.u32 %v813, 16
      %v867 = vrot.slane %v865, 5
      %v868 = vsel %vm826, %v863, %v867
      %v870 = vshrl.u32 %v814, 16
      %v872 = vrot.slane %v870, 4
      %v873 = vshll.u32 %v814, 16
      %v875 = vrot.slane %v873, 5
      %v876 = vor.u32 %v872, %v875
      %v877 = vrot.slane %v876, 4
      %v879 = vshll.u32 %v815, 16
      %v881 = vrot.slane %v879, 5
      %v882 = vsel %vm826, %v877, %v881
      %v884 = vshrl.u32 %v816, 16
      %v886 = vrot.slane %v884, 4
      %v887 = vshll.u32 %v816, 16
      %v889 = vrot.slane %v887, 5
      %v890 = vor.u32 %v886, %v889
      %v891 = vrot.slane %v890, 4
      %v893 = vshll.u32 %v817, 16
      %v895 = vrot.slane %v893, 5
      %v896 = vsel %vm826, %v891, %v895
      %v898 = vshrl.u32 %v818, 16
      %v900 = vrot.slane %v898, 4
      %v901 = vshll.u32 %v818, 16
      %v903 = vrot.slane %v901, 5
      %v904 = vor.u32 %v900, %v903
      %v905 = vrot.slane %v904, 4
      %v907 = vshll.u32 %v819, 16
      %v909 = vrot.slane %v907, 5
      %v910 = vsel %vm826, %v905, %v909
      %v912 = vshrl.u32 %v820, 16
      %v914 = vrot.slane %v912, 4
      %v915 = vshll.u32 %v820, 16
      %v917 = vrot.slane %v915, 5
      %v918 = vor.u32 %v914, %v917
      %v919 = vrot.slane %v918, 4
      %v921 = vshll.u32 %v821, 16
      %v923 = vrot.slane %v921, 5
      %v924 = vsel %vm826, %v919, %v923
      %v926 = vshrl.u32 %v822, 16
      %v928 = vrot.slane %v926, 4
      %v929 = vshll.u32 %v822, 16
      %v931 = vrot.slane %v929, 5
      %v932 = vor.u32 %v928, %v931
      %v933 = vrot.slane %v932, 4
      %v935 = vshll.u32 %v823, 16
      %v937 = vrot.slane %v935, 5
      %v938 = vsel %vm826, %v933, %v937
      %s939 = scalar_lea.vmem %s4, 4
      %v940 = vld [vmem:[%s939] sm:$0xf]
      %v941 = vunpack.c.l.b16 %v840
      %v942 = vunpack.c.l.b16 %v854
      %v943 = vunpack.c.l.b16 %v868
      %v944 = vunpack.c.l.b16 %v882
      %v945 = vunpack.c.l.b16 %v896
      %v946 = vunpack.c.l.b16 %v910
      %v947 = vunpack.c.l.b16 %v924
      %v948 = vunpack.c.l.b16 %v938
      %v949 = vpack.c.b16 %v942, %v941
      %v950 = vpack.c.b16 %v944, %v943
      %v951 = vpack.c.b16 %v946, %v945
      %v952 = vpack.c.b16 %v948, %v947
      %v954 = vsel %vm718, %v949, 0
      %v957 = vsel %vm718, %v950, 0
      %v960 = vsel %vm718, %v951, 0
      %v963 = vsel %vm718, %v952, 0
      %v966 = vsel %vm731, %v940, 0
      %968 = vmatprep.subr.bf16.mxu0 0
      %969 = vmatpush1.bf16.msra.mxu0 0
      %970 = vmatprep.subr.bf16.mxu0 0
      %971 = vmatpush1.bf16.msra.mxu0 0
      %972 = vmatprep.subr.bf16.mxu0 0
      %973 = vmatpush1.bf16.msra.mxu0 0
      %974 = vmatprep.subr.bf16.mxu0 0
      %975 = vmatpush1.bf16.msra.mxu0 0
      %976 = vmatprep.subr.bf16.mxu0 0
      %977 = vmatpush1.bf16.msra.mxu0 0
      %978 = vmatprep.subr.bf16.mxu0 0
      %979 = vmatpush1.bf16.msra.mxu0 0
      %980 = vmatprep.subr.bf16.mxu0 0
      %981 = vmatpush1.bf16.msra.mxu0 0
      %982 = vmatprep.subr.bf16.mxu0 0
      %983 = vmatpush1.bf16.msra.mxu0 %v966
      %984 = vmatprep.subr.bf16.mxu0 0
      %985 = vmatpush2.bf16.msra.mxu0 0
      %986 = vmatprep.subr.bf16.mxu0 0
      %987 = vmatpush2.bf16.msra.mxu0 0
      %988 = vmatprep.subr.bf16.mxu0 0
      %989 = vmatpush2.bf16.msra.mxu0 0
      %990 = vmatprep.subr.bf16.mxu0 0
      %991 = vmatpush2.bf16.msra.mxu0 0
      %992 = vmatprep.subr.bf16.mxu0 0
      %993 = vmatpush2.bf16.msra.mxu0 0
      %994 = vmatprep.subr.bf16.mxu0 0
      %995 = vmatpush2.bf16.msra.mxu0 0
      %996 = vmatprep.subr.bf16.mxu0 0
      %997 = vmatpush2.bf16.msra.mxu0 0
      %998 = vmatprep.subr.bf16.mxu0 0
      %999 = vmatpush2.bf16.msra.mxu0 0
      %1000 = vmatprep.mubr.bf16.mxu0 0
      %1001 = vmatmul.mubr.bf16.gmra.mxu0 %v954
      %v1002 = vpop.f32.mrf.mxu0
      %v1003 = vadd.f32 0.0, %v1002
      %v1004 = vpop.f32.mrf.mxu0
      %v1005 = vpop.f32.mrf.mxu0
      %v1006 = vadd.f32 0.0, %v1005
      %v1007 = vpop.f32.mrf.mxu0
      %1008 = vmatprep.mubr.bf16.mxu0 0
      %1009 = vmatmul.mubr.bf16.gmra.mxu0 %v957
      %v1010 = vpop.f32.mrf.mxu0
      %v1011 = vadd.f32 0.0, %v1010
      %v1012 = vpop.f32.mrf.mxu0
      %v1013 = vpop.f32.mrf.mxu0
      %v1014 = vadd.f32 0.0, %v1013
      %v1015 = vpop.f32.mrf.mxu0
      %1016 = vmatprep.mubr.bf16.mxu0 0
      %1017 = vmatmul.mubr.bf16.gmra.mxu0 %v960
      %v1018 = vpop.f32.mrf.mxu0
      %v1019 = vadd.f32 0.0, %v1018
      %v1020 = vpop.f32.mrf.mxu0
      %v1021 = vpop.f32.mrf.mxu0
      %v1022 = vadd.f32 0.0, %v1021
      %v1023 = vpop.f32.mrf.mxu0
      %1024 = vmatprep.mubr.bf16.mxu0 0
      %1025 = vmatmul.mubr.bf16.gmra.mxu0 %v963
      %v1026 = vpop.f32.mrf.mxu0
      %v1027 = vadd.f32 0.0, %v1026
      %v1028 = vpop.f32.mrf.mxu0
      %v1029 = vpop.f32.mrf.mxu0
      %v1030 = vadd.f32 0.0, %v1029
      %v1031 = vpop.f32.mrf.mxu0
      %1032 = vdwg.mxu0
      %v1033 = vld [vmem:[#allocation3] sm:$0xff]
      %v1034 = vld [vmem:[#allocation3 + $0x8] sm:$0xff]
      %v1035 = vld [vmem:[#allocation3 + $0x10] sm:$0xff]
      %v1036 = vld [vmem:[#allocation3 + $0x18] sm:$0xff]
      %v1037 = vld [vmem:[#allocation3 + $0x20] sm:$0xff]
      %v1038 = vld [vmem:[#allocation3 + $0x28] sm:$0xff]
      %v1039 = vld [vmem:[#allocation3 + $0x30] sm:$0xff]
      %v1040 = vld [vmem:[#allocation3 + $0x38] sm:$0xff]
      %v1041 = vadd.f32 %v1033, %v1003
      %v1042 = vadd.f32 %v1034, %v1006
      %v1043 = vadd.f32 %v1035, %v1011
      %v1044 = vadd.f32 %v1036, %v1014
      %v1045 = vadd.f32 %v1037, %v1019
      %v1046 = vadd.f32 %v1038, %v1022
      %v1047 = vadd.f32 %v1039, %v1027
      %v1048 = vadd.f32 %v1040, %v1030
      %1049 = vst.msk [vmem:[#allocation3] sm:$0xff] %vm718, %v1041
      %1050 = vst.msk [vmem:[#allocation3 + $0x8] sm:$0xff] %vm718, %v1042
      %1051 = vst.msk [vmem:[#allocation3 + $0x10] sm:$0xff] %vm718, %v1043
      %1052 = vst.msk [vmem:[#allocation3 + $0x18] sm:$0xff] %vm718, %v1044
      %1053 = vst.msk [vmem:[#allocation3 + $0x20] sm:$0xff] %vm718, %v1045
      %1054 = vst.msk [vmem:[#allocation3 + $0x28] sm:$0xff] %vm718, %v1046
      %1055 = vst.msk [vmem:[#allocation3 + $0x30] sm:$0xff] %vm718, %v1047
      %1056 = vst.msk [vmem:[#allocation3 + $0x38] sm:$0xff] %vm718, %v1048
      %v1057 = vld [vmem:[#allocation2] sm:$0xe]
      %v1058 = vld [vmem:[#allocation2 + $0x4] sm:$0x1]
      %v1059 = vld [vmem:[#allocation2 + $0x8] sm:$0xe]
      %v1060 = vld [vmem:[#allocation2 + $0xc] sm:$0x1]
      %v1061 = vld [vmem:[#allocation2 + $0x10] sm:$0xe]
      %v1062 = vld [vmem:[#allocation2 + $0x14] sm:$0x1]
      %v1063 = vld [vmem:[#allocation2 + $0x18] sm:$0xe]
      %v1064 = vld [vmem:[#allocation2 + $0x1c] sm:$0x1]
      %v1065 = vld [vmem:[#allocation2 + $0x20] sm:$0xe]
      %v1066 = vld [vmem:[#allocation2 + $0x24] sm:$0x1]
      %v1067 = vld [vmem:[#allocation2 + $0x28] sm:$0xe]
      %v1068 = vld [vmem:[#allocation2 + $0x2c] sm:$0x1]
      %v1069 = vld [vmem:[#allocation2 + $0x30] sm:$0xe]
      %v1070 = vld [vmem:[#allocation2 + $0x34] sm:$0x1]
      %v1071 = vld [vmem:[#allocation2 + $0x38] sm:$0xe]
      %v1072 = vld [vmem:[#allocation2 + $0x3c] sm:$0x1]
      %vm1089 = vcmask 1042432
      %vm1090 = vcmask 1046532
      %vm1091 = vmor %vm1089, %vm1090
      %v1092 = vrot.slane %v1057, 5
      %v1093 = vrot.slane %v1092, 4
      %v1094 = vrot.slane %v1058, 5
      %v1095 = vsel %vm1091, %v1093, %v1094
      %v1096 = vrot.slane %v1059, 5
      %v1097 = vrot.slane %v1096, 4
      %v1098 = vrot.slane %v1060, 5
      %v1099 = vsel %vm1091, %v1097, %v1098
      %v1100 = vrot.slane %v1061, 5
      %v1101 = vrot.slane %v1100, 4
      %v1102 = vrot.slane %v1062, 5
      %v1103 = vsel %vm1091, %v1101, %v1102
      %v1104 = vrot.slane %v1063, 5
      %v1105 = vrot.slane %v1104, 4
      %v1106 = vrot.slane %v1064, 5
      %v1107 = vsel %vm1091, %v1105, %v1106
      %v1108 = vrot.slane %v1065, 5
      %v1109 = vrot.slane %v1108, 4
      %v1110 = vrot.slane %v1066, 5
      %v1111 = vsel %vm1091, %v1109, %v1110
      %v1112 = vrot.slane %v1067, 5
      %v1113 = vrot.slane %v1112, 4
      %v1114 = vrot.slane %v1068, 5
      %v1115 = vsel %vm1091, %v1113, %v1114
      %v1116 = vrot.slane %v1069, 5
      %v1117 = vrot.slane %v1116, 4
      %v1118 = vrot.slane %v1070, 5
      %v1119 = vsel %vm1091, %v1117, %v1118
      %v1120 = vrot.slane %v1071, 5
      %v1121 = vrot.slane %v1120, 4
      %v1122 = vrot.slane %v1072, 5
      %v1123 = vsel %vm1091, %v1121, %v1122
      %s1124 = scalar_lea.vmem %s4, 8
      %v1125 = vld [vmem:[%s1124] sm:$0xf]
      %v1126 = vunpack.c.l.b16 %v1095
      %v1127 = vunpack.c.l.b16 %v1099
      %v1128 = vunpack.c.l.b16 %v1103
      %v1129 = vunpack.c.l.b16 %v1107
      %v1130 = vunpack.c.l.b16 %v1111
      %v1131 = vunpack.c.l.b16 %v1115
      %v1132 = vunpack.c.l.b16 %v1119
      %v1133 = vunpack.c.l.b16 %v1123
      %v1134 = vpack.c.b16 %v1127, %v1126
      %v1135 = vpack.c.b16 %v1129, %v1128
      %v1136 = vpack.c.b16 %v1131, %v1130
      %v1137 = vpack.c.b16 %v1133, %v1132
      %v1139 = vsel %vm718, %v1134, 0
      %v1142 = vsel %vm718, %v1135, 0
      %v1145 = vsel %vm718, %v1136, 0
      %v1148 = vsel %vm718, %v1137, 0
      %v1151 = vsel %vm731, %v1125, 0
      %1153 = vmatprep.subr.bf16.mxu0 0
      %1154 = vmatpush1.bf16.msra.mxu0 0
      %1155 = vmatprep.subr.bf16.mxu0 0
      %1156 = vmatpush1.bf16.msra.mxu0 0
      %1157 = vmatprep.subr.bf16.mxu0 0
      %1158 = vmatpush1.bf16.msra.mxu0 0
      %1159 = vmatprep.subr.bf16.mxu0 0
      %1160 = vmatpush1.bf16.msra.mxu0 0
      %1161 = vmatprep.subr.bf16.mxu0 0
      %1162 = vmatpush1.bf16.msra.mxu0 0
      %1163 = vmatprep.subr.bf16.mxu0 0
      %1164 = vmatpush1.bf16.msra.mxu0 0
      %1165 = vmatprep.subr.bf16.mxu0 0
      %1166 = vmatpush1.bf16.msra.mxu0 0
      %1167 = vmatprep.subr.bf16.mxu0 0
      %1168 = vmatpush1.bf16.msra.mxu0 %v1151
      %1169 = vmatprep.subr.bf16.mxu0 0
      %1170 = vmatpush2.bf16.msra.mxu0 0
      %1171 = vmatprep.subr.bf16.mxu0 0
      %1172 = vmatpush2.bf16.msra.mxu0 0
      %1173 = vmatprep.subr.bf16.mxu0 0
      %1174 = vmatpush2.bf16.msra.mxu0 0
      %1175 = vmatprep.subr.bf16.mxu0 0
      %1176 = vmatpush2.bf16.msra.mxu0 0
      %1177 = vmatprep.subr.bf16.mxu0 0
      %1178 = vmatpush2.bf16.msra.mxu0 0
      %1179 = vmatprep.subr.bf16.mxu0 0
      %1180 = vmatpush2.bf16.msra.mxu0 0
      %1181 = vmatprep.subr.bf16.mxu0 0
      %1182 = vmatpush2.bf16.msra.mxu0 0
      %1183 = vmatprep.subr.bf16.mxu0 0
      %1184 = vmatpush2.bf16.msra.mxu0 0
      %1185 = vmatprep.mubr.bf16.mxu0 0
      %1186 = vmatmul.mubr.bf16.gmra.mxu0 %v1139
      %v1187 = vpop.f32.mrf.mxu0
      %v1188 = vadd.f32 0.0, %v1187
      %v1189 = vpop.f32.mrf.mxu0
      %v1190 = vpop.f32.mrf.mxu0
      %v1191 = vadd.f32 0.0, %v1190
      %v1192 = vpop.f32.mrf.mxu0
      %1193 = vmatprep.mubr.bf16.mxu0 0
      %1194 = vmatmul.mubr.bf16.gmra.mxu0 %v1142
      %v1195 = vpop.f32.mrf.mxu0
      %v1196 = vadd.f32 0.0, %v1195
      %v1197 = vpop.f32.mrf.mxu0
      %v1198 = vpop.f32.mrf.mxu0
      %v1199 = vadd.f32 0.0, %v1198
      %v1200 = vpop.f32.mrf.mxu0
      %1201 = vmatprep.mubr.bf16.mxu0 0
      %1202 = vmatmul.mubr.bf16.gmra.mxu0 %v1145
      %v1203 = vpop.f32.mrf.mxu0
      %v1204 = vadd.f32 0.0, %v1203
      %v1205 = vpop.f32.mrf.mxu0
      %v1206 = vpop.f32.mrf.mxu0
      %v1207 = vadd.f32 0.0, %v1206
      %v1208 = vpop.f32.mrf.mxu0
      %1209 = vmatprep.mubr.bf16.mxu0 0
      %1210 = vmatmul.mubr.bf16.gmra.mxu0 %v1148
      %v1211 = vpop.f32.mrf.mxu0
      %v1212 = vadd.f32 0.0, %v1211
      %v1213 = vpop.f32.mrf.mxu0
      %v1214 = vpop.f32.mrf.mxu0
      %v1215 = vadd.f32 0.0, %v1214
      %v1216 = vpop.f32.mrf.mxu0
      %1217 = vdwg.mxu0
      %v1218 = vld [vmem:[#allocation3] sm:$0xff]
      %v1219 = vld [vmem:[#allocation3 + $0x8] sm:$0xff]
      %v1220 = vld [vmem:[#allocation3 + $0x10] sm:$0xff]
      %v1221 = vld [vmem:[#allocation3 + $0x18] sm:$0xff]
      %v1222 = vld [vmem:[#allocation3 + $0x20] sm:$0xff]
      %v1223 = vld [vmem:[#allocation3 + $0x28] sm:$0xff]
      %v1224 = vld [vmem:[#allocation3 + $0x30] sm:$0xff]
      %v1225 = vld [vmem:[#allocation3 + $0x38] sm:$0xff]
      %v1226 = vadd.f32 %v1218, %v1188
      %v1227 = vadd.f32 %v1219, %v1191
      %v1228 = vadd.f32 %v1220, %v1196
      %v1229 = vadd.f32 %v1221, %v1199
      %v1230 = vadd.f32 %v1222, %v1204
      %v1231 = vadd.f32 %v1223, %v1207
      %v1232 = vadd.f32 %v1224, %v1212
      %v1233 = vadd.f32 %v1225, %v1215
      %1234 = vst.msk [vmem:[#allocation3] sm:$0xff] %vm718, %v1226
      %1235 = vst.msk [vmem:[#allocation3 + $0x8] sm:$0xff] %vm718, %v1227
      %1236 = vst.msk [vmem:[#allocation3 + $0x10] sm:$0xff] %vm718, %v1228
      %1237 = vst.msk [vmem:[#allocation3 + $0x18] sm:$0xff] %vm718, %v1229
      %1238 = vst.msk [vmem:[#allocation3 + $0x20] sm:$0xff] %vm718, %v1230
      %1239 = vst.msk [vmem:[#allocation3 + $0x28] sm:$0xff] %vm718, %v1231
      %1240 = vst.msk [vmem:[#allocation3 + $0x30] sm:$0xff] %vm718, %v1232
      %1241 = vst.msk [vmem:[#allocation3 + $0x38] sm:$0xff] %vm718, %v1233
      %v1242 = vld [vmem:[%s640] sm:$0xf]
      %v1243 = vld [vmem:[%s640 + $0x8] sm:$0xf]
      %v1244 = vld [vmem:[%s640 + $0x10] sm:$0xf]
      %v1245 = vld [vmem:[%s640 + $0x18] sm:$0xf]
      %v1246 = vld [vmem:[%s640 + $0x20] sm:$0xf]
      %v1247 = vld [vmem:[%s640 + $0x28] sm:$0xf]
      %v1248 = vld [vmem:[%s640 + $0x30] sm:$0xf]
      %v1249 = vld [vmem:[%s640 + $0x38] sm:$0xf]
      %s1250 = scalar_lea.vmem %s4, 12
      %v1251 = vld [vmem:[%s1250] sm:$0xf]
      %v1260 = vunpack.c.l.b16 %v1242
      %v1261 = vunpack.c.l.b16 %v1243
      %v1262 = vunpack.c.l.b16 %v1244
      %v1263 = vunpack.c.l.b16 %v1245
      %v1264 = vunpack.c.l.b16 %v1246
      %v1265 = vunpack.c.l.b16 %v1247
      %v1266 = vunpack.c.l.b16 %v1248
      %v1267 = vunpack.c.l.b16 %v1249
      %v1268 = vpack.c.b16 %v1261, %v1260
      %v1269 = vpack.c.b16 %v1263, %v1262
      %v1270 = vpack.c.b16 %v1265, %v1264
      %v1271 = vpack.c.b16 %v1267, %v1266
      %v1273 = vsel %vm718, %v1268, 0
      %v1276 = vsel %vm718, %v1269, 0
      %v1279 = vsel %vm718, %v1270, 0
      %v1282 = vsel %vm718, %v1271, 0
      %v1285 = vsel %vm731, %v1251, 0
      %1287 = vmatprep.subr.bf16.mxu0 0
      %1288 = vmatpush1.bf16.msra.mxu0 0
      %1289 = vmatprep.subr.bf16.mxu0 0
      %1290 = vmatpush1.bf16.msra.mxu0 0
      %1291 = vmatprep.subr.bf16.mxu0 0
      %1292 = vmatpush1.bf16.msra.mxu0 0
      %1293 = vmatprep.subr.bf16.mxu0 0
      %1294 = vmatpush1.bf16.msra.mxu0 0
      %1295 = vmatprep.subr.bf16.mxu0 0
      %1296 = vmatpush1.bf16.msra.mxu0 0
      %1297 = vmatprep.subr.bf16.mxu0 0
      %1298 = vmatpush1.bf16.msra.mxu0 0
      %1299 = vmatprep.subr.bf16.mxu0 0
      %1300 = vmatpush1.bf16.msra.mxu0 0
      %1301 = vmatprep.subr.bf16.mxu0 0
      %1302 = vmatpush1.bf16.msra.mxu0 %v1285
      %1303 = vmatprep.subr.bf16.mxu0 0
      %1304 = vmatpush2.bf16.msra.mxu0 0
      %1305 = vmatprep.subr.bf16.mxu0 0
      %1306 = vmatpush2.bf16.msra.mxu0 0
      %1307 = vmatprep.subr.bf16.mxu0 0
      %1308 = vmatpush2.bf16.msra.mxu0 0
      %1309 = vmatprep.subr.bf16.mxu0 0
      %1310 = vmatpush2.bf16.msra.mxu0 0
      %1311 = vmatprep.subr.bf16.mxu0 0
      %1312 = vmatpush2.bf16.msra.mxu0 0
      %1313 = vmatprep.subr.bf16.mxu0 0
      %1314 = vmatpush2.bf16.msra.mxu0 0
      %1315 = vmatprep.subr.bf16.mxu0 0
      %1316 = vmatpush2.bf16.msra.mxu0 0
      %1317 = vmatprep.subr.bf16.mxu0 0
      %1318 = vmatpush2.bf16.msra.mxu0 0
      %1319 = vmatprep.mubr.bf16.mxu0 0
      %1320 = vmatmul.mubr.bf16.gmra.mxu0 %v1273
      %v1321 = vpop.f32.mrf.mxu0
      %v1322 = vadd.f32 0.0, %v1321
      %v1323 = vpop.f32.mrf.mxu0
      %v1324 = vpop.f32.mrf.mxu0
      %v1325 = vadd.f32 0.0, %v1324
      %v1326 = vpop.f32.mrf.mxu0
      %1327 = vmatprep.mubr.bf16.mxu0 0
      %1328 = vmatmul.mubr.bf16.gmra.mxu0 %v1276
      %v1329 = vpop.f32.mrf.mxu0
      %v1330 = vadd.f32 0.0, %v1329
      %v1331 = vpop.f32.mrf.mxu0
      %v1332 = vpop.f32.mrf.mxu0
      %v1333 = vadd.f32 0.0, %v1332
      %v1334 = vpop.f32.mrf.mxu0
      %1335 = vmatprep.mubr.bf16.mxu0 0
      %1336 = vmatmul.mubr.bf16.gmra.mxu0 %v1279
      %v1337 = vpop.f32.mrf.mxu0
      %v1338 = vadd.f32 0.0, %v1337
      %v1339 = vpop.f32.mrf.mxu0
      %v1340 = vpop.f32.mrf.mxu0
      %v1341 = vadd.f32 0.0, %v1340
      %v1342 = vpop.f32.mrf.mxu0
      %1343 = vmatprep.mubr.bf16.mxu0 0
      %1344 = vmatmul.mubr.bf16.gmra.mxu0 %v1282
      %v1345 = vpop.f32.mrf.mxu0
      %v1346 = vadd.f32 0.0, %v1345
      %v1347 = vpop.f32.mrf.mxu0
      %v1348 = vpop.f32.mrf.mxu0
      %v1349 = vadd.f32 0.0, %v1348
      %v1350 = vpop.f32.mrf.mxu0
      %1351 = vdwg.mxu0
      %v1352 = vld [vmem:[#allocation3] sm:$0xff]
      %v1353 = vld [vmem:[#allocation3 + $0x8] sm:$0xff]
      %v1354 = vld [vmem:[#allocation3 + $0x10] sm:$0xff]
      %v1355 = vld [vmem:[#allocation3 + $0x18] sm:$0xff]
      %v1356 = vld [vmem:[#allocation3 + $0x20] sm:$0xff]
      %v1357 = vld [vmem:[#allocation3 + $0x28] sm:$0xff]
      %v1358 = vld [vmem:[#allocation3 + $0x30] sm:$0xff]
      %v1359 = vld [vmem:[#allocation3 + $0x38] sm:$0xff]
      %v1360 = vadd.f32 %v1352, %v1322
      %v1361 = vadd.f32 %v1353, %v1325
      %v1362 = vadd.f32 %v1354, %v1330
      %v1363 = vadd.f32 %v1355, %v1333
      %v1364 = vadd.f32 %v1356, %v1338
      %v1365 = vadd.f32 %v1357, %v1341
      %v1366 = vadd.f32 %v1358, %v1346
      %v1367 = vadd.f32 %v1359, %v1349
      %1368 = vst.msk [vmem:[#allocation3] sm:$0xff] %vm718, %v1360
      %1369 = vst.msk [vmem:[#allocation3 + $0x8] sm:$0xff] %vm718, %v1361
      %1370 = vst.msk [vmem:[#allocation3 + $0x10] sm:$0xff] %vm718, %v1362
      %1371 = vst.msk [vmem:[#allocation3 + $0x18] sm:$0xff] %vm718, %v1363
      %1372 = vst.msk [vmem:[#allocation3 + $0x20] sm:$0xff] %vm718, %v1364
      %1373 = vst.msk [vmem:[#allocation3 + $0x28] sm:$0xff] %vm718, %v1365
      %1374 = vst.msk [vmem:[#allocation3 + $0x30] sm:$0xff] %vm718, %v1366
      %1375 = vst.msk [vmem:[#allocation3 + $0x38] sm:$0xff] %vm718, %v1367
      %v1376 = vld [vmem:[%s640] sm:$0xf]
      %v1377 = vld [vmem:[%s640 + $0x4] sm:$0x1]
      %v1378 = vld [vmem:[%s640 + $0x8] sm:$0xf]
      %v1379 = vld [vmem:[%s640 + $0xc] sm:$0x1]
      %v1380 = vld [vmem:[%s640 + $0x10] sm:$0xf]
      %v1381 = vld [vmem:[%s640 + $0x14] sm:$0x1]
      %v1382 = vld [vmem:[%s640 + $0x18] sm:$0xf]
      %v1383 = vld [vmem:[%s640 + $0x1c] sm:$0x1]
      %v1384 = vld [vmem:[%s640 + $0x20] sm:$0xf]
      %v1385 = vld [vmem:[%s640 + $0x24] sm:$0x1]
      %v1386 = vld [vmem:[%s640 + $0x28] sm:$0xf]
      %v1387 = vld [vmem:[%s640 + $0x2c] sm:$0x1]
      %v1388 = vld [vmem:[%s640 + $0x30] sm:$0xf]
      %v1389 = vld [vmem:[%s640 + $0x34] sm:$0x1]
      %v1390 = vld [vmem:[%s640 + $0x38] sm:$0xf]
      %v1391 = vld [vmem:[%s640 + $0x3c] sm:$0x1]
      %v1393 = vshrl.u32 %v1376, 16
      %v1395 = vrot.slane %v1393, 4
      %v1396 = vshll.u32 %v1376, 16
      %v1398 = vrot.slane %v1396, 5
      %v1399 = vor.u32 %v1395, %v1398
      %v1400 = vrot.slane %v1399, 4
      %v1402 = vshll.u32 %v1377, 16
      %v1404 = vrot.slane %v1402, 5
      %v1405 = vsel %vm826, %v1400, %v1404
      %v1407 = vshrl.u32 %v1378, 16
      %v1409 = vrot.slane %v1407, 4
      %v1410 = vshll.u32 %v1378, 16
      %v1412 = vrot.slane %v1410, 5
      %v1413 = vor.u32 %v1409, %v1412
      %v1414 = vrot.slane %v1413, 4
      %v1416 = vshll.u32 %v1379, 16
      %v1418 = vrot.slane %v1416, 5
      %v1419 = vsel %vm826, %v1414, %v1418
      %v1421 = vshrl.u32 %v1380, 16
      %v1423 = vrot.slane %v1421, 4
      %v1424 = vshll.u32 %v1380, 16
      %v1426 = vrot.slane %v1424, 5
      %v1427 = vor.u32 %v1423, %v1426
      %v1428 = vrot.slane %v1427, 4
      %v1430 = vshll.u32 %v1381, 16
      %v1432 = vrot.slane %v1430, 5
      %v1433 = vsel %vm826, %v1428, %v1432
      %v1435 = vshrl.u32 %v1382, 16
      %v1437 = vrot.slane %v1435, 4
      %v1438 = vshll.u32 %v1382, 16
      %v1440 = vrot.slane %v1438, 5
      %v1441 = vor.u32 %v1437, %v1440
      %v1442 = vrot.slane %v1441, 4
      %v1444 = vshll.u32 %v1383, 16
      %v1446 = vrot.slane %v1444, 5
      %v1447 = vsel %vm826, %v1442, %v1446
      %v1449 = vshrl.u32 %v1384, 16
      %v1451 = vrot.slane %v1449, 4
      %v1452 = vshll.u32 %v1384, 16
      %v1454 = vrot.slane %v1452, 5
      %v1455 = vor.u32 %v1451, %v1454
      %v1456 = vrot.slane %v1455, 4
      %v1458 = vshll.u32 %v1385, 16
      %v1460 = vrot.slane %v1458, 5
      %v1461 = vsel %vm826, %v1456, %v1460
      %v1463 = vshrl.u32 %v1386, 16
      %v1465 = vrot.slane %v1463, 4
      %v1466 = vshll.u32 %v1386, 16
      %v1468 = vrot.slane %v1466, 5
      %v1469 = vor.u32 %v1465, %v1468
      %v1470 = vrot.slane %v1469, 4
      %v1472 = vshll.u32 %v1387, 16
      %v1474 = vrot.slane %v1472, 5
      %v1475 = vsel %vm826, %v1470, %v1474
      %v1477 = vshrl.u32 %v1388, 16
      %v1479 = vrot.slane %v1477, 4
      %v1480 = vshll.u32 %v1388, 16
      %v1482 = vrot.slane %v1480, 5
      %v1483 = vor.u32 %v1479, %v1482
      %v1484 = vrot.slane %v1483, 4
      %v1486 = vshll.u32 %v1389, 16
      %v1488 = vrot.slane %v1486, 5
      %v1489 = vsel %vm826, %v1484, %v1488
      %v1491 = vshrl.u32 %v1390, 16
      %v1493 = vrot.slane %v1491, 4
      %v1494 = vshll.u32 %v1390, 16
      %v1496 = vrot.slane %v1494, 5
      %v1497 = vor.u32 %v1493, %v1496
      %v1498 = vrot.slane %v1497, 4
      %v1500 = vshll.u32 %v1391, 16
      %v1502 = vrot.slane %v1500, 5
      %v1503 = vsel %vm826, %v1498, %v1502
      %s1504 = scalar_lea.vmem %s4, 16
      %v1505 = vld [vmem:[%s1504] sm:$0xf]
      %v1506 = vunpack.c.l.b16 %v1405
      %v1507 = vunpack.c.l.b16 %v1419
      %v1508 = vunpack.c.l.b16 %v1433
      %v1509 = vunpack.c.l.b16 %v1447
      %v1510 = vunpack.c.l.b16 %v1461
      %v1511 = vunpack.c.l.b16 %v1475
      %v1512 = vunpack.c.l.b16 %v1489
      %v1513 = vunpack.c.l.b16 %v1503
      %v1514 = vpack.c.b16 %v1507, %v1506
      %v1515 = vpack.c.b16 %v1509, %v1508
      %v1516 = vpack.c.b16 %v1511, %v1510
      %v1517 = vpack.c.b16 %v1513, %v1512
      %v1519 = vsel %vm718, %v1514, 0
      %v1522 = vsel %vm718, %v1515, 0
      %v1525 = vsel %vm718, %v1516, 0
      %v1528 = vsel %vm718, %v1517, 0
      %v1531 = vsel %vm731, %v1505, 0
      %1533 = vmatprep.subr.bf16.mxu0 0
      %1534 = vmatpush1.bf16.msra.mxu0 0
      %1535 = vmatprep.subr.bf16.mxu0 0
      %1536 = vmatpush1.bf16.msra.mxu0 0
      %1537 = vmatprep.subr.bf16.mxu0 0
      %1538 = vmatpush1.bf16.msra.mxu0 0
      %1539 = vmatprep.subr.bf16.mxu0 0
      %1540 = vmatpush1.bf16.msra.mxu0 0
      %1541 = vmatprep.subr.bf16.mxu0 0
      %1542 = vmatpush1.bf16.msra.mxu0 0
      %1543 = vmatprep.subr.bf16.mxu0 0
      %1544 = vmatpush1.bf16.msra.mxu0 0
      %1545 = vmatprep.subr.bf16.mxu0 0
      %1546 = vmatpush1.bf16.msra.mxu0 0
      %1547 = vmatprep.subr.bf16.mxu0 0
      %1548 = vmatpush1.bf16.msra.mxu0 %v1531
      %1549 = vmatprep.subr.bf16.mxu0 0
      %1550 = vmatpush2.bf16.msra.mxu0 0
      %1551 = vmatprep.subr.bf16.mxu0 0
      %1552 = vmatpush2.bf16.msra.mxu0 0
      %1553 = vmatprep.subr.bf16.mxu0 0
      %1554 = vmatpush2.bf16.msra.mxu0 0
      %1555 = vmatprep.subr.bf16.mxu0 0
      %1556 = vmatpush2.bf16.msra.mxu0 0
      %1557 = vmatprep.subr.bf16.mxu0 0
      %1558 = vmatpush2.bf16.msra.mxu0 0
      %1559 = vmatprep.subr.bf16.mxu0 0
      %1560 = vmatpush2.bf16.msra.mxu0 0
      %1561 = vmatprep.subr.bf16.mxu0 0
      %1562 = vmatpush2.bf16.msra.mxu0 0
      %1563 = vmatprep.subr.bf16.mxu0 0
      %1564 = vmatpush2.bf16.msra.mxu0 0
      %1565 = vmatprep.mubr.bf16.mxu0 0
      %1566 = vmatmul.mubr.bf16.gmra.mxu0 %v1519
      %v1567 = vpop.f32.mrf.mxu0
      %v1568 = vadd.f32 0.0, %v1567
      %v1569 = vpop.f32.mrf.mxu0
      %v1570 = vpop.f32.mrf.mxu0
      %v1571 = vadd.f32 0.0, %v1570
      %v1572 = vpop.f32.mrf.mxu0
      %1573 = vmatprep.mubr.bf16.mxu0 0
      %1574 = vmatmul.mubr.bf16.gmra.mxu0 %v1522
      %v1575 = vpop.f32.mrf.mxu0
      %v1576 = vadd.f32 0.0, %v1575
      %v1577 = vpop.f32.mrf.mxu0
      %v1578 = vpop.f32.mrf.mxu0
      %v1579 = vadd.f32 0.0, %v1578
      %v1580 = vpop.f32.mrf.mxu0
      %1581 = vmatprep.mubr.bf16.mxu0 0
      %1582 = vmatmul.mubr.bf16.gmra.mxu0 %v1525
      %v1583 = vpop.f32.mrf.mxu0
      %v1584 = vadd.f32 0.0, %v1583
      %v1585 = vpop.f32.mrf.mxu0
      %v1586 = vpop.f32.mrf.mxu0
      %v1587 = vadd.f32 0.0, %v1586
      %v1588 = vpop.f32.mrf.mxu0
      %1589 = vmatprep.mubr.bf16.mxu0 0
      %1590 = vmatmul.mubr.bf16.gmra.mxu0 %v1528
      %v1591 = vpop.f32.mrf.mxu0
      %v1592 = vadd.f32 0.0, %v1591
      %v1593 = vpop.f32.mrf.mxu0
      %v1594 = vpop.f32.mrf.mxu0
      %v1595 = vadd.f32 0.0, %v1594
      %v1596 = vpop.f32.mrf.mxu0
      %1597 = vdwg.mxu0
      %v1598 = vld [vmem:[#allocation3] sm:$0xff]
      %v1599 = vld [vmem:[#allocation3 + $0x8] sm:$0xff]
      %v1600 = vld [vmem:[#allocation3 + $0x10] sm:$0xff]
      %v1601 = vld [vmem:[#allocation3 + $0x18] sm:$0xff]
      %v1602 = vld [vmem:[#allocation3 + $0x20] sm:$0xff]
      %v1603 = vld [vmem:[#allocation3 + $0x28] sm:$0xff]
      %v1604 = vld [vmem:[#allocation3 + $0x30] sm:$0xff]
      %v1605 = vld [vmem:[#allocation3 + $0x38] sm:$0xff]
      %v1606 = vadd.f32 %v1598, %v1568
      %v1607 = vadd.f32 %v1599, %v1571
      %v1608 = vadd.f32 %v1600, %v1576
      %v1609 = vadd.f32 %v1601, %v1579
      %v1610 = vadd.f32 %v1602, %v1584
      %v1611 = vadd.f32 %v1603, %v1587
      %v1612 = vadd.f32 %v1604, %v1592
      %v1613 = vadd.f32 %v1605, %v1595
      %1614 = vst.msk [vmem:[#allocation3] sm:$0xff] %vm718, %v1606
      %1615 = vst.msk [vmem:[#allocation3 + $0x8] sm:$0xff] %vm718, %v1607
      %1616 = vst.msk [vmem:[#allocation3 + $0x10] sm:$0xff] %vm718, %v1608
      %1617 = vst.msk [vmem:[#allocation3 + $0x18] sm:$0xff] %vm718, %v1609
      %1618 = vst.msk [vmem:[#allocation3 + $0x20] sm:$0xff] %vm718, %v1610
      %1619 = vst.msk [vmem:[#allocation3 + $0x28] sm:$0xff] %vm718, %v1611
      %1620 = vst.msk [vmem:[#allocation3 + $0x30] sm:$0xff] %vm718, %v1612
      %1621 = vst.msk [vmem:[#allocation3 + $0x38] sm:$0xff] %vm718, %v1613
      %v1622 = vld [vmem:[%s640] sm:$0xe]
      %v1623 = vld [vmem:[%s640 + $0x4] sm:$0x1]
      %v1624 = vld [vmem:[%s640 + $0x8] sm:$0xe]
      %v1625 = vld [vmem:[%s640 + $0xc] sm:$0x1]
      %v1626 = vld [vmem:[%s640 + $0x10] sm:$0xe]
      %v1627 = vld [vmem:[%s640 + $0x14] sm:$0x1]
      %v1628 = vld [vmem:[%s640 + $0x18] sm:$0xe]
      %v1629 = vld [vmem:[%s640 + $0x1c] sm:$0x1]
      %v1630 = vld [vmem:[%s640 + $0x20] sm:$0xe]
      %v1631 = vld [vmem:[%s640 + $0x24] sm:$0x1]
      %v1632 = vld [vmem:[%s640 + $0x28] sm:$0xe]
      %v1633 = vld [vmem:[%s640 + $0x2c] sm:$0x1]
      %v1634 = vld [vmem:[%s640 + $0x30] sm:$0xe]
      %v1635 = vld [vmem:[%s640 + $0x34] sm:$0x1]
      %v1636 = vld [vmem:[%s640 + $0x38] sm:$0xe]
      %v1637 = vld [vmem:[%s640 + $0x3c] sm:$0x1]
      %v1654 = vrot.slane %v1622, 5
      %v1655 = vrot.slane %v1654, 4
      %v1656 = vrot.slane %v1623, 5
      %v1657 = vsel %vm1091, %v1655, %v1656
      %v1658 = vrot.slane %v1624, 5
      %v1659 = vrot.slane %v1658, 4
      %v1660 = vrot.slane %v1625, 5
      %v1661 = vsel %vm1091, %v1659, %v1660
      %v1662 = vrot.slane %v1626, 5
      %v1663 = vrot.slane %v1662, 4
      %v1664 = vrot.slane %v1627, 5
      %v1665 = vsel %vm1091, %v1663, %v1664
      %v1666 = vrot.slane %v1628, 5
      %v1667 = vrot.slane %v1666, 4
      %v1668 = vrot.slane %v1629, 5
      %v1669 = vsel %vm1091, %v1667, %v1668
      %v1670 = vrot.slane %v1630, 5
      %v1671 = vrot.slane %v1670, 4
      %v1672 = vrot.slane %v1631, 5
      %v1673 = vsel %vm1091, %v1671, %v1672
      %v1674 = vrot.slane %v1632, 5
      %v1675 = vrot.slane %v1674, 4
      %v1676 = vrot.slane %v1633, 5
      %v1677 = vsel %vm1091, %v1675, %v1676
      %v1678 = vrot.slane %v1634, 5
      %v1679 = vrot.slane %v1678, 4
      %v1680 = vrot.slane %v1635, 5
      %v1681 = vsel %vm1091, %v1679, %v1680
      %v1682 = vrot.slane %v1636, 5
      %v1683 = vrot.slane %v1682, 4
      %v1684 = vrot.slane %v1637, 5
      %v1685 = vsel %vm1091, %v1683, %v1684
      %s1686 = scalar_lea.vmem %s4, 20
      %v1687 = vld [vmem:[%s1686] sm:$0xf]
      %v1688 = vunpack.c.l.b16 %v1657
      %v1689 = vunpack.c.l.b16 %v1661
      %v1690 = vunpack.c.l.b16 %v1665
      %v1691 = vunpack.c.l.b16 %v1669
      %v1692 = vunpack.c.l.b16 %v1673
      %v1693 = vunpack.c.l.b16 %v1677
      %v1694 = vunpack.c.l.b16 %v1681
      %v1695 = vunpack.c.l.b16 %v1685
      %v1696 = vpack.c.b16 %v1689, %v1688
      %v1697 = vpack.c.b16 %v1691, %v1690
      %v1698 = vpack.c.b16 %v1693, %v1692
      %v1699 = vpack.c.b16 %v1695, %v1694
      %v1701 = vsel %vm718, %v1696, 0
      %v1704 = vsel %vm718, %v1697, 0
      %v1707 = vsel %vm718, %v1698, 0
      %v1710 = vsel %vm718, %v1699, 0
      %v1713 = vsel %vm731, %v1687, 0
      %1715 = vmatprep.subr.bf16.mxu0 0
      %1716 = vmatpush1.bf16.msra.mxu0 0
      %1717 = vmatprep.subr.bf16.mxu0 0
      %1718 = vmatpush1.bf16.msra.mxu0 0
      %1719 = vmatprep.subr.bf16.mxu0 0
      %1720 = vmatpush1.bf16.msra.mxu0 0
      %1721 = vmatprep.subr.bf16.mxu0 0
      %1722 = vmatpush1.bf16.msra.mxu0 0
      %1723 = vmatprep.subr.bf16.mxu0 0
      %1724 = vmatpush1.bf16.msra.mxu0 0
      %1725 = vmatprep.subr.bf16.mxu0 0
      %1726 = vmatpush1.bf16.msra.mxu0 0
      %1727 = vmatprep.subr.bf16.mxu0 0
      %1728 = vmatpush1.bf16.msra.mxu0 0
      %1729 = vmatprep.subr.bf16.mxu0 0
      %1730 = vmatpush1.bf16.msra.mxu0 %v1713
      %1731 = vmatprep.subr.bf16.mxu0 0
      %1732 = vmatpush2.bf16.msra.mxu0 0
      %1733 = vmatprep.subr.bf16.mxu0 0
      %1734 = vmatpush2.bf16.msra.mxu0 0
      %1735 = vmatprep.subr.bf16.mxu0 0
      %1736 = vmatpush2.bf16.msra.mxu0 0
      %1737 = vmatprep.subr.bf16.mxu0 0
      %1738 = vmatpush2.bf16.msra.mxu0 0
      %1739 = vmatprep.subr.bf16.mxu0 0
      %1740 = vmatpush2.bf16.msra.mxu0 0
      %1741 = vmatprep.subr.bf16.mxu0 0
      %1742 = vmatpush2.bf16.msra.mxu0 0
      %1743 = vmatprep.subr.bf16.mxu0 0
      %1744 = vmatpush2.bf16.msra.mxu0 0
      %1745 = vmatprep.subr.bf16.mxu0 0
      %1746 = vmatpush2.bf16.msra.mxu0 0
      %1747 = vmatprep.mubr.bf16.mxu0 0
      %1748 = vmatmul.mubr.bf16.gmra.mxu0 %v1701
      %v1749 = vpop.f32.mrf.mxu0
      %v1750 = vadd.f32 0.0, %v1749
      %v1751 = vpop.f32.mrf.mxu0
      %v1752 = vpop.f32.mrf.mxu0
      %v1753 = vadd.f32 0.0, %v1752
      %v1754 = vpop.f32.mrf.mxu0
      %1755 = vmatprep.mubr.bf16.mxu0 0
      %1756 = vmatmul.mubr.bf16.gmra.mxu0 %v1704
      %v1757 = vpop.f32.mrf.mxu0
      %v1758 = vadd.f32 0.0, %v1757
      %v1759 = vpop.f32.mrf.mxu0
      %v1760 = vpop.f32.mrf.mxu0
      %v1761 = vadd.f32 0.0, %v1760
      %v1762 = vpop.f32.mrf.mxu0
      %1763 = vmatprep.mubr.bf16.mxu0 0
      %1764 = vmatmul.mubr.bf16.gmra.mxu0 %v1707
      %v1765 = vpop.f32.mrf.mxu0
      %v1766 = vadd.f32 0.0, %v1765
      %v1767 = vpop.f32.mrf.mxu0
      %v1768 = vpop.f32.mrf.mxu0
      %v1769 = vadd.f32 0.0, %v1768
      %v1770 = vpop.f32.mrf.mxu0
      %1771 = vmatprep.mubr.bf16.mxu0 0
      %1772 = vmatmul.mubr.bf16.gmra.mxu0 %v1710
      %v1773 = vpop.f32.mrf.mxu0
      %v1774 = vadd.f32 0.0, %v1773
      %v1775 = vpop.f32.mrf.mxu0
      %v1776 = vpop.f32.mrf.mxu0
      %v1777 = vadd.f32 0.0, %v1776
      %v1778 = vpop.f32.mrf.mxu0
      %1779 = vdwg.mxu0
      %v1780 = vld [vmem:[#allocation3] sm:$0xff]
      %v1781 = vld [vmem:[#allocation3 + $0x8] sm:$0xff]
      %v1782 = vld [vmem:[#allocation3 + $0x10] sm:$0xff]
      %v1783 = vld [vmem:[#allocation3 + $0x18] sm:$0xff]
      %v1784 = vld [vmem:[#allocation3 + $0x20] sm:$0xff]
      %v1785 = vld [vmem:[#allocation3 + $0x28] sm:$0xff]
      %v1786 = vld [vmem:[#allocation3 + $0x30] sm:$0xff]
      %v1787 = vld [vmem:[#allocation3 + $0x38] sm:$0xff]
      %v1788 = vadd.f32 %v1780, %v1750
      %v1789 = vadd.f32 %v1781, %v1753
      %v1790 = vadd.f32 %v1782, %v1758
      %v1791 = vadd.f32 %v1783, %v1761
      %v1792 = vadd.f32 %v1784, %v1766
      %v1793 = vadd.f32 %v1785, %v1769
      %v1794 = vadd.f32 %v1786, %v1774
      %v1795 = vadd.f32 %v1787, %v1777
      %1796 = vst.msk [vmem:[#allocation3] sm:$0xff] %vm718, %v1788
      %1797 = vst.msk [vmem:[#allocation3 + $0x8] sm:$0xff] %vm718, %v1789
      %1798 = vst.msk [vmem:[#allocation3 + $0x10] sm:$0xff] %vm718, %v1790
      %1799 = vst.msk [vmem:[#allocation3 + $0x18] sm:$0xff] %vm718, %v1791
      %1800 = vst.msk [vmem:[#allocation3 + $0x20] sm:$0xff] %vm718, %v1792
      %1801 = vst.msk [vmem:[#allocation3 + $0x28] sm:$0xff] %vm718, %v1793
      %1802 = vst.msk [vmem:[#allocation3 + $0x30] sm:$0xff] %vm718, %v1794
      %1803 = vst.msk [vmem:[#allocation3 + $0x38] sm:$0xff] %vm718, %v1795
      %s1804 = scalar_lea.vmem [#allocation2], 16
      %v1805 = vld [vmem:[%s1804] sm:$0xf]
      %v1806 = vld [vmem:[%s1804 + $0x8] sm:$0xf]
      %v1807 = vld [vmem:[%s1804 + $0x10] sm:$0xf]
      %v1808 = vld [vmem:[%s1804 + $0x18] sm:$0xf]
      %v1809 = vld [vmem:[%s1804 + $0x20] sm:$0xf]
      %v1810 = vld [vmem:[%s1804 + $0x28] sm:$0xf]
      %v1811 = vld [vmem:[%s1804 + $0x30] sm:$0xf]
      %v1812 = vld [vmem:[%s1804 + $0x38] sm:$0xf]
      %s1813 = scalar_lea.vmem %s4, 24
      %v1814 = vld [vmem:[%s1813] sm:$0xf]
      %v1823 = vunpack.c.l.b16 %v1805
      %v1824 = vunpack.c.l.b16 %v1806
      %v1825 = vunpack.c.l.b16 %v1807
      %v1826 = vunpack.c.l.b16 %v1808
      %v1827 = vunpack.c.l.b16 %v1809
      %v1828 = vunpack.c.l.b16 %v1810
      %v1829 = vunpack.c.l.b16 %v1811
      %v1830 = vunpack.c.l.b16 %v1812
      %v1831 = vpack.c.b16 %v1824, %v1823
      %v1832 = vpack.c.b16 %v1826, %v1825
      %v1833 = vpack.c.b16 %v1828, %v1827
      %v1834 = vpack.c.b16 %v1830, %v1829
      %v1836 = vsel %vm718, %v1831, 0
      %v1839 = vsel %vm718, %v1832, 0
      %v1842 = vsel %vm718, %v1833, 0
      %v1845 = vsel %vm718, %v1834, 0
      %v1848 = vsel %vm731, %v1814, 0
      %1850 = vmatprep.subr.bf16.mxu0 0
      %1851 = vmatpush1.bf16.msra.mxu0 0
      %1852 = vmatprep.subr.bf16.mxu0 0
      %1853 = vmatpush1.bf16.msra.mxu0 0
      %1854 = vmatprep.subr.bf16.mxu0 0
      %1855 = vmatpush1.bf16.msra.mxu0 0
      %1856 = vmatprep.subr.bf16.mxu0 0
      %1857 = vmatpush1.bf16.msra.mxu0 0
      %1858 = vmatprep.subr.bf16.mxu0 0
      %1859 = vmatpush1.bf16.msra.mxu0 0
      %1860 = vmatprep.subr.bf16.mxu0 0
      %1861 = vmatpush1.bf16.msra.mxu0 0
      %1862 = vmatprep.subr.bf16.mxu0 0
      %1863 = vmatpush1.bf16.msra.mxu0 0
      %1864 = vmatprep.subr.bf16.mxu0 0
      %1865 = vmatpush1.bf16.msra.mxu0 %v1848
      %1866 = vmatprep.subr.bf16.mxu0 0
      %1867 = vmatpush2.bf16.msra.mxu0 0
      %1868 = vmatprep.subr.bf16.mxu0 0
      %1869 = vmatpush2.bf16.msra.mxu0 0
      %1870 = vmatprep.subr.bf16.mxu0 0
      %1871 = vmatpush2.bf16.msra.mxu0 0
      %1872 = vmatprep.subr.bf16.mxu0 0
      %1873 = vmatpush2.bf16.msra.mxu0 0
      %1874 = vmatprep.subr.bf16.mxu0 0
      %1875 = vmatpush2.bf16.msra.mxu0 0
      %1876 = vmatprep.subr.bf16.mxu0 0
      %1877 = vmatpush2.bf16.msra.mxu0 0
      %1878 = vmatprep.subr.bf16.mxu0 0
      %1879 = vmatpush2.bf16.msra.mxu0 0
      %1880 = vmatprep.subr.bf16.mxu0 0
      %1881 = vmatpush2.bf16.msra.mxu0 0
      %1882 = vmatprep.mubr.bf16.mxu0 0
      %1883 = vmatmul.mubr.bf16.gmra.mxu0 %v1836
      %v1884 = vpop.f32.mrf.mxu0
      %v1885 = vadd.f32 0.0, %v1884
      %v1886 = vpop.f32.mrf.mxu0
      %v1887 = vpop.f32.mrf.mxu0
      %v1888 = vadd.f32 0.0, %v1887
      %v1889 = vpop.f32.mrf.mxu0
      %1890 = vmatprep.mubr.bf16.mxu0 0
      %1891 = vmatmul.mubr.bf16.gmra.mxu0 %v1839
      %v1892 = vpop.f32.mrf.mxu0
      %v1893 = vadd.f32 0.0, %v1892
      %v1894 = vpop.f32.mrf.mxu0
      %v1895 = vpop.f32.mrf.mxu0
      %v1896 = vadd.f32 0.0, %v1895
      %v1897 = vpop.f32.mrf.mxu0
      %1898 = vmatprep.mubr.bf16.mxu0 0
      %1899 = vmatmul.mubr.bf16.gmra.mxu0 %v1842
      %v1900 = vpop.f32.mrf.mxu0
      %v1901 = vadd.f32 0.0, %v1900
      %v1902 = vpop.f32.mrf.mxu0
      %v1903 = vpop.f32.mrf.mxu0
      %v1904 = vadd.f32 0.0, %v1903
      %v1905 = vpop.f32.mrf.mxu0
      %1906 = vmatprep.mubr.bf16.mxu0 0
      %1907 = vmatmul.mubr.bf16.gmra.mxu0 %v1845
      %v1908 = vpop.f32.mrf.mxu0
      %v1909 = vadd.f32 0.0, %v1908
      %v1910 = vpop.f32.mrf.mxu0
      %v1911 = vpop.f32.mrf.mxu0
      %v1912 = vadd.f32 0.0, %v1911
      %v1913 = vpop.f32.mrf.mxu0
      %1914 = vdwg.mxu0
      %v1915 = vld [vmem:[#allocation3] sm:$0xff]
      %v1916 = vld [vmem:[#allocation3 + $0x8] sm:$0xff]
      %v1917 = vld [vmem:[#allocation3 + $0x10] sm:$0xff]
      %v1918 = vld [vmem:[#allocation3 + $0x18] sm:$0xff]
      %v1919 = vld [vmem:[#allocation3 + $0x20] sm:$0xff]
      %v1920 = vld [vmem:[#allocation3 + $0x28] sm:$0xff]
      %v1921 = vld [vmem:[#allocation3 + $0x30] sm:$0xff]
      %v1922 = vld [vmem:[#allocation3 + $0x38] sm:$0xff]
      %v1923 = vadd.f32 %v1915, %v1885
      %v1924 = vadd.f32 %v1916, %v1888
      %v1925 = vadd.f32 %v1917, %v1893
      %v1926 = vadd.f32 %v1918, %v1896
      %v1927 = vadd.f32 %v1919, %v1901
      %v1928 = vadd.f32 %v1920, %v1904
      %v1929 = vadd.f32 %v1921, %v1909
      %v1930 = vadd.f32 %v1922, %v1912
      %1931 = vst.msk [vmem:[#allocation3] sm:$0xff] %vm718, %v1923
      %1932 = vst.msk [vmem:[#allocation3 + $0x8] sm:$0xff] %vm718, %v1924
      %1933 = vst.msk [vmem:[#allocation3 + $0x10] sm:$0xff] %vm718, %v1925
      %1934 = vst.msk [vmem:[#allocation3 + $0x18] sm:$0xff] %vm718, %v1926
      %1935 = vst.msk [vmem:[#allocation3 + $0x20] sm:$0xff] %vm718, %v1927
      %1936 = vst.msk [vmem:[#allocation3 + $0x28] sm:$0xff] %vm718, %v1928
      %1937 = vst.msk [vmem:[#allocation3 + $0x30] sm:$0xff] %vm718, %v1929
      %1938 = vst.msk [vmem:[#allocation3 + $0x38] sm:$0xff] %vm718, %v1930
      %v1939 = vld [vmem:[%s1804] sm:$0xf]
      %v1940 = vld [vmem:[%s1804 + $0x4] sm:$0x1]
      %v1941 = vld [vmem:[%s1804 + $0x8] sm:$0xf]
      %v1942 = vld [vmem:[%s1804 + $0xc] sm:$0x1]
      %v1943 = vld [vmem:[%s1804 + $0x10] sm:$0xf]
      %v1944 = vld [vmem:[%s1804 + $0x14] sm:$0x1]
      %v1945 = vld [vmem:[%s1804 + $0x18] sm:$0xf]
      %v1946 = vld [vmem:[%s1804 + $0x1c] sm:$0x1]
      %v1947 = vld [vmem:[%s1804 + $0x20] sm:$0xf]
      %v1948 = vld [vmem:[%s1804 + $0x24] sm:$0x1]
      %v1949 = vld [vmem:[%s1804 + $0x28] sm:$0xf]
      %v1950 = vld [vmem:[%s1804 + $0x2c] sm:$0x1]
      %v1951 = vld [vmem:[%s1804 + $0x30] sm:$0xf]
      %v1952 = vld [vmem:[%s1804 + $0x34] sm:$0x1]
      %v1953 = vld [vmem:[%s1804 + $0x38] sm:$0xf]
      %v1954 = vld [vmem:[%s1804 + $0x3c] sm:$0x1]
      %v1956 = vshrl.u32 %v1939, 16
      %v1958 = vrot.slane %v1956, 4
      %v1959 = vshll.u32 %v1939, 16
      %v1961 = vrot.slane %v1959, 5
      %v1962 = vor.u32 %v1958, %v1961
      %v1963 = vrot.slane %v1962, 4
      %v1965 = vshll.u32 %v1940, 16
      %v1967 = vrot.slane %v1965, 5
      %v1968 = vsel %vm826, %v1963, %v1967
      %v1970 = vshrl.u32 %v1941, 16
      %v1972 = vrot.slane %v1970, 4
      %v1973 = vshll.u32 %v1941, 16
      %v1975 = vrot.slane %v1973, 5
      %v1976 = vor.u32 %v1972, %v1975
      %v1977 = vrot.slane %v1976, 4
      %v1979 = vshll.u32 %v1942, 16
      %v1981 = vrot.slane %v1979, 5
      %v1982 = vsel %vm826, %v1977, %v1981
      %v1984 = vshrl.u32 %v1943, 16
      %v1986 = vrot.slane %v1984, 4
      %v1987 = vshll.u32 %v1943, 16
      %v1989 = vrot.slane %v1987, 5
      %v1990 = vor.u32 %v1986, %v1989
      %v1991 = vrot.slane %v1990, 4
      %v1993 = vshll.u32 %v1944, 16
      %v1995 = vrot.slane %v1993, 5
      %v1996 = vsel %vm826, %v1991, %v1995
      %v1998 = vshrl.u32 %v1945, 16
      %v2000 = vrot.slane %v1998, 4
      %v2001 = vshll.u32 %v1945, 16
      %v2003 = vrot.slane %v2001, 5
      %v2004 = vor.u32 %v2000, %v2003
      %v2005 = vrot.slane %v2004, 4
      %v2007 = vshll.u32 %v1946, 16
      %v2009 = vrot.slane %v2007, 5
      %v2010 = vsel %vm826, %v2005, %v2009
      %v2012 = vshrl.u32 %v1947, 16
      %v2014 = vrot.slane %v2012, 4
      %v2015 = vshll.u32 %v1947, 16
      %v2017 = vrot.slane %v2015, 5
      %v2018 = vor.u32 %v2014, %v2017
      %v2019 = vrot.slane %v2018, 4
      %v2021 = vshll.u32 %v1948, 16
      %v2023 = vrot.slane %v2021, 5
      %v2024 = vsel %vm826, %v2019, %v2023
      %v2026 = vshrl.u32 %v1949, 16
      %v2028 = vrot.slane %v2026, 4
      %v2029 = vshll.u32 %v1949, 16
      %v2031 = vrot.slane %v2029, 5
      %v2032 = vor.u32 %v2028, %v2031
      %v2033 = vrot.slane %v2032, 4
      %v2035 = vshll.u32 %v1950, 16
      %v2037 = vrot.slane %v2035, 5
      %v2038 = vsel %vm826, %v2033, %v2037
      %v2040 = vshrl.u32 %v1951, 16
      %v2042 = vrot.slane %v2040, 4
      %v2043 = vshll.u32 %v1951, 16
      %v2045 = vrot.slane %v2043, 5
      %v2046 = vor.u32 %v2042, %v2045
      %v2047 = vrot.slane %v2046, 4
      %v2049 = vshll.u32 %v1952, 16
      %v2051 = vrot.slane %v2049, 5
      %v2052 = vsel %vm826, %v2047, %v2051
      %v2054 = vshrl.u32 %v1953, 16
      %v2056 = vrot.slane %v2054, 4
      %v2057 = vshll.u32 %v1953, 16
      %v2059 = vrot.slane %v2057, 5
      %v2060 = vor.u32 %v2056, %v2059
      %v2061 = vrot.slane %v2060, 4
      %v2063 = vshll.u32 %v1954, 16
      %v2065 = vrot.slane %v2063, 5
      %v2066 = vsel %vm826, %v2061, %v2065
      %s2067 = scalar_lea.vmem %s4, 28
      %v2068 = vld [vmem:[%s2067] sm:$0xf]
      %v2069 = vunpack.c.l.b16 %v1968
      %v2070 = vunpack.c.l.b16 %v1982
      %v2071 = vunpack.c.l.b16 %v1996
      %v2072 = vunpack.c.l.b16 %v2010
      %v2073 = vunpack.c.l.b16 %v2024
      %v2074 = vunpack.c.l.b16 %v2038
      %v2075 = vunpack.c.l.b16 %v2052
      %v2076 = vunpack.c.l.b16 %v2066
      %v2077 = vpack.c.b16 %v2070, %v2069
      %v2078 = vpack.c.b16 %v2072, %v2071
      %v2079 = vpack.c.b16 %v2074, %v2073
      %v2080 = vpack.c.b16 %v2076, %v2075
      %v2082 = vsel %vm718, %v2077, 0
      %v2085 = vsel %vm718, %v2078, 0
      %v2088 = vsel %vm718, %v2079, 0
      %v2091 = vsel %vm718, %v2080, 0
      %v2094 = vsel %vm731, %v2068, 0
      %2096 = vmatprep.subr.bf16.mxu0 0
      %2097 = vmatpush1.bf16.msra.mxu0 0
      %2098 = vmatprep.subr.bf16.mxu0 0
      %2099 = vmatpush1.bf16.msra.mxu0 0
      %2100 = vmatprep.subr.bf16.mxu0 0
      %2101 = vmatpush1.bf16.msra.mxu0 0
      %2102 = vmatprep.subr.bf16.mxu0 0
      %2103 = vmatpush1.bf16.msra.mxu0 0
      %2104 = vmatprep.subr.bf16.mxu0 0
      %2105 = vmatpush1.bf16.msra.mxu0 0
      %2106 = vmatprep.subr.bf16.mxu0 0
      %2107 = vmatpush1.bf16.msra.mxu0 0
      %2108 = vmatprep.subr.bf16.mxu0 0
      %2109 = vmatpush1.bf16.msra.mxu0 0
      %2110 = vmatprep.subr.bf16.mxu0 0
      %2111 = vmatpush1.bf16.msra.mxu0 %v2094
      %2112 = vmatprep.subr.bf16.mxu0 0
      %2113 = vmatpush2.bf16.msra.mxu0 0
      %2114 = vmatprep.subr.bf16.mxu0 0
      %2115 = vmatpush2.bf16.msra.mxu0 0
      %2116 = vmatprep.subr.bf16.mxu0 0
      %2117 = vmatpush2.bf16.msra.mxu0 0
      %2118 = vmatprep.subr.bf16.mxu0 0
      %2119 = vmatpush2.bf16.msra.mxu0 0
      %2120 = vmatprep.subr.bf16.mxu0 0
      %2121 = vmatpush2.bf16.msra.mxu0 0
      %2122 = vmatprep.subr.bf16.mxu0 0
      %2123 = vmatpush2.bf16.msra.mxu0 0
      %2124 = vmatprep.subr.bf16.mxu0 0
      %2125 = vmatpush2.bf16.msra.mxu0 0
      %2126 = vmatprep.subr.bf16.mxu0 0
      %2127 = vmatpush2.bf16.msra.mxu0 0
      %2128 = vmatprep.mubr.bf16.mxu0 0
      %2129 = vmatmul.mubr.bf16.gmra.mxu0 %v2082
      %v2130 = vpop.f32.mrf.mxu0
      %v2131 = vadd.f32 0.0, %v2130
      %v2132 = vpop.f32.mrf.mxu0
      %v2133 = vpop.f32.mrf.mxu0
      %v2134 = vadd.f32 0.0, %v2133
      %v2135 = vpop.f32.mrf.mxu0
      %2136 = vmatprep.mubr.bf16.mxu0 0
      %2137 = vmatmul.mubr.bf16.gmra.mxu0 %v2085
      %v2138 = vpop.f32.mrf.mxu0
      %v2139 = vadd.f32 0.0, %v2138
      %v2140 = vpop.f32.mrf.mxu0
      %v2141 = vpop.f32.mrf.mxu0
      %v2142 = vadd.f32 0.0, %v2141
      %v2143 = vpop.f32.mrf.mxu0
      %2144 = vmatprep.mubr.bf16.mxu0 0
      %2145 = vmatmul.mubr.bf16.gmra.mxu0 %v2088
      %v2146 = vpop.f32.mrf.mxu0
      %v2147 = vadd.f32 0.0, %v2146
      %v2148 = vpop.f32.mrf.mxu0
      %v2149 = vpop.f32.mrf.mxu0
      %v2150 = vadd.f32 0.0, %v2149
      %v2151 = vpop.f32.mrf.mxu0
      %2152 = vmatprep.mubr.bf16.mxu0 0
      %2153 = vmatmul.mubr.bf16.gmra.mxu0 %v2091
      %v2154 = vpop.f32.mrf.mxu0
      %v2155 = vadd.f32 0.0, %v2154
      %v2156 = vpop.f32.mrf.mxu0
      %v2157 = vpop.f32.mrf.mxu0
      %v2158 = vadd.f32 0.0, %v2157
      %v2159 = vpop.f32.mrf.mxu0
      %2160 = vdwg.mxu0
      %v2161 = vld [vmem:[#allocation3] sm:$0xff]
      %v2162 = vld [vmem:[#allocation3 + $0x8] sm:$0xff]
      %v2163 = vld [vmem:[#allocation3 + $0x10] sm:$0xff]
      %v2164 = vld [vmem:[#allocation3 + $0x18] sm:$0xff]
      %v2165 = vld [vmem:[#allocation3 + $0x20] sm:$0xff]
      %v2166 = vld [vmem:[#allocation3 + $0x28] sm:$0xff]
      %v2167 = vld [vmem:[#allocation3 + $0x30] sm:$0xff]
      %v2168 = vld [vmem:[#allocation3 + $0x38] sm:$0xff]
      %v2169 = vadd.f32 %v2161, %v2131
      %v2170 = vadd.f32 %v2162, %v2134
      %v2171 = vadd.f32 %v2163, %v2139
      %v2172 = vadd.f32 %v2164, %v2142
      %v2173 = vadd.f32 %v2165, %v2147
      %v2174 = vadd.f32 %v2166, %v2150
      %v2175 = vadd.f32 %v2167, %v2155
      %v2176 = vadd.f32 %v2168, %v2158
      %2177 = vst.msk [vmem:[#allocation3] sm:$0xff] %vm718, %v2169
      %2178 = vst.msk [vmem:[#allocation3 + $0x8] sm:$0xff] %vm718, %v2170
      %2179 = vst.msk [vmem:[#allocation3 + $0x10] sm:$0xff] %vm718, %v2171
      %2180 = vst.msk [vmem:[#allocation3 + $0x18] sm:$0xff] %vm718, %v2172
      %2181 = vst.msk [vmem:[#allocation3 + $0x20] sm:$0xff] %vm718, %v2173
      %2182 = vst.msk [vmem:[#allocation3 + $0x28] sm:$0xff] %vm718, %v2174
      %2183 = vst.msk [vmem:[#allocation3 + $0x30] sm:$0xff] %vm718, %v2175
      %2184 = vst.msk [vmem:[#allocation3 + $0x38] sm:$0xff] %vm718, %v2176
      %v2185 = vld [vmem:[%s1804] sm:$0xe]
      %v2186 = vld [vmem:[%s1804 + $0x4] sm:$0x1]
      %v2187 = vld [vmem:[%s1804 + $0x8] sm:$0xe]
      %v2188 = vld [vmem:[%s1804 + $0xc] sm:$0x1]
      %v2189 = vld [vmem:[%s1804 + $0x10] sm:$0xe]
      %v2190 = vld [vmem:[%s1804 + $0x14] sm:$0x1]
      %v2191 = vld [vmem:[%s1804 + $0x18] sm:$0xe]
      %v2192 = vld [vmem:[%s1804 + $0x1c] sm:$0x1]
      %v2193 = vld [vmem:[%s1804 + $0x20] sm:$0xe]
      %v2194 = vld [vmem:[%s1804 + $0x24] sm:$0x1]
      %v2195 = vld [vmem:[%s1804 + $0x28] sm:$0xe]
      %v2196 = vld [vmem:[%s1804 + $0x2c] sm:$0x1]
      %v2197 = vld [vmem:[%s1804 + $0x30] sm:$0xe]
      %v2198 = vld [vmem:[%s1804 + $0x34] sm:$0x1]
      %v2199 = vld [vmem:[%s1804 + $0x38] sm:$0xe]
      %v2200 = vld [vmem:[%s1804 + $0x3c] sm:$0x1]
      %v2217 = vrot.slane %v2185, 5
      %v2218 = vrot.slane %v2217, 4
      %v2219 = vrot.slane %v2186, 5
      %v2220 = vsel %vm1091, %v2218, %v2219
      %v2221 = vrot.slane %v2187, 5
      %v2222 = vrot.slane %v2221, 4
      %v2223 = vrot.slane %v2188, 5
      %v2224 = vsel %vm1091, %v2222, %v2223
      %v2225 = vrot.slane %v2189, 5
      %v2226 = vrot.slane %v2225, 4
      %v2227 = vrot.slane %v2190, 5
      %v2228 = vsel %vm1091, %v2226, %v2227
      %v2229 = vrot.slane %v2191, 5
      %v2230 = vrot.slane %v2229, 4
      %v2231 = vrot.slane %v2192, 5
      %v2232 = vsel %vm1091, %v2230, %v2231
      %v2233 = vrot.slane %v2193, 5
      %v2234 = vrot.slane %v2233, 4
      %v2235 = vrot.slane %v2194, 5
      %v2236 = vsel %vm1091, %v2234, %v2235
      %v2237 = vrot.slane %v2195, 5
      %v2238 = vrot.slane %v2237, 4
      %v2239 = vrot.slane %v2196, 5
      %v2240 = vsel %vm1091, %v2238, %v2239
      %v2241 = vrot.slane %v2197, 5
      %v2242 = vrot.slane %v2241, 4
      %v2243 = vrot.slane %v2198, 5
      %v2244 = vsel %vm1091, %v2242, %v2243
      %v2245 = vrot.slane %v2199, 5
      %v2246 = vrot.slane %v2245, 4
      %v2247 = vrot.slane %v2200, 5
      %v2248 = vsel %vm1091, %v2246, %v2247
      %s2249 = scalar_lea.vmem %s4, 32
      %v2250 = vld [vmem:[%s2249] sm:$0xf]
      %v2251 = vunpack.c.l.b16 %v2220
      %v2252 = vunpack.c.l.b16 %v2224
      %v2253 = vunpack.c.l.b16 %v2228
      %v2254 = vunpack.c.l.b16 %v2232
      %v2255 = vunpack.c.l.b16 %v2236
      %v2256 = vunpack.c.l.b16 %v2240
      %v2257 = vunpack.c.l.b16 %v2244
      %v2258 = vunpack.c.l.b16 %v2248
      %v2259 = vpack.c.b16 %v2252, %v2251
      %v2260 = vpack.c.b16 %v2254, %v2253
      %v2261 = vpack.c.b16 %v2256, %v2255
      %v2262 = vpack.c.b16 %v2258, %v2257
      %v2264 = vsel %vm718, %v2259, 0
      %v2267 = vsel %vm718, %v2260, 0
      %v2270 = vsel %vm718, %v2261, 0
      %v2273 = vsel %vm718, %v2262, 0
      %v2276 = vsel %vm731, %v2250, 0
      %2278 = vmatprep.subr.bf16.mxu0 0
      %2279 = vmatpush1.bf16.msra.mxu0 0
      %2280 = vmatprep.subr.bf16.mxu0 0
      %2281 = vmatpush1.bf16.msra.mxu0 0
      %2282 = vmatprep.subr.bf16.mxu0 0
      %2283 = vmatpush1.bf16.msra.mxu0 0
      %2284 = vmatprep.subr.bf16.mxu0 0
      %2285 = vmatpush1.bf16.msra.mxu0 0
      %2286 = vmatprep.subr.bf16.mxu0 0
      %2287 = vmatpush1.bf16.msra.mxu0 0
      %2288 = vmatprep.subr.bf16.mxu0 0
      %2289 = vmatpush1.bf16.msra.mxu0 0
      %2290 = vmatprep.subr.bf16.mxu0 0
      %2291 = vmatpush1.bf16.msra.mxu0 0
      %2292 = vmatprep.subr.bf16.mxu0 0
      %2293 = vmatpush1.bf16.msra.mxu0 %v2276
      %2294 = vmatprep.subr.bf16.mxu0 0
      %2295 = vmatpush2.bf16.msra.mxu0 0
      %2296 = vmatprep.subr.bf16.mxu0 0
      %2297 = vmatpush2.bf16.msra.mxu0 0
      %2298 = vmatprep.subr.bf16.mxu0 0
      %2299 = vmatpush2.bf16.msra.mxu0 0
      %2300 = vmatprep.subr.bf16.mxu0 0
      %2301 = vmatpush2.bf16.msra.mxu0 0
      %2302 = vmatprep.subr.bf16.mxu0 0
      %2303 = vmatpush2.bf16.msra.mxu0 0
      %2304 = vmatprep.subr.bf16.mxu0 0
      %2305 = vmatpush2.bf16.msra.mxu0 0
      %2306 = vmatprep.subr.bf16.mxu0 0
      %2307 = vmatpush2.bf16.msra.mxu0 0
      %2308 = vmatprep.subr.bf16.mxu0 0
      %2309 = vmatpush2.bf16.msra.mxu0 0
      %2310 = vmatprep.mubr.bf16.mxu0 0
      %2311 = vmatmul.mubr.bf16.gmra.mxu0 %v2264
      %v2312 = vpop.f32.mrf.mxu0
      %v2313 = vadd.f32 0.0, %v2312
      %v2314 = vpop.f32.mrf.mxu0
      %v2315 = vpop.f32.mrf.mxu0
      %v2316 = vadd.f32 0.0, %v2315
      %v2317 = vpop.f32.mrf.mxu0
      %2318 = vmatprep.mubr.bf16.mxu0 0
      %2319 = vmatmul.mubr.bf16.gmra.mxu0 %v2267
      %v2320 = vpop.f32.mrf.mxu0
      %v2321 = vadd.f32 0.0, %v2320
      %v2322 = vpop.f32.mrf.mxu0
      %v2323 = vpop.f32.mrf.mxu0
      %v2324 = vadd.f32 0.0, %v2323
      %v2325 = vpop.f32.mrf.mxu0
      %2326 = vmatprep.mubr.bf16.mxu0 0
      %2327 = vmatmul.mubr.bf16.gmra.mxu0 %v2270
      %v2328 = vpop.f32.mrf.mxu0
      %v2329 = vadd.f32 0.0, %v2328
      %v2330 = vpop.f32.mrf.mxu0
      %v2331 = vpop.f32.mrf.mxu0
      %v2332 = vadd.f32 0.0, %v2331
      %v2333 = vpop.f32.mrf.mxu0
      %2334 = vmatprep.mubr.bf16.mxu0 0
      %2335 = vmatmul.mubr.bf16.gmra.mxu0 %v2273
      %v2336 = vpop.f32.mrf.mxu0
      %v2337 = vadd.f32 0.0, %v2336
      %v2338 = vpop.f32.mrf.mxu0
      %v2339 = vpop.f32.mrf.mxu0
      %v2340 = vadd.f32 0.0, %v2339
      %v2341 = vpop.f32.mrf.mxu0
      %2342 = vdwg.mxu0
      %v2343 = vld [vmem:[#allocation3] sm:$0xff]
      %v2344 = vld [vmem:[#allocation3 + $0x8] sm:$0xff]
      %v2345 = vld [vmem:[#allocation3 + $0x10] sm:$0xff]
      %v2346 = vld [vmem:[#allocation3 + $0x18] sm:$0xff]
      %v2347 = vld [vmem:[#allocation3 + $0x20] sm:$0xff]
      %v2348 = vld [vmem:[#allocation3 + $0x28] sm:$0xff]
      %v2349 = vld [vmem:[#allocation3 + $0x30] sm:$0xff]
      %v2350 = vld [vmem:[#allocation3 + $0x38] sm:$0xff]
      %v2351 = vadd.f32 %v2343, %v2313
      %v2352 = vadd.f32 %v2344, %v2316
      %v2353 = vadd.f32 %v2345, %v2321
      %v2354 = vadd.f32 %v2346, %v2324
      %v2355 = vadd.f32 %v2347, %v2329
      %v2356 = vadd.f32 %v2348, %v2332
      %v2357 = vadd.f32 %v2349, %v2337
      %v2358 = vadd.f32 %v2350, %v2340
      %2359 = vst.msk [vmem:[#allocation3] sm:$0xff] %vm718, %v2351
      %2360 = vst.msk [vmem:[#allocation3 + $0x8] sm:$0xff] %vm718, %v2352
      %2361 = vst.msk [vmem:[#allocation3 + $0x10] sm:$0xff] %vm718, %v2353
      %2362 = vst.msk [vmem:[#allocation3 + $0x18] sm:$0xff] %vm718, %v2354
      %2363 = vst.msk [vmem:[#allocation3 + $0x20] sm:$0xff] %vm718, %v2355
      %2364 = vst.msk [vmem:[#allocation3 + $0x28] sm:$0xff] %vm718, %v2356
      %2365 = vst.msk [vmem:[#allocation3 + $0x30] sm:$0xff] %vm718, %v2357
      %2366 = vst.msk [vmem:[#allocation3 + $0x38] sm:$0xff] %vm718, %v2358
      %v2367 = vld [vmem:[#allocation3] sm:$0xff]
      %v2368 = vld [vmem:[#allocation3 + $0x8] sm:$0xff]
      %v2369 = vld [vmem:[#allocation3 + $0x10] sm:$0xff]
      %v2370 = vld [vmem:[#allocation3 + $0x18] sm:$0xff]
      %v2371 = vld [vmem:[#allocation3 + $0x20] sm:$0xff]
      %v2372 = vld [vmem:[#allocation3 + $0x28] sm:$0xff]
      %v2373 = vld [vmem:[#allocation3 + $0x30] sm:$0xff]
      %v2374 = vld [vmem:[#allocation3 + $0x38] sm:$0xff]
      %v2375 = vld [vmem:[%s5] sm:$0x1]
      %v2377 = vlaneseq
      %v2378 = vshrl.u32 %v2377, 7
      %v2379 = vsub.s32 0, %v2378
      %v2380 = vrot.slane %v2375, %v2379
      %v2382 = vadd.f32 %v2367, %v2380
      %v2383 = vadd.f32 %v2368, %v2380
      %v2384 = vadd.f32 %v2369, %v2380
      %v2385 = vadd.f32 %v2370, %v2380
      %v2386 = vadd.f32 %v2371, %v2380
      %v2387 = vadd.f32 %v2372, %v2380
      %v2388 = vadd.f32 %v2373, %v2380
      %v2389 = vadd.f32 %v2374, %v2380
      %v2390 = vsel %vm718, %v2382, 0.0
      %v2391 = vsel %vm718, %v2383, 0.0
      %v2392 = vadd.f32 %v2390, %v2391
      %v2393 = vsel %vm718, %v2384, 0.0
      %v2394 = vadd.f32 %v2392, %v2393
      %v2395 = vsel %vm718, %v2385, 0.0
      %v2396 = vadd.f32 %v2394, %v2395
      %v2397 = vsel %vm718, %v2386, 0.0
      %v2398 = vadd.f32 %v2396, %v2397
      %v2399 = vsel %vm718, %v2387, 0.0
      %v2400 = vadd.f32 %v2398, %v2399
      %v2401 = vsel %vm718, %v2388, 0.0
      %v2402 = vadd.f32 %v2400, %v2401
      %v2403 = vsel %vm718, %v2389, 0.0
      %v2404 = vadd.f32 %v2402, %v2403
      %v2405 = vrot.slane %v2404, 4
      %v2406 = vadd.f32 %v2404, %v2405
      %v2407 = vrot.slane %v2406, 2
      %v2408 = vadd.f32 %v2406, %v2407
      %v2409 = vrot.slane %v2408, 1
      %v2410 = vadd.f32 %v2408, %v2409
      %v2411 = vmul.f32 %v2410, 0.015625
      %v2412 = vsub.f32 %v2382, %v2411
      %v2413 = vsub.f32 %v2383, %v2411
      %v2414 = vsub.f32 %v2384, %v2411
      %v2415 = vsub.f32 %v2385, %v2411
      %v2416 = vsub.f32 %v2386, %v2411
      %v2417 = vsub.f32 %v2387, %v2411
      %v2418 = vsub.f32 %v2388, %v2411
      %v2419 = vsub.f32 %v2389, %v2411
      %v2420 = vmul.f32 %v2412, %v2412
      %v2421 = vmul.f32 %v2413, %v2413
      %v2422 = vmul.f32 %v2414, %v2414
      %v2423 = vmul.f32 %v2415, %v2415
      %v2424 = vmul.f32 %v2416, %v2416
      %v2425 = vmul.f32 %v2417, %v2417
      %v2426 = vmul.f32 %v2418, %v2418
      %v2427 = vmul.f32 %v2419, %v2419
      %v2428 = vsel %vm718, %v2420, 0.0
      %v2429 = vsel %vm718, %v2421, 0.0
      %v2430 = vadd.f32 %v2428, %v2429
      %v2431 = vsel %vm718, %v2422, 0.0
      %v2432 = vadd.f32 %v2430, %v2431
      %v2433 = vsel %vm718, %v2423, 0.0
      %v2434 = vadd.f32 %v2432, %v2433
      %v2435 = vsel %vm718, %v2424, 0.0
      %v2436 = vadd.f32 %v2434, %v2435
      %v2437 = vsel %vm718, %v2425, 0.0
      %v2438 = vadd.f32 %v2436, %v2437
      %v2439 = vsel %vm718, %v2426, 0.0
      %v2440 = vadd.f32 %v2438, %v2439
      %v2441 = vsel %vm718, %v2427, 0.0
      %v2442 = vadd.f32 %v2440, %v2441
      %v2443 = vrot.slane %v2442, 4
      %v2444 = vadd.f32 %v2442, %v2443
      %v2445 = vrot.slane %v2444, 2
      %v2446 = vadd.f32 %v2444, %v2445
      %v2447 = vrot.slane %v2446, 1
      %v2448 = vadd.f32 %v2446, %v2447
      %vm2449 = vcmask 57344
      %2450 = vst.msk [vmem:[%s370] sm:$0x1] %vm2449, %v2410
      %2451 = vst.msk [vmem:[%s370 + $0x1] sm:$0x1] %vm2449, %v2448
      %v2452 = vpack.c.bf16 %v2382, %v2382
      %v2453 = vpack.c.bf16 %v2383, %v2383
      %v2454 = vpack.c.bf16 %v2384, %v2384
      %v2455 = vpack.c.bf16 %v2385, %v2385
      %v2456 = vpack.c.bf16 %v2386, %v2386
      %v2457 = vpack.c.bf16 %v2387, %v2387
      %v2458 = vpack.c.bf16 %v2388, %v2388
      %v2459 = vpack.c.bf16 %v2389, %v2389
      %vm2460 = vcmask 60416
      %2461 = vst.msk [vmem:[%s362] sm:$0xf] %vm2460, %v2452
      %2462 = vst.msk [vmem:[%s362 + $0x4] sm:$0xf] %vm2460, %v2453
      %2463 = vst.msk [vmem:[%s362 + $0x8] sm:$0xf] %vm2460, %v2454
      %2464 = vst.msk [vmem:[%s362 + $0xc] sm:$0xf] %vm2460, %v2455
      %2465 = vst.msk [vmem:[%s362 + $0x10] sm:$0xf] %vm2460, %v2456
      %2466 = vst.msk [vmem:[%s362 + $0x14] sm:$0xf] %vm2460, %v2457
      %2467 = vst.msk [vmem:[%s362 + $0x18] sm:$0xf] %vm2460, %v2458
      %2468 = vst.msk [vmem:[%s362 + $0x1c] sm:$0xf] %vm2460, %v2459
      %s2469 = smul.u32 8, %s24
      %p2470 = scmp.lt.s32.totalorder %s23, 1
      %s2471 = scalar_select %p2470, %s23, 1
      %p2472 = scmp.lt.s32.totalorder %s2469, 7
      %s2473 = scalar_select %p2472, %s2469, 7
      %s2474 = smul.addr %s2471, 8
      %s2475 = sadd.s32 %s2473, %s2474
      %s2476 = smul.addr %s2475, 4
      %s2477 = scalar_lea.vmem %s6, %s2476
      %p2478 = scmp.lt.s32.totalorder %s23, 1
      %s2479 = scalar_select %p2478, %s23, 1
      %p2480 = scmp.lt.s32.totalorder %s24, 0
      %s2481 = scalar_select %p2480, %s24, 0
      %s2482 = sadd.s32 %s2481, %s2479
      %s2483 = smul.addr %s2482, 2
      %s2484 = scalar_lea.vmem %s7, %s2483
      // Predicated region
      $region45: #{down_forward.3} parent=43 // pred_check
        %p2485 = pneg %p191
      $region46: #{down_forward.3} parent=43 // pred_check_branch
        %2487 = sbr.rel (%p2485) target = $region48
      $region47: #{down_forward.3} parent=43 // pred_region
        %s2488 = smul.u32 8, %s24
      $region48: #{down_forward.3} parent=43 // pred_fallthru
        _
      // Predicated region
      $region49: #{down_forward.3} parent=43 // pred_check
        %p2489 = pneg %p219
      $region50: #{down_forward.3} parent=43 // pred_check_branch
        %2491 = sbr.rel (%p2489) target = $region52
      $region51: #{down_forward.3} parent=43 // pred_region
        _
      $region52: #{down_forward.3} parent=43 // pred_fallthru
        _
    $region44: #{down_forward.3} parent=5 // pred_fallthru
      _
    %p2492 = scmp.le.s32.totalorder 2, %s14
    // Predicated region
    $region53: #{down_forward.3} parent=5 // pred_check
      %p2493 = pneg %p2492
    $region54: #{down_forward.3} parent=5 // pred_check_branch
      %2495 = sbr.rel (%p2493) target = $region56
    $region55: #{down_forward.3} parent=5 // pred_region
      %s2496 = ssub.s32 %s14, 2
      // Predicated region
      $region57: #{down_forward.3} parent=55 // pred_check
        %p2497 = pneg %p197
      $region58: #{down_forward.3} parent=55 // pred_check_branch
        %2499 = sbr.rel (%p2497) target = $region60
      $region59: #{down_forward.3} parent=55 // pred_region
        %s2500 = smul.u32 8, %s26
        %p2501 = scmp.lt.s32.totalorder %s25, 1
        %s2502 = scalar_select %p2501, %s25, 1
        %p2503 = scmp.lt.s32.totalorder %s2500, 7
        %s2504 = scalar_select %p2503, %s2500, 7
        %s2505 = smul.addr %s2502, 8
        %s2506 = sadd.s32 %s2504, %s2505
        %s2507 = smul.addr %s2506, 4
        %s2508 = scalar_lea.vmem %s6, %s2507
      $region60: #{down_forward.3} parent=55 // pred_fallthru
        _
      // Predicated region
      $region61: #{down_forward.3} parent=55 // pred_check
        %p2509 = pneg %p225
      $region62: #{down_forward.3} parent=55 // pred_check_branch
        %2511 = sbr.rel (%p2509) target = $region64
      $region63: #{down_forward.3} parent=55 // pred_region
        %p2512 = scmp.lt.s32.totalorder %s25, 1
        %s2513 = scalar_select %p2512, %s25, 1
        %p2514 = scmp.lt.s32.totalorder %s26, 0
        %s2515 = scalar_select %p2514, %s26, 0
        %s2516 = sadd.s32 %s2515, %s2513
        %s2517 = smul.addr %s2516, 2
        %s2518 = scalar_lea.vmem %s7, %s2517
      $region64: #{down_forward.3} parent=55 // pred_fallthru
        _
    $region56: #{down_forward.3} parent=5 // pred_fallthru
      _
  $region6: #{down_forward.3} parent=0 // loop_footer
    %s18 = sadd.s32 1, %s14
  $region7: #{down_forward.3} parent=0 // loop_footer_branch
    %13 = sbr.rel target = $region3
  $region8: #{down_forward.3} parent=0 // loop_exit
    _

</llo_original>
